<compile_context>
chip_gen: v6e
topology: v6e:2x2x1
jax: 0.10.0
libtpu: 0.0.40
codegen_flags: <defaults>
</compile_context>

<pallas_src>
import functools

import numpy as np
import jax
import jax.numpy as jnp
from jax import lax
from jax.experimental import pallas as pl
from jax.experimental.pallas import tpu as pltpu


def _pick_row_strip(H):
    """Row-strip height for the cc stage (bounds vreg liveness)."""
    for cand in (32, 16, 8):
        if H % cand == 0:
            return cand
    return H


def ncc_kernel(i_ref, j_ref, bh_ref, bw_ref, out_ref,
               s_i, s_j, s_i2, s_j2, s_ij,
               *, D, TD, eps):
    """One grid step = one (sample, D-slab).

    i_ref, j_ref : (TD, H, W) raw input slab (native dtype).
    bh_ref       : (H, H) 0/1 tridiagonal band matrix (3-tap sum along H).
    bw_ref       : (W, W) 0/1 tridiagonal band matrix (3-tap sum along W).
    out_ref      : (1, W) lane-dense per-step partial sum of cc.
    s_*          : (3, H, W) rolling buffers of (W,H)-box-summed planes, one
                   per quantity (I, J, I*I, J*J, I*J); persist across slabs.
    """
    slab = pl.program_id(1)
    n_slabs = pl.num_programs(1)
    _, H, W = i_ref.shape
    state = (s_i, s_j, s_i2, s_j2, s_ij)
    inv_ws = 1.0 / 27.0            # 1 / win**3
    ROWS = _pick_row_strip(H)

    # New sample: rolling state must read as t[-1] = t[-2] = 0.
    @pl.when(slab == 0)
    def _():
        for ref in state:
            ref[...] = jnp.zeros_like(ref)

    def cc_from(uI, uJ, uI2, uJ2, uIJ):
        # Algebraically simplified (exactly equivalent to the module's form).
        cross = uIJ - uI * uJ * inv_ws
        i_var = uI2 - uI * uI * inv_ws
        j_var = uJ2 - uJ * uJ * inv_ws
        denom = i_var * j_var + eps
        r = pl.reciprocal(denom, approx=True)
        r = r * (2.0 - denom * r)          # one Newton step for f32 accuracy
        return cross * cross * r

    def cc_row_sums():
        """(1, W) sublane-reduced cc for the output plane whose three
        box-summed planes currently occupy ALL three rolling slots."""
        def strip(r, acc_w):
            rows = pl.ds(r * ROWS, ROWS)
            u = [ref[0, rows, :] + ref[1, rows, :] + ref[2, rows, :]
                 for ref in state]
            cc = cc_from(*u)
            return acc_w + jnp.sum(cc, axis=0, keepdims=True)
        return lax.fori_loop(0, H // ROWS, strip,
                             jnp.zeros((1, W), jnp.float32))

    def box_hw(x):
        """3-tap box sum along W then H (zero padding) on the MXU."""
        t = jnp.dot(x, bw_ref[...], precision=lax.Precision.HIGHEST,
                    preferred_element_type=jnp.float32)
        return jnp.dot(bh_ref[...], t, precision=lax.Precision.HIGHEST,
                       preferred_element_type=jnp.float32)

    start_gp = slab * TD
    # Planes to process this slab: all valid planes plus (when D % TD != 0
    # and this is the last slab) one virtual all-zero plane gp == D so the
    # final output plane D-1 is emitted in-loop.  Planes past that are waste
    # and are skipped entirely.
    n_local = jnp.clip(D + 1 - start_gp, 0, TD)

    def body(p, acc):
        gp = start_gp + p                       # global input-plane index
        xi = i_ref[p].astype(jnp.float32)
        xj = j_ref[p].astype(jnp.float32)
        if D % TD != 0:
            valid = gp < D                      # only the virtual plane fails
            xi = jnp.where(valid, xi, 0.0)      # select: OOB garbage/NaN safe
            xj = jnp.where(valid, xj, 0.0)
        quants = (xi, xj, xi * xi, xj * xj, xi * xj)

        # Write t[gp] into its slot first; the three slots then hold exactly
        # t[gp-2], t[gp-1], t[gp] = the D-window of output plane gp-1.
        sl_w = gp % 3
        for ref, q in zip(state, quants):
            ref[sl_w] = box_hw(q)

        contrib = cc_row_sums()                 # (1, W)
        return acc + jnp.where(gp >= 1, contrib, 0.0)

    acc = lax.fori_loop(0, n_local, body, jnp.zeros((1, W), jnp.float32))
    out_ref[...] = acc

    # When TD divides D the virtual plane gp == D never appears in-loop, so
    # output plane D-1 = t[D-2] + t[D-1] + 0 still needs emitting.
    if D % TD == 0:
        @pl.when(slab == n_slabs - 1)
        def _():
            # Zero the stale slot (holds t[D-3]); summing all three slots in
            # cc_row_sums then yields exactly t[D-2] + t[D-1].
            for ref in state:
                ref[D % 3] = jnp.zeros((H, W), jnp.float32)
            out_ref[...] = acc + cc_row_sums()


def _band_matrix(n):
    idx = np.arange(n)
    return jnp.asarray(np.abs(idx[:, None] - idx[None, :]) <= 1, jnp.float32)


def ncc_loss(I, J, *, win=3, eps=1e-8, block_d=None):
    """NCCLoss.forward equivalent.  I, J: (N, 1, D, H, W) (NCDHW)."""
    assert I.shape == J.shape and I.ndim == 5 and I.shape[1] == 1, \
        "expects single-channel 5D input"
    assert win == 3, "kernel is specialized to win=3"
    N, C, D, H, W = I.shape
    itemsize = jnp.dtype(I.dtype).itemsize

    if block_d is None:
        # Keep the live input-slab bytes (2 inputs x double buffer) modest so
        # the total footprint fits v7x's 64 MiB with headroom.  On 128 MiB
        # parts (v5e/v6e) a larger block_d can be passed explicitly.
        slab_budget = 16 << 20
        per_plane = 2 * 2 * H * W * itemsize
        block_d = int(max(1, min(D, 16, slab_budget // max(per_plane, 1))))
    TD = int(block_d)
    S = -(-D // TD)                             # number of D-slabs

    band_h = _band_matrix(H)
    band_w = _band_matrix(W)

    # Per-step VMEM footprint (+ headroom) instead of a hard-coded limit.
    in_bytes = 2 * 2 * TD * H * W * itemsize            # inputs, double-buffered
    state_bytes = 5 * 3 * H * W * 4                      # rolling box-sum state
    band_bytes = 2 * 2 * (H * H + W * W) * 4             # band matrices
    out_bytes = 2 * 1 * W * 4                            # (1, W) partials
    vmem_limit = int(min(in_bytes + state_bytes + band_bytes + out_bytes
                         + (24 << 20),                   # headroom / temporaries
                         100 << 20))

    kernel = functools.partial(ncc_kernel, D=D, TD=TD, eps=float(eps))
    in_spec = pl.BlockSpec((None, None, TD, H, W), lambda n, s: (n, 0, s, 0, 0))

    partial = pl.pallas_call(
        kernel,
        out_shape=jax.ShapeDtypeStruct((N, S, 1, W), jnp.float32),
        grid=(N, S),
        in_specs=[in_spec, in_spec,
                  pl.BlockSpec((H, H), lambda n, s: (0, 0)),
                  pl.BlockSpec((W, W), lambda n, s: (0, 0))],
        out_specs=pl.BlockSpec((None, None, 1, W), lambda n, s: (n, s, 0, 0)),
        scratch_shapes=[pltpu.VMEM((3, H, W), jnp.float32) for _ in range(5)],
        compiler_params=pltpu.CompilerParams(
            dimension_semantics=("parallel", "arbitrary"),
            vmem_limit_bytes=vmem_limit,
        ),
    )(I, J, band_h, band_w)

    n_elem = N * C * D * H * W
    return -1.0 * jnp.sum(partial) / n_elem


def ncc_loss_ref_np(I, J, *, win=3, eps=1e-8):
    """Independent numpy reference mirroring the PyTorch module."""
    I = np.asarray(I, np.float64)
    J = np.asarray(J, np.float64)
    N, C, D, H, W = I.shape
    pad = win // 2

    def box(x):
        xp = np.pad(x, ((0, 0), (0, 0), (pad, pad), (pad, pad), (pad, pad)))
        out = np.zeros_like(x)
        for a in range(win):
            for b in range(win):
                for c in range(win):
                    out += xp[:, :, a:a + D, b:b + H, c:c + W]
        return out

    ws = float(win ** 3)
    I_sum, J_sum = box(I), box(J)
    I2_sum, J2_sum, IJ_sum = box(I * I), box(J * J), box(I * J)
    u_I, u_J = I_sum / ws, J_sum / ws
    cross = IJ_sum - u_J * I_sum - u_I * J_sum + u_I * u_J * ws
    I_var = I2_sum - 2 * u_I * I_sum + u_I * u_I * ws
    J_var = J2_sum - 2 * u_J * J_sum + u_J * u_J * ws
    cc = cross * cross / (I_var * J_var + eps)
    return -1.0 * np.mean(cc)


if __name__ == "__main__":
    key = jax.random.PRNGKey(0)
    k1, k2 = jax.random.split(key)
    N, C, D, H, W = 2, 1, 8, 16, 16
    I = jax.random.normal(k1, (N, C, D, H, W), dtype=jnp.float32)
    J = jax.random.normal(k2, (N, C, D, H, W), dtype=jnp.float32)

    ref = ncc_loss_ref_np(np.asarray(I), np.asarray(J))

    # block_d divides D: exercises cross-slab state carry + explicit tail plane.
    loss_a = jax.block_until_ready(
        jax.jit(lambda a, b: ncc_loss(a, b, block_d=4))(I, J))
    np.testing.assert_allclose(np.asarray(loss_a), ref, rtol=1e-4, atol=1e-5)

    # block_d does not divide D: exercises the partial-last-slab path.
    loss_b = jax.block_until_ready(
        jax.jit(lambda a, b: ncc_loss(a, b, block_d=3))(I, J))
    np.testing.assert_allclose(np.asarray(loss_b), ref, rtol=1e-4, atol=1e-5)

    print("KERNEL_OK")
</pallas_src>

<mosaic_0001>
module attributes {stable_mosaic.version = 11 : i64} {
  func.func @ncc_kernel(%arg0: i32, %arg1: i32, %arg2: memref<1x1x4x16x16xf32, #tpu.memory_space<vmem>>, %arg3: memref<1x1x4x16x16xf32, #tpu.memory_space<vmem>>, %arg4: memref<16x16xf32, #tpu.memory_space<vmem>>, %arg5: memref<16x16xf32, #tpu.memory_space<vmem>>, %arg6: memref<1x1x1x16xf32, #tpu.memory_space<vmem>>, %arg7: memref<3x16x16xf32, #tpu.memory_space<vmem>>, %arg8: memref<3x16x16xf32, #tpu.memory_space<vmem>>, %arg9: memref<3x16x16xf32, #tpu.memory_space<vmem>>, %arg10: memref<3x16x16xf32, #tpu.memory_space<vmem>>, %arg11: memref<3x16x16xf32, #tpu.memory_space<vmem>>) attributes {dimension_semantics = [#tpu.dimension_semantics<parallel>, #tpu.dimension_semantics<arbitrary>], iteration_bounds = array<i64: 2, 2>, scalar_prefetch = 0 : i64, scratch_operands = 5 : i64, tpu.core_type = #tpu.core_type<tc>, window_params = [{transform_indices = @transform_0, window_bounds = array<i64: 1, 1, 4, 16, 16>}, {transform_indices = @transform_1, window_bounds = array<i64: 1, 1, 4, 16, 16>}, {pipeline_mode = #tpu.pipeline_mode<synchronous>, transform_indices = @transform_2, window_bounds = array<i64: 16, 16>}, {pipeline_mode = #tpu.pipeline_mode<synchronous>, transform_indices = @transform_3, window_bounds = array<i64: 16, 16>}, {transform_indices = @transform_4, window_bounds = array<i64: 1, 1, 1, 16>}]} {
    %c0_i32 = arith.constant 0 : i32
    %0 = arith.cmpi eq, %arg1, %c0_i32 : i32
    %1 = arith.extui %0 : i1 to i32
    %c0_i32_0 = arith.constant 0 : i32
    %2 = arith.cmpi ne, %1, %c0_i32_0 : i32
    scf.if %2 {
      %cst_9 = arith.constant 0.000000e+00 : f32
      %17 = vector.broadcast %cst_9 : f32 to vector<3x16x16xf32>
      %c0_10 = arith.constant 0 : index
      %c0_11 = arith.constant 0 : index
      %c0_12 = arith.constant 0 : index
      %18 = vector.load %arg7[%c0_10, %c0_11, %c0_12] : memref<3x16x16xf32, #tpu.memory_space<vmem>>, vector<3x16x16xf32>
      tpu.vector_store %arg7[%c0_10, %c0_11, %c0_12], %17 {strides = array<i32>} : memref<3x16x16xf32, #tpu.memory_space<vmem>>, vector<3x16x16xf32>,
      %cst_13 = arith.constant 0.000000e+00 : f32
      %19 = vector.broadcast %cst_13 : f32 to vector<3x16x16xf32>
      %c0_14 = arith.constant 0 : index
      %c0_15 = arith.constant 0 : index
      %c0_16 = arith.constant 0 : index
      %20 = vector.load %arg8[%c0_14, %c0_15, %c0_16] : memref<3x16x16xf32, #tpu.memory_space<vmem>>, vector<3x16x16xf32>
      tpu.vector_store %arg8[%c0_14, %c0_15, %c0_16], %19 {strides = array<i32>} : memref<3x16x16xf32, #tpu.memory_space<vmem>>, vector<3x16x16xf32>,
      %cst_17 = arith.constant 0.000000e+00 : f32
      %21 = vector.broadcast %cst_17 : f32 to vector<3x16x16xf32>
      %c0_18 = arith.constant 0 : index
      %c0_19 = arith.constant 0 : index
      %c0_20 = arith.constant 0 : index
      %22 = vector.load %arg9[%c0_18, %c0_19, %c0_20] : memref<3x16x16xf32, #tpu.memory_space<vmem>>, vector<3x16x16xf32>
      tpu.vector_store %arg9[%c0_18, %c0_19, %c0_20], %21 {strides = array<i32>} : memref<3x16x16xf32, #tpu.memory_space<vmem>>, vector<3x16x16xf32>,
      %cst_21 = arith.constant 0.000000e+00 : f32
      %23 = vector.broadcast %cst_21 : f32 to vector<3x16x16xf32>
      %c0_22 = arith.constant 0 : index
      %c0_23 = arith.constant 0 : index
      %c0_24 = arith.constant 0 : index
      %24 = vector.load %arg10[%c0_22, %c0_23, %c0_24] : memref<3x16x16xf32, #tpu.memory_space<vmem>>, vector<3x16x16xf32>
      tpu.vector_store %arg10[%c0_22, %c0_23, %c0_24], %23 {strides = array<i32>} : memref<3x16x16xf32, #tpu.memory_space<vmem>>, vector<3x16x16xf32>,
      %cst_25 = arith.constant 0.000000e+00 : f32
      %25 = vector.broadcast %cst_25 : f32 to vector<3x16x16xf32>
      %c0_26 = arith.constant 0 : index
      %c0_27 = arith.constant 0 : index
      %c0_28 = arith.constant 0 : index
      %26 = vector.load %arg11[%c0_26, %c0_27, %c0_28] : memref<3x16x16xf32, #tpu.memory_space<vmem>>, vector<3x16x16xf32>
      tpu.vector_store %arg11[%c0_26, %c0_27, %c0_28], %25 {strides = array<i32>} : memref<3x16x16xf32, #tpu.memory_space<vmem>>, vector<3x16x16xf32>,
    } else {
    }
    %c4_i32 = arith.constant 4 : i32
    %3 = arith.muli %arg1, %c4_i32 : i32
    %c9_i32 = arith.constant 9 : i32
    %4 = arith.subi %c9_i32, %3 : i32
    %c0_i32_1 = arith.constant 0 : i32
    %c4_i32_2 = arith.constant 4 : i32
    %5 = arith.maxsi %c0_i32_1, %4 : i32
    %6 = arith.minsi %c4_i32_2, %5 : i32
    %cst = arith.constant 0.000000e+00 : f32
    %7 = vector.broadcast %cst : f32 to vector<1x16xf32>
    %c0_i32_3 = arith.constant 0 : i32
    %8 = arith.subi %6, %c0_i32_3 : i32
    %9 = arith.addi %c0_i32_3, %8 : i32
    %c1_i32 = arith.constant 1 : i32
    %10 = scf.for %arg12 = %c0_i32_3 to %9 step %c1_i32 iter_args(%arg13 = %7) -> (vector<1x16xf32>)  : i32 {
      %17 = arith.addi %3, %arg12 : i32
      %c0_9 = arith.constant 0 : index
      %c0_10 = arith.constant 0 : index
      %18 = arith.index_cast %arg12 : i32 to index
      %c0_11 = arith.constant 0 : index
      %c0_12 = arith.constant 0 : index
      %19 = vector.load %arg2[%c0_9, %c0_10, %18, %c0_11, %c0_12] : memref<1x1x4x16x16xf32, #tpu.memory_space<vmem>>, vector<1x1x1x16x16xf32>
      %20 = vector.shape_cast %19 : vector<1x1x1x16x16xf32> to vector<16x16xf32>
      %c0_13 = arith.constant 0 : index
      %c0_14 = arith.constant 0 : index
      %21 = arith.index_cast %arg12 : i32 to index
      %c0_15 = arith.constant 0 : index
      %c0_16 = arith.constant 0 : index
      %22 = vector.load %arg3[%c0_13, %c0_14, %21, %c0_15, %c0_16] : memref<1x1x4x16x16xf32, #tpu.memory_space<vmem>>, vector<1x1x1x16x16xf32>
      %23 = vector.shape_cast %22 : vector<1x1x1x16x16xf32> to vector<16x16xf32>
      %24 = arith.mulf %20, %20 : vector<16x16xf32>
      %25 = arith.mulf %23, %23 : vector<16x16xf32>
      %26 = arith.mulf %20, %23 : vector<16x16xf32>
      %c3_i32 = arith.constant 3 : i32
      %c0_i32_17 = arith.constant 0 : i32
      %27 = arith.cmpi eq, %c3_i32, %c0_i32_17 : i32
      %c1_i32_18 = arith.constant 1 : i32
      %28 = arith.select %27, %c1_i32_18, %c3_i32 : i32
      %29 = arith.remsi %17, %28 : i32
      %c0_i32_19 = arith.constant 0 : i32
      %30 = arith.cmpi ne, %29, %c0_i32_19 : i32
      %c0_i32_20 = arith.constant 0 : i32
      %31 = arith.cmpi slt, %29, %c0_i32_20 : i32
      %c0_i32_21 = arith.constant 0 : i32
      %32 = arith.cmpi slt, %28, %c0_i32_21 : i32
      %33 = arith.xori %31, %32 : i1
      %34 = arith.andi %33, %30 : i1
      %35 = arith.addi %29, %28 : i32
      %36 = arith.select %34, %35, %29 : i32
      %c0_22 = arith.constant 0 : index
      %c0_23 = arith.constant 0 : index
      %37 = vector.load %arg5[%c0_22, %c0_23] : memref<16x16xf32, #tpu.memory_space<vmem>>, vector<16x16xf32>
      %cst_24 = arith.constant dense<0.000000e+00> : vector<16x16xf32>
      %38 = tpu.matmul %20, %37, %cst_24 {dimension_numbers = #tpu.dot_dimension_numbers<[1], [0], [0], [1], [0, 0, 1, 1], [], []>, precision = #tpu.contract_precision<fp32>} : vector<16x16xf32>, vector<16x16xf32>, vector<16x16xf32> -> vector<16x16xf32>
      %c0_25 = arith.constant 0 : index
      %c0_26 = arith.constant 0 : index
      %39 = vector.load %arg4[%c0_25, %c0_26] : memref<16x16xf32, #tpu.memory_space<vmem>>, vector<16x16xf32>
      %cst_27 = arith.constant dense<0.000000e+00> : vector<16x16xf32>
      %40 = tpu.matmul %39, %38, %cst_27 {dimension_numbers = #tpu.dot_dimension_numbers<[1], [0], [0], [1], [0, 0, 1, 1], [], []>, precision = #tpu.contract_precision<fp32>} : vector<16x16xf32>, vector<16x16xf32>, vector<16x16xf32> -> vector<16x16xf32>
      %41 = arith.index_cast %36 : i32 to index
      %c0_28 = arith.constant 0 : index
      %c0_29 = arith.constant 0 : index
      %42 = vector.load %arg7[%41, %c0_28, %c0_29] : memref<3x16x16xf32, #tpu.memory_space<vmem>>, vector<1x16x16xf32>
      %43 = vector.shape_cast %42 : vector<1x16x16xf32> to vector<16x16xf32>
      %44 = vector.shape_cast %40 : vector<16x16xf32> to vector<1x16x16xf32>
      tpu.vector_store %arg7[%41, %c0_28, %c0_29], %44 {strides = array<i32>} : memref<3x16x16xf32, #tpu.memory_space<vmem>>, vector<1x16x16xf32>,
      %c0_30 = arith.constant 0 : index
      %c0_31 = arith.constant 0 : index
      %45 = vector.load %arg5[%c0_30, %c0_31] : memref<16x16xf32, #tpu.memory_space<vmem>>, vector<16x16xf32>
      %cst_32 = arith.constant dense<0.000000e+00> : vector<16x16xf32>
      %46 = tpu.matmul %23, %45, %cst_32 {dimension_numbers = #tpu.dot_dimension_numbers<[1], [0], [0], [1], [0, 0, 1, 1], [], []>, precision = #tpu.contract_precision<fp32>} : vector<16x16xf32>, vector<16x16xf32>, vector<16x16xf32> -> vector<16x16xf32>
      %c0_33 = arith.constant 0 : index
      %c0_34 = arith.constant 0 : index
      %47 = vector.load %arg4[%c0_33, %c0_34] : memref<16x16xf32, #tpu.memory_space<vmem>>, vector<16x16xf32>
      %cst_35 = arith.constant dense<0.000000e+00> : vector<16x16xf32>
      %48 = tpu.matmul %47, %46, %cst_35 {dimension_numbers = #tpu.dot_dimension_numbers<[1], [0], [0], [1], [0, 0, 1, 1], [], []>, precision = #tpu.contract_precision<fp32>} : vector<16x16xf32>, vector<16x16xf32>, vector<16x16xf32> -> vector<16x16xf32>
      %49 = arith.index_cast %36 : i32 to index
      %c0_36 = arith.constant 0 : index
      %c0_37 = arith.constant 0 : index
      %50 = vector.load %arg8[%49, %c0_36, %c0_37] : memref<3x16x16xf32, #tpu.memory_space<vmem>>, vector<1x16x16xf32>
      %51 = vector.shape_cast %50 : vector<1x16x16xf32> to vector<16x16xf32>
      %52 = vector.shape_cast %48 : vector<16x16xf32> to vector<1x16x16xf32>
      tpu.vector_store %arg8[%49, %c0_36, %c0_37], %52 {strides = array<i32>} : memref<3x16x16xf32, #tpu.memory_space<vmem>>, vector<1x16x16xf32>,
      %c0_38 = arith.constant 0 : index
      %c0_39 = arith.constant 0 : index
      %53 = vector.load %arg5[%c0_38, %c0_39] : memref<16x16xf32, #tpu.memory_space<vmem>>, vector<16x16xf32>
      %cst_40 = arith.constant dense<0.000000e+00> : vector<16x16xf32>
      %54 = tpu.matmul %24, %53, %cst_40 {dimension_numbers = #tpu.dot_dimension_numbers<[1], [0], [0], [1], [0, 0, 1, 1], [], []>, precision = #tpu.contract_precision<fp32>} : vector<16x16xf32>, vector<16x16xf32>, vector<16x16xf32> -> vector<16x16xf32>
      %c0_41 = arith.constant 0 : index
      %c0_42 = arith.constant 0 : index
      %55 = vector.load %arg4[%c0_41, %c0_42] : memref<16x16xf32, #tpu.memory_space<vmem>>, vector<16x16xf32>
      %cst_43 = arith.constant dense<0.000000e+00> : vector<16x16xf32>
      %56 = tpu.matmul %55, %54, %cst_43 {dimension_numbers = #tpu.dot_dimension_numbers<[1], [0], [0], [1], [0, 0, 1, 1], [], []>, precision = #tpu.contract_precision<fp32>} : vector<16x16xf32>, vector<16x16xf32>, vector<16x16xf32> -> vector<16x16xf32>
      %57 = arith.index_cast %36 : i32 to index
      %c0_44 = arith.constant 0 : index
      %c0_45 = arith.constant 0 : index
      %58 = vector.load %arg9[%57, %c0_44, %c0_45] : memref<3x16x16xf32, #tpu.memory_space<vmem>>, vector<1x16x16xf32>
      %59 = vector.shape_cast %58 : vector<1x16x16xf32> to vector<16x16xf32>
      %60 = vector.shape_cast %56 : vector<16x16xf32> to vector<1x16x16xf32>
      tpu.vector_store %arg9[%57, %c0_44, %c0_45], %60 {strides = array<i32>} : memref<3x16x16xf32, #tpu.memory_space<vmem>>, vector<1x16x16xf32>,
      %c0_46 = arith.constant 0 : index
      %c0_47 = arith.constant 0 : index
      %61 = vector.load %arg5[%c0_46, %c0_47] : memref<16x16xf32, #tpu.memory_space<vmem>>, vector<16x16xf32>
      %cst_48 = arith.constant dense<0.000000e+00> : vector<16x16xf32>
      %62 = tpu.matmul %25, %61, %cst_48 {dimension_numbers = #tpu.dot_dimension_numbers<[1], [0], [0], [1], [0, 0, 1, 1], [], []>, precision = #tpu.contract_precision<fp32>} : vector<16x16xf32>, vector<16x16xf32>, vector<16x16xf32> -> vector<16x16xf32>
      %c0_49 = arith.constant 0 : index
      %c0_50 = arith.constant 0 : index
      %63 = vector.load %arg4[%c0_49, %c0_50] : memref<16x16xf32, #tpu.memory_space<vmem>>, vector<16x16xf32>
      %cst_51 = arith.constant dense<0.000000e+00> : vector<16x16xf32>
      %64 = tpu.matmul %63, %62, %cst_51 {dimension_numbers = #tpu.dot_dimension_numbers<[1], [0], [0], [1], [0, 0, 1, 1], [], []>, precision = #tpu.contract_precision<fp32>} : vector<16x16xf32>, vector<16x16xf32>, vector<16x16xf32> -> vector<16x16xf32>
      %65 = arith.index_cast %36 : i32 to index
      %c0_52 = arith.constant 0 : index
      %c0_53 = arith.constant 0 : index
      %66 = vector.load %arg10[%65, %c0_52, %c0_53] : memref<3x16x16xf32, #tpu.memory_space<vmem>>, vector<1x16x16xf32>
      %67 = vector.shape_cast %66 : vector<1x16x16xf32> to vector<16x16xf32>
      %68 = vector.shape_cast %64 : vector<16x16xf32> to vector<1x16x16xf32>
      tpu.vector_store %arg10[%65, %c0_52, %c0_53], %68 {strides = array<i32>} : memref<3x16x16xf32, #tpu.memory_space<vmem>>, vector<1x16x16xf32>,
      %c0_54 = arith.constant 0 : index
      %c0_55 = arith.constant 0 : index
      %69 = vector.load %arg5[%c0_54, %c0_55] : memref<16x16xf32, #tpu.memory_space<vmem>>, vector<16x16xf32>
      %cst_56 = arith.constant dense<0.000000e+00> : vector<16x16xf32>
      %70 = tpu.matmul %26, %69, %cst_56 {dimension_numbers = #tpu.dot_dimension_numbers<[1], [0], [0], [1], [0, 0, 1, 1], [], []>, precision = #tpu.contract_precision<fp32>} : vector<16x16xf32>, vector<16x16xf32>, vector<16x16xf32> -> vector<16x16xf32>
      %c0_57 = arith.constant 0 : index
      %c0_58 = arith.constant 0 : index
      %71 = vector.load %arg4[%c0_57, %c0_58] : memref<16x16xf32, #tpu.memory_space<vmem>>, vector<16x16xf32>
      %cst_59 = arith.constant dense<0.000000e+00> : vector<16x16xf32>
      %72 = tpu.matmul %71, %70, %cst_59 {dimension_numbers = #tpu.dot_dimension_numbers<[1], [0], [0], [1], [0, 0, 1, 1], [], []>, precision = #tpu.contract_precision<fp32>} : vector<16x16xf32>, vector<16x16xf32>, vector<16x16xf32> -> vector<16x16xf32>
      %73 = arith.index_cast %36 : i32 to index
      %c0_60 = arith.constant 0 : index
      %c0_61 = arith.constant 0 : index
      %74 = vector.load %arg11[%73, %c0_60, %c0_61] : memref<3x16x16xf32, #tpu.memory_space<vmem>>, vector<1x16x16xf32>
      %75 = vector.shape_cast %74 : vector<1x16x16xf32> to vector<16x16xf32>
      %76 = vector.shape_cast %72 : vector<16x16xf32> to vector<1x16x16xf32>
      tpu.vector_store %arg11[%73, %c0_60, %c0_61], %76 {strides = array<i32>} : memref<3x16x16xf32, #tpu.memory_space<vmem>>, vector<1x16x16xf32>,
      %cst_62 = arith.constant 0.000000e+00 : f32
      %77 = vector.broadcast %cst_62 : f32 to vector<1x16xf32>
      %c0_i32_63 = arith.constant 0 : i32
      %c16_i32 = arith.constant 16 : i32
      %78 = arith.muli %c0_i32_63, %c16_i32 : i32
      %c0_64 = arith.constant 0 : index
      %79 = arith.index_cast %78 : i32 to index
      %c0_65 = arith.constant 0 : index
      %80 = vector.load %arg7[%c0_64, %79, %c0_65] : memref<3x16x16xf32, #tpu.memory_space<vmem>>, vector<1x16x16xf32>
      %81 = vector.shape_cast %80 : vector<1x16x16xf32> to vector<16x16xf32>
      %c1 = arith.constant 1 : index
      %82 = arith.index_cast %78 : i32 to index
      %c0_66 = arith.constant 0 : index
      %83 = vector.load %arg7[%c1, %82, %c0_66] : memref<3x16x16xf32, #tpu.memory_space<vmem>>, vector<1x16x16xf32>
      %84 = vector.shape_cast %83 : vector<1x16x16xf32> to vector<16x16xf32>
      %85 = arith.addf %81, %84 : vector<16x16xf32>
      %c2 = arith.constant 2 : index
      %86 = arith.index_cast %78 : i32 to index
      %c0_67 = arith.constant 0 : index
      %87 = vector.load %arg7[%c2, %86, %c0_67] : memref<3x16x16xf32, #tpu.memory_space<vmem>>, vector<1x16x16xf32>
      %88 = vector.shape_cast %87 : vector<1x16x16xf32> to vector<16x16xf32>
      %89 = arith.addf %85, %88 : vector<16x16xf32>
      %c0_68 = arith.constant 0 : index
      %90 = arith.index_cast %78 : i32 to index
      %c0_69 = arith.constant 0 : index
      %91 = vector.load %arg8[%c0_68, %90, %c0_69] : memref<3x16x16xf32, #tpu.memory_space<vmem>>, vector<1x16x16xf32>
      %92 = vector.shape_cast %91 : vector<1x16x16xf32> to vector<16x16xf32>
      %c1_70 = arith.constant 1 : index
      %93 = arith.index_cast %78 : i32 to index
      %c0_71 = arith.constant 0 : index
      %94 = vector.load %arg8[%c1_70, %93, %c0_71] : memref<3x16x16xf32, #tpu.memory_space<vmem>>, vector<1x16x16xf32>
      %95 = vector.shape_cast %94 : vector<1x16x16xf32> to vector<16x16xf32>
      %96 = arith.addf %92, %95 : vector<16x16xf32>
      %c2_72 = arith.constant 2 : index
      %97 = arith.index_cast %78 : i32 to index
      %c0_73 = arith.constant 0 : index
      %98 = vector.load %arg8[%c2_72, %97, %c0_73] : memref<3x16x16xf32, #tpu.memory_space<vmem>>, vector<1x16x16xf32>
      %99 = vector.shape_cast %98 : vector<1x16x16xf32> to vector<16x16xf32>
      %100 = arith.addf %96, %99 : vector<16x16xf32>
      %c0_74 = arith.constant 0 : index
      %101 = arith.index_cast %78 : i32 to index
      %c0_75 = arith.constant 0 : index
      %102 = vector.load %arg9[%c0_74, %101, %c0_75] : memref<3x16x16xf32, #tpu.memory_space<vmem>>, vector<1x16x16xf32>
      %103 = vector.shape_cast %102 : vector<1x16x16xf32> to vector<16x16xf32>
      %c1_76 = arith.constant 1 : index
      %104 = arith.index_cast %78 : i32 to index
      %c0_77 = arith.constant 0 : index
      %105 = vector.load %arg9[%c1_76, %104, %c0_77] : memref<3x16x16xf32, #tpu.memory_space<vmem>>, vector<1x16x16xf32>
      %106 = vector.shape_cast %105 : vector<1x16x16xf32> to vector<16x16xf32>
      %107 = arith.addf %103, %106 : vector<16x16xf32>
      %c2_78 = arith.constant 2 : index
      %108 = arith.index_cast %78 : i32 to index
      %c0_79 = arith.constant 0 : index
      %109 = vector.load %arg9[%c2_78, %108, %c0_79] : memref<3x16x16xf32, #tpu.memory_space<vmem>>, vector<1x16x16xf32>
      %110 = vector.shape_cast %109 : vector<1x16x16xf32> to vector<16x16xf32>
      %111 = arith.addf %107, %110 : vector<16x16xf32>
      %c0_80 = arith.constant 0 : index
      %112 = arith.index_cast %78 : i32 to index
      %c0_81 = arith.constant 0 : index
      %113 = vector.load %arg10[%c0_80, %112, %c0_81] : memref<3x16x16xf32, #tpu.memory_space<vmem>>, vector<1x16x16xf32>
      %114 = vector.shape_cast %113 : vector<1x16x16xf32> to vector<16x16xf32>
      %c1_82 = arith.constant 1 : index
      %115 = arith.index_cast %78 : i32 to index
      %c0_83 = arith.constant 0 : index
      %116 = vector.load %arg10[%c1_82, %115, %c0_83] : memref<3x16x16xf32, #tpu.memory_space<vmem>>, vector<1x16x16xf32>
      %117 = vector.shape_cast %116 : vector<1x16x16xf32> to vector<16x16xf32>
      %118 = arith.addf %114, %117 : vector<16x16xf32>
      %c2_84 = arith.constant 2 : index
      %119 = arith.index_cast %78 : i32 to index
      %c0_85 = arith.constant 0 : index
      %120 = vector.load %arg10[%c2_84, %119, %c0_85] : memref<3x16x16xf32, #tpu.memory_space<vmem>>, vector<1x16x16xf32>
      %121 = vector.shape_cast %120 : vector<1x16x16xf32> to vector<16x16xf32>
      %122 = arith.addf %118, %121 : vector<16x16xf32>
      %c0_86 = arith.constant 0 : index
      %123 = arith.index_cast %78 : i32 to index
      %c0_87 = arith.constant 0 : index
      %124 = vector.load %arg11[%c0_86, %123, %c0_87] : memref<3x16x16xf32, #tpu.memory_space<vmem>>, vector<1x16x16xf32>
      %125 = vector.shape_cast %124 : vector<1x16x16xf32> to vector<16x16xf32>
      %c1_88 = arith.constant 1 : index
      %126 = arith.index_cast %78 : i32 to index
      %c0_89 = arith.constant 0 : index
      %127 = vector.load %arg11[%c1_88, %126, %c0_89] : memref<3x16x16xf32, #tpu.memory_space<vmem>>, vector<1x16x16xf32>
      %128 = vector.shape_cast %127 : vector<1x16x16xf32> to vector<16x16xf32>
      %129 = arith.addf %125, %128 : vector<16x16xf32>
      %c2_90 = arith.constant 2 : index
      %130 = arith.index_cast %78 : i32 to index
      %c0_91 = arith.constant 0 : index
      %131 = vector.load %arg11[%c2_90, %130, %c0_91] : memref<3x16x16xf32, #tpu.memory_space<vmem>>, vector<1x16x16xf32>
      %132 = vector.shape_cast %131 : vector<1x16x16xf32> to vector<16x16xf32>
      %133 = arith.addf %129, %132 : vector<16x16xf32>
      %134 = arith.mulf %89, %100 : vector<16x16xf32>
      %cst_92 = arith.constant 0.0370370373 : f32
      %135 = vector.broadcast %cst_92 : f32 to vector<16x16xf32>
      %136 = arith.mulf %134, %135 : vector<16x16xf32>
      %137 = arith.subf %133, %136 : vector<16x16xf32>
      %138 = arith.mulf %89, %89 : vector<16x16xf32>
      %cst_93 = arith.constant 0.0370370373 : f32
      %139 = vector.broadcast %cst_93 : f32 to vector<16x16xf32>
      %140 = arith.mulf %138, %139 : vector<16x16xf32>
      %141 = arith.subf %111, %140 : vector<16x16xf32>
      %142 = arith.mulf %100, %100 : vector<16x16xf32>
      %cst_94 = arith.constant 0.0370370373 : f32
      %143 = vector.broadcast %cst_94 : f32 to vector<16x16xf32>
      %144 = arith.mulf %142, %143 : vector<16x16xf32>
      %145 = arith.subf %122, %144 : vector<16x16xf32>
      %146 = arith.mulf %141, %145 : vector<16x16xf32>
      %cst_95 = arith.constant 9.99999993E-9 : f32
      %147 = vector.broadcast %cst_95 : f32 to vector<16x16xf32>
      %148 = arith.addf %146, %147 : vector<16x16xf32>
      %149 = tpu.reciprocal %148 {approx = true} : vector<16x16xf32> -> vector<16x16xf32>
      %150 = arith.mulf %148, %149 : vector<16x16xf32>
      %cst_96 = arith.constant 2.000000e+00 : f32
      %151 = vector.broadcast %cst_96 : f32 to vector<16x16xf32>
      %152 = arith.subf %151, %150 : vector<16x16xf32>
      %153 = arith.mulf %149, %152 : vector<16x16xf32>
      %154 = arith.mulf %137, %137 : vector<16x16xf32>
      %155 = arith.mulf %154, %153 : vector<16x16xf32>
      %cst_97 = arith.constant dense<0.000000e+00> : vector<16xf32>
      %156 = vector.multi_reduction <add>, %155, %cst_97 [0] : vector<16x16xf32> to vector<16xf32>
      %157 = vector.shape_cast %156 : vector<16xf32> to vector<1x16xf32>
      %158 = arith.addf %77, %157 : vector<1x16xf32>
      %c1_i32_98 = arith.constant 1 : i32
      %c1_i32_99 = arith.constant 1 : i32
      %159 = arith.cmpi sge, %17, %c1_i32_99 : i32
      %cst_100 = arith.constant 0.000000e+00 : f32
      %160 = vector.broadcast %cst_100 : f32 to vector<1x16xf32>
      %161 = arith.select %159, %158, %160 : vector<1x16xf32>
      %162 = arith.addf %arg13, %161 : vector<1x16xf32>
      scf.yield %162 : vector<1x16xf32>
    }
    %c0 = arith.constant 0 : index
    %c0_4 = arith.constant 0 : index
    %c0_5 = arith.constant 0 : index
    %c0_6 = arith.constant 0 : index
    %11 = vector.load %arg6[%c0, %c0_4, %c0_5, %c0_6] : memref<1x1x1x16xf32, #tpu.memory_space<vmem>>, vector<1x1x1x16xf32>
    %12 = vector.shape_cast %11 : vector<1x1x1x16xf32> to vector<1x16xf32>
    %13 = vector.shape_cast %10 : vector<1x16xf32> to vector<1x1x1x16xf32>
    tpu.vector_store %arg6[%c0, %c0_4, %c0_5, %c0_6], %13 {strides = array<i32>} : memref<1x1x1x16xf32, #tpu.memory_space<vmem>>, vector<1x1x1x16xf32>,
    %c1_i32_7 = arith.constant 1 : i32
    %14 = arith.cmpi eq, %arg1, %c1_i32_7 : i32
    %15 = arith.extui %14 : i1 to i32
    %c0_i32_8 = arith.constant 0 : i32
    %16 = arith.cmpi ne, %15, %c0_i32_8 : i32
    scf.if %16 {
      %cst_9 = arith.constant 0.000000e+00 : f32
      %17 = vector.broadcast %cst_9 : f32 to vector<16x16xf32>
      %c2 = arith.constant 2 : index
      %c0_10 = arith.constant 0 : index
      %c0_11 = arith.constant 0 : index
      %18 = vector.load %arg7[%c2, %c0_10, %c0_11] : memref<3x16x16xf32, #tpu.memory_space<vmem>>, vector<1x16x16xf32>
      %19 = vector.shape_cast %18 : vector<1x16x16xf32> to vector<16x16xf32>
      %20 = vector.shape_cast %17 : vector<16x16xf32> to vector<1x16x16xf32>
      tpu.vector_store %arg7[%c2, %c0_10, %c0_11], %20 {strides = array<i32>} : memref<3x16x16xf32, #tpu.memory_space<vmem>>, vector<1x16x16xf32>,
      %cst_12 = arith.constant 0.000000e+00 : f32
      %21 = vector.broadcast %cst_12 : f32 to vector<16x16xf32>
      %c2_13 = arith.constant 2 : index
      %c0_14 = arith.constant 0 : index
      %c0_15 = arith.constant 0 : index
      %22 = vector.load %arg8[%c2_13, %c0_14, %c0_15] : memref<3x16x16xf32, #tpu.memory_space<vmem>>, vector<1x16x16xf32>
      %23 = vector.shape_cast %22 : vector<1x16x16xf32> to vector<16x16xf32>
      %24 = vector.shape_cast %21 : vector<16x16xf32> to vector<1x16x16xf32>
      tpu.vector_store %arg8[%c2_13, %c0_14, %c0_15], %24 {strides = array<i32>} : memref<3x16x16xf32, #tpu.memory_space<vmem>>, vector<1x16x16xf32>,
      %cst_16 = arith.constant 0.000000e+00 : f32
      %25 = vector.broadcast %cst_16 : f32 to vector<16x16xf32>
      %c2_17 = arith.constant 2 : index
      %c0_18 = arith.constant 0 : index
      %c0_19 = arith.constant 0 : index
      %26 = vector.load %arg9[%c2_17, %c0_18, %c0_19] : memref<3x16x16xf32, #tpu.memory_space<vmem>>, vector<1x16x16xf32>
      %27 = vector.shape_cast %26 : vector<1x16x16xf32> to vector<16x16xf32>
      %28 = vector.shape_cast %25 : vector<16x16xf32> to vector<1x16x16xf32>
      tpu.vector_store %arg9[%c2_17, %c0_18, %c0_19], %28 {strides = array<i32>} : memref<3x16x16xf32, #tpu.memory_space<vmem>>, vector<1x16x16xf32>,
      %cst_20 = arith.constant 0.000000e+00 : f32
      %29 = vector.broadcast %cst_20 : f32 to vector<16x16xf32>
      %c2_21 = arith.constant 2 : index
      %c0_22 = arith.constant 0 : index
      %c0_23 = arith.constant 0 : index
      %30 = vector.load %arg10[%c2_21, %c0_22, %c0_23] : memref<3x16x16xf32, #tpu.memory_space<vmem>>, vector<1x16x16xf32>
      %31 = vector.shape_cast %30 : vector<1x16x16xf32> to vector<16x16xf32>
      %32 = vector.shape_cast %29 : vector<16x16xf32> to vector<1x16x16xf32>
      tpu.vector_store %arg10[%c2_21, %c0_22, %c0_23], %32 {strides = array<i32>} : memref<3x16x16xf32, #tpu.memory_space<vmem>>, vector<1x16x16xf32>,
      %cst_24 = arith.constant 0.000000e+00 : f32
      %33 = vector.broadcast %cst_24 : f32 to vector<16x16xf32>
      %c2_25 = arith.constant 2 : index
      %c0_26 = arith.constant 0 : index
      %c0_27 = arith.constant 0 : index
      %34 = vector.load %arg11[%c2_25, %c0_26, %c0_27] : memref<3x16x16xf32, #tpu.memory_space<vmem>>, vector<1x16x16xf32>
      %35 = vector.shape_cast %34 : vector<1x16x16xf32> to vector<16x16xf32>
      %36 = vector.shape_cast %33 : vector<16x16xf32> to vector<1x16x16xf32>
      tpu.vector_store %arg11[%c2_25, %c0_26, %c0_27], %36 {strides = array<i32>} : memref<3x16x16xf32, #tpu.memory_space<vmem>>, vector<1x16x16xf32>,
      %cst_28 = arith.constant 0.000000e+00 : f32
      %37 = vector.broadcast %cst_28 : f32 to vector<1x16xf32>
      %c0_i32_29 = arith.constant 0 : i32
      %c16_i32 = arith.constant 16 : i32
      %38 = arith.muli %c0_i32_29, %c16_i32 : i32
      %c0_30 = arith.constant 0 : index
      %39 = arith.index_cast %38 : i32 to index
      %c0_31 = arith.constant 0 : index
      %40 = vector.load %arg7[%c0_30, %39, %c0_31] : memref<3x16x16xf32, #tpu.memory_space<vmem>>, vector<1x16x16xf32>
      %41 = vector.shape_cast %40 : vector<1x16x16xf32> to vector<16x16xf32>
      %c1 = arith.constant 1 : index
      %42 = arith.index_cast %38 : i32 to index
      %c0_32 = arith.constant 0 : index
      %43 = vector.load %arg7[%c1, %42, %c0_32] : memref<3x16x16xf32, #tpu.memory_space<vmem>>, vector<1x16x16xf32>
      %44 = vector.shape_cast %43 : vector<1x16x16xf32> to vector<16x16xf32>
      %45 = arith.addf %41, %44 : vector<16x16xf32>
      %c2_33 = arith.constant 2 : index
      %46 = arith.index_cast %38 : i32 to index
      %c0_34 = arith.constant 0 : index
      %47 = vector.load %arg7[%c2_33, %46, %c0_34] : memref<3x16x16xf32, #tpu.memory_space<vmem>>, vector<1x16x16xf32>
      %48 = vector.shape_cast %47 : vector<1x16x16xf32> to vector<16x16xf32>
      %49 = arith.addf %45, %48 : vector<16x16xf32>
      %c0_35 = arith.constant 0 : index
      %50 = arith.index_cast %38 : i32 to index
      %c0_36 = arith.constant 0 : index
      %51 = vector.load %arg8[%c0_35, %50, %c0_36] : memref<3x16x16xf32, #tpu.memory_space<vmem>>, vector<1x16x16xf32>
      %52 = vector.shape_cast %51 : vector<1x16x16xf32> to vector<16x16xf32>
      %c1_37 = arith.constant 1 : index
      %53 = arith.index_cast %38 : i32 to index
      %c0_38 = arith.constant 0 : index
      %54 = vector.load %arg8[%c1_37, %53, %c0_38] : memref<3x16x16xf32, #tpu.memory_space<vmem>>, vector<1x16x16xf32>
      %55 = vector.shape_cast %54 : vector<1x16x16xf32> to vector<16x16xf32>
      %56 = arith.addf %52, %55 : vector<16x16xf32>
      %c2_39 = arith.constant 2 : index
      %57 = arith.index_cast %38 : i32 to index
      %c0_40 = arith.constant 0 : index
      %58 = vector.load %arg8[%c2_39, %57, %c0_40] : memref<3x16x16xf32, #tpu.memory_space<vmem>>, vector<1x16x16xf32>
      %59 = vector.shape_cast %58 : vector<1x16x16xf32> to vector<16x16xf32>
      %60 = arith.addf %56, %59 : vector<16x16xf32>
      %c0_41 = arith.constant 0 : index
      %61 = arith.index_cast %38 : i32 to index
      %c0_42 = arith.constant 0 : index
      %62 = vector.load %arg9[%c0_41, %61, %c0_42] : memref<3x16x16xf32, #tpu.memory_space<vmem>>, vector<1x16x16xf32>
      %63 = vector.shape_cast %62 : vector<1x16x16xf32> to vector<16x16xf32>
      %c1_43 = arith.constant 1 : index
      %64 = arith.index_cast %38 : i32 to index
      %c0_44 = arith.constant 0 : index
      %65 = vector.load %arg9[%c1_43, %64, %c0_44] : memref<3x16x16xf32, #tpu.memory_space<vmem>>, vector<1x16x16xf32>
      %66 = vector.shape_cast %65 : vector<1x16x16xf32> to vector<16x16xf32>
      %67 = arith.addf %63, %66 : vector<16x16xf32>
      %c2_45 = arith.constant 2 : index
      %68 = arith.index_cast %38 : i32 to index
      %c0_46 = arith.constant 0 : index
      %69 = vector.load %arg9[%c2_45, %68, %c0_46] : memref<3x16x16xf32, #tpu.memory_space<vmem>>, vector<1x16x16xf32>
      %70 = vector.shape_cast %69 : vector<1x16x16xf32> to vector<16x16xf32>
      %71 = arith.addf %67, %70 : vector<16x16xf32>
      %c0_47 = arith.constant 0 : index
      %72 = arith.index_cast %38 : i32 to index
      %c0_48 = arith.constant 0 : index
      %73 = vector.load %arg10[%c0_47, %72, %c0_48] : memref<3x16x16xf32, #tpu.memory_space<vmem>>, vector<1x16x16xf32>
      %74 = vector.shape_cast %73 : vector<1x16x16xf32> to vector<16x16xf32>
      %c1_49 = arith.constant 1 : index
      %75 = arith.index_cast %38 : i32 to index
      %c0_50 = arith.constant 0 : index
      %76 = vector.load %arg10[%c1_49, %75, %c0_50] : memref<3x16x16xf32, #tpu.memory_space<vmem>>, vector<1x16x16xf32>
      %77 = vector.shape_cast %76 : vector<1x16x16xf32> to vector<16x16xf32>
      %78 = arith.addf %74, %77 : vector<16x16xf32>
      %c2_51 = arith.constant 2 : index
      %79 = arith.index_cast %38 : i32 to index
      %c0_52 = arith.constant 0 : index
      %80 = vector.load %arg10[%c2_51, %79, %c0_52] : memref<3x16x16xf32, #tpu.memory_space<vmem>>, vector<1x16x16xf32>
      %81 = vector.shape_cast %80 : vector<1x16x16xf32> to vector<16x16xf32>
      %82 = arith.addf %78, %81 : vector<16x16xf32>
      %c0_53 = arith.constant 0 : index
      %83 = arith.index_cast %38 : i32 to index
      %c0_54 = arith.constant 0 : index
      %84 = vector.load %arg11[%c0_53, %83, %c0_54] : memref<3x16x16xf32, #tpu.memory_space<vmem>>, vector<1x16x16xf32>
      %85 = vector.shape_cast %84 : vector<1x16x16xf32> to vector<16x16xf32>
      %c1_55 = arith.constant 1 : index
      %86 = arith.index_cast %38 : i32 to index
      %c0_56 = arith.constant 0 : index
      %87 = vector.load %arg11[%c1_55, %86, %c0_56] : memref<3x16x16xf32, #tpu.memory_space<vmem>>, vector<1x16x16xf32>
      %88 = vector.shape_cast %87 : vector<1x16x16xf32> to vector<16x16xf32>
      %89 = arith.addf %85, %88 : vector<16x16xf32>
      %c2_57 = arith.constant 2 : index
      %90 = arith.index_cast %38 : i32 to index
      %c0_58 = arith.constant 0 : index
      %91 = vector.load %arg11[%c2_57, %90, %c0_58] : memref<3x16x16xf32, #tpu.memory_space<vmem>>, vector<1x16x16xf32>
      %92 = vector.shape_cast %91 : vector<1x16x16xf32> to vector<16x16xf32>
      %93 = arith.addf %89, %92 : vector<16x16xf32>
      %94 = arith.mulf %49, %60 : vector<16x16xf32>
      %cst_59 = arith.constant 0.0370370373 : f32
      %95 = vector.broadcast %cst_59 : f32 to vector<16x16xf32>
      %96 = arith.mulf %94, %95 : vector<16x16xf32>
      %97 = arith.subf %93, %96 : vector<16x16xf32>
      %98 = arith.mulf %49, %49 : vector<16x16xf32>
      %cst_60 = arith.constant 0.0370370373 : f32
      %99 = vector.broadcast %cst_60 : f32 to vector<16x16xf32>
      %100 = arith.mulf %98, %99 : vector<16x16xf32>
      %101 = arith.subf %71, %100 : vector<16x16xf32>
      %102 = arith.mulf %60, %60 : vector<16x16xf32>
      %cst_61 = arith.constant 0.0370370373 : f32
      %103 = vector.broadcast %cst_61 : f32 to vector<16x16xf32>
      %104 = arith.mulf %102, %103 : vector<16x16xf32>
      %105 = arith.subf %82, %104 : vector<16x16xf32>
      %106 = arith.mulf %101, %105 : vector<16x16xf32>
      %cst_62 = arith.constant 9.99999993E-9 : f32
      %107 = vector.broadcast %cst_62 : f32 to vector<16x16xf32>
      %108 = arith.addf %106, %107 : vector<16x16xf32>
      %109 = tpu.reciprocal %108 {approx = true} : vector<16x16xf32> -> vector<16x16xf32>
      %110 = arith.mulf %108, %109 : vector<16x16xf32>
      %cst_63 = arith.constant 2.000000e+00 : f32
      %111 = vector.broadcast %cst_63 : f32 to vector<16x16xf32>
      %112 = arith.subf %111, %110 : vector<16x16xf32>
      %113 = arith.mulf %109, %112 : vector<16x16xf32>
      %114 = arith.mulf %97, %97 : vector<16x16xf32>
      %115 = arith.mulf %114, %113 : vector<16x16xf32>
      %cst_64 = arith.constant dense<0.000000e+00> : vector<16xf32>
      %116 = vector.multi_reduction <add>, %115, %cst_64 [0] : vector<16x16xf32> to vector<16xf32>
      %117 = vector.shape_cast %116 : vector<16xf32> to vector<1x16xf32>
      %118 = arith.addf %37, %117 : vector<1x16xf32>
      %c1_i32_65 = arith.constant 1 : i32
      %119 = arith.addf %10, %118 : vector<1x16xf32>
      %c0_66 = arith.constant 0 : index
      %c0_67 = arith.constant 0 : index
      %c0_68 = arith.constant 0 : index
      %c0_69 = arith.constant 0 : index
      %120 = vector.load %arg6[%c0_66, %c0_67, %c0_68, %c0_69] : memref<1x1x1x16xf32, #tpu.memory_space<vmem>>, vector<1x1x1x16xf32>
      %121 = vector.shape_cast %120 : vector<1x1x1x16xf32> to vector<1x16xf32>
      %122 = vector.shape_cast %119 : vector<1x16xf32> to vector<1x1x1x16xf32>
      tpu.vector_store %arg6[%c0_66, %c0_67, %c0_68, %c0_69], %122 {strides = array<i32>} : memref<1x1x1x16xf32, #tpu.memory_space<vmem>>, vector<1x1x1x16xf32>,
    } else {
    }
    return
  }
  func.func @transform_0(%arg0: i32, %arg1: i32) -> (i32, i32, i32, i32, i32) {
    %c0_i32 = arith.constant 0 : i32
    %c0_i32_0 = arith.constant 0 : i32
    %c0_i32_1 = arith.constant 0 : i32
    %c0_i32_2 = arith.constant 0 : i32
    return %arg0, %c0_i32, %arg1, %c0_i32_0, %c0_i32_1 : i32, i32, i32, i32, i32
  }
  func.func @transform_1(%arg0: i32, %arg1: i32) -> (i32, i32, i32, i32, i32) {
    %c0_i32 = arith.constant 0 : i32
    %c0_i32_0 = arith.constant 0 : i32
    %c0_i32_1 = arith.constant 0 : i32
    %c0_i32_2 = arith.constant 0 : i32
    return %arg0, %c0_i32, %arg1, %c0_i32_0, %c0_i32_1 : i32, i32, i32, i32, i32
  }
  func.func @transform_2(%arg0: i32, %arg1: i32) -> (i32, i32) {
    %c0_i32 = arith.constant 0 : i32
    %c0_i32_0 = arith.constant 0 : i32
    %c0_i32_1 = arith.constant 0 : i32
    return %c0_i32, %c0_i32_0 : i32, i32
  }
  func.func @transform_3(%arg0: i32, %arg1: i32) -> (i32, i32) {
    %c0_i32 = arith.constant 0 : i32
    %c0_i32_0 = arith.constant 0 : i32
    %c0_i32_1 = arith.constant 0 : i32
    return %c0_i32, %c0_i32_0 : i32, i32
  }
  func.func @transform_4(%arg0: i32, %arg1: i32) -> (i32, i32, i32, i32) {
    %c0_i32 = arith.constant 0 : i32
    %c0_i32_0 = arith.constant 0 : i32
    %c0_i32_1 = arith.constant 0 : i32
    return %arg0, %arg1, %c0_i32, %c0_i32_0 : i32, i32, i32, i32
  }
}

</mosaic_0001>

<llo_original>
// kernel: _lambda_.1
$region0: #{_lambda_.1}
  #allocation0 [shape = 'u32[]', space=smem, size = 0x4, offset = 0x4, fixed_abs, tag = 'smem constant byte address 0x4 - core index']
  #allocation1 [shape = 'u32[144,128]{1,0:T(1,128)}', space=vmem, size = 0x12000, scoped, tag = 'internal scratch']
  #allocation2 [shape = 'f32[3,16,16]{2,1,0:T(8,128)}', space=vmem, size = 0x6000, scoped, tag = 'scratch operand']
  #allocation3 [shape = 'f32[3,16,16]{2,1,0:T(8,128)}', space=vmem, size = 0x6000, scoped, tag = 'scratch operand']
  #allocation4 [shape = 'f32[3,16,16]{2,1,0:T(8,128)}', space=vmem, size = 0x6000, scoped, tag = 'scratch operand']
  #allocation5 [shape = 'f32[3,16,16]{2,1,0:T(8,128)}', space=vmem, size = 0x6000, scoped, tag = 'scratch operand']
  #allocation6 [shape = 'f32[3,16,16]{2,1,0:T(8,128)}', space=vmem, size = 0x6000, scoped, tag = 'scratch operand']
  %s0 = inlined_call_operand.hbm [shape: f32[2,1,8,16,16], index: 0, kind: input, shape index: {}]
  %s1 = inlined_call_operand.hbm [shape: f32[2,1,8,16,16], index: 1, kind: input, shape index: {}]
  %s2 = inlined_call_operand.hbm [shape: f32[16,16], index: 2, kind: input, shape index: {}, may-alias: {2,3}]
  %s3 = inlined_call_operand.hbm [shape: f32[16,16], index: 3, kind: input, shape index: {}, may-alias: {2,3}]
  %s4 = inlined_call_operand.vmem [shape: f32[2,2,1,16], index: 4, kind: output, shape index: {}]
  %s5 = sld [smem:[#allocation0]]
  $region80: #{_lambda_.1} parent=0
    _
  %s7 = ssub.s32 1, %s5
  %s8 = scalar_select 0, %s7, %s5
  $region1: #{_lambda_.1} parent=0
    #allocation7 [shape = 'u8[65536]{0}', space=vmem, size = 0x10000, scoped, tag = 'input window, operand 0']
    #allocation8 [shape = 's32[2]{0}', space=sflag, size = 0x8, scoped, tag = 'scoped memory for _lambda_.1']
    #allocation9 [shape = 'u8[65536]{0}', space=vmem, size = 0x10000, scoped, tag = 'input window, operand 1']
    #allocation10 [shape = 's32[2]{0}', space=sflag, size = 0x8, scoped, tag = 'scoped memory for _lambda_.1']
    #allocation11 [shape = 'u8[8192]{0}', space=vmem, size = 0x2000, scoped, tag = 'input window, operand 2, single buffered']
    #allocation12 [shape = 'u8[8192]{0}', space=vmem, size = 0x2000, scoped, tag = 'input window, operand 3, single buffered']
    #allocation13 [shape = 's32[1]{0}', space=sflag, size = 0x4, scoped, tag = 'scoped memory for _lambda_.1']
    %9 = vsyncpa [#allocation8], 0
    %s10 = scalar_lea.sflag [#allocation8], 1
    %11 = vsyncpa %s10, 0
    %12 = vsyncpa [#allocation10], 0
    %s13 = scalar_lea.sflag [#allocation10], 1
    %14 = vsyncpa %s13, 0
    %15 = vsyncpa [#allocation13], 0
    loop: start=0, step=1, limit=6
    $region2: #{_lambda_.1} parent=1 // loop_pre_header
      _
    $region3: #{_lambda_.1} parent=1 // loop_header
      %s17 = sphi 0, %s21
      %p18 = scmp.ge.s32.totalorder %s17, 6
      %s24 = sphi 0, %s36
      %s25 = sphi 0, %s32
      %s26 = sphi 0, %s24
      %s27 = sphi 0, %s25
      %s28 = sphi 0, %s26
      %s29 = sphi 0, %s27
      %s41 = sphi 0, %s43
      %s44 = sphi 0, %s41
      %s45 = sphi 0, %s44
      %s61 = sphi 0, %s45
      %s69 = sphi 0, %s71
      %s72 = sphi 0, %s69
      %s73 = sphi 0, %s72
      %s89 = sphi 0, %s73
      %s93 = sphi 0, %s93
      %s95 = sphi 0, %s93
      %s96 = sphi 0, %s95
      %s110 = sphi 0, %s96
      %s114 = sphi 0, %s114
      %s116 = sphi 0, %s114
      %s117 = sphi 0, %s116
      %s131 = sphi 0, %s117
      %s139 = sphi 0, %s141
      %s142 = sphi 0, %s139
      %s143 = sphi 0, %s142
      %s159 = sphi 0, %s143
    $region4: #{_lambda_.1} parent=1 // loop_header_branch
      %20 = sbr.rel (%p18) target = $region8
    $region5: #{_lambda_.1} parent=1 // loop_body
      %s22 = ssub.s32 %s17, 1
      %s23 = ssub.s32 %s17, 2
      %s30 = sadd.s32 1, %s25
      %p31 = scmp.ge.s32.totalorder %s30, 2
      %s32 = scalar_select %p31, 0, %s30
      %s33 = sadd.s32 1, %s24
      %s34 = scalar_select %p31, %s33, %s24
      %p35 = scmp.ge.s32.totalorder %s34, 2
      %s36 = scalar_select %p35, 0, %s34
      %s37 = ssub.s32 %s24, %s36
      %s38 = ssub.s32 %s25, %s32
      %s39 = sor.u32 %s37, %s38
      %p40 = scmp.eq.s32.totalorder %s39, 0
      %s42 = sadd.s32 %s41, 1
      %s43 = scalar_select %p40, %s41, %s42
      %p46 = pneg %p40
      %p47 = scmp.eq.s32.totalorder %s17, 3
      %p48 = por %p46, %p47
      %p49 = scmp.ne.s32.totalorder %s41, %s44
      %p50 = scmp.eq.s32.totalorder %s17, 0
      %p51 = por %p49, %p50
      %p52 = scmp.ne.s32.totalorder %s41, %s44
      %p53 = scmp.eq.s32.totalorder %s22, 3
      %p54 = por %p52, %p53
      %p55 = scmp.ne.s32.totalorder %s44, %s45
      %p56 = scmp.eq.s32.totalorder %s22, 0
      %p57 = por %p55, %p56
      %p58 = scmp.ne.s32.totalorder %s44, %s45
      %p59 = scmp.eq.s32.totalorder %s23, 3
      %p60 = por %p58, %p59
      %p62 = scmp.ne.s32.totalorder %s45, %s61
      %p63 = scmp.eq.s32.totalorder %s23, 0
      %p64 = por %p62, %p63
      %s65 = ssub.s32 %s24, %s36
      %s66 = ssub.s32 %s25, %s32
      %s67 = sor.u32 %s65, %s66
      %p68 = scmp.eq.s32.totalorder %s67, 0
      %s70 = sadd.s32 %s69, 1
      %s71 = scalar_select %p68, %s69, %s70
      %p74 = pneg %p68
      %p75 = scmp.eq.s32.totalorder %s17, 3
      %p76 = por %p74, %p75
      %p77 = scmp.ne.s32.totalorder %s69, %s72
      %p78 = scmp.eq.s32.totalorder %s17, 0
      %p79 = por %p77, %p78
      %p80 = scmp.ne.s32.totalorder %s69, %s72
      %p81 = scmp.eq.s32.totalorder %s22, 3
      %p82 = por %p80, %p81
      %p83 = scmp.ne.s32.totalorder %s72, %s73
      %p84 = scmp.eq.s32.totalorder %s22, 0
      %p85 = por %p83, %p84
      %p86 = scmp.ne.s32.totalorder %s72, %s73
      %p87 = scmp.eq.s32.totalorder %s23, 3
      %p88 = por %p86, %p87
      %p90 = scmp.ne.s32.totalorder %s73, %s89
      %p91 = scmp.eq.s32.totalorder %s23, 0
      %p92 = por %p90, %p91
      %s94 = sadd.s32 %s93, 1
      %p97 = scmp.eq.s32.totalorder %s17, 3
      %p98 = scmp.ne.s32.totalorder %s93, %s95
      %p99 = scmp.eq.s32.totalorder %s17, 0
      %p100 = por %p98, %p99
      %p101 = scmp.ne.s32.totalorder %s93, %s95
      %p102 = scmp.eq.s32.totalorder %s22, 3
      %p103 = por %p101, %p102
      %p104 = scmp.ne.s32.totalorder %s95, %s96
      %p105 = scmp.eq.s32.totalorder %s22, 0
      %p106 = por %p104, %p105
      %p107 = scmp.ne.s32.totalorder %s95, %s96
      %p108 = scmp.eq.s32.totalorder %s23, 3
      %p109 = por %p107, %p108
      %p111 = scmp.ne.s32.totalorder %s96, %s110
      %p112 = scmp.eq.s32.totalorder %s23, 0
      %p113 = por %p111, %p112
      %s115 = sadd.s32 %s114, 1
      %p118 = scmp.eq.s32.totalorder %s17, 3
      %p119 = scmp.ne.s32.totalorder %s114, %s116
      %p120 = scmp.eq.s32.totalorder %s17, 0
      %p121 = por %p119, %p120
      %p122 = scmp.ne.s32.totalorder %s114, %s116
      %p123 = scmp.eq.s32.totalorder %s22, 3
      %p124 = por %p122, %p123
      %p125 = scmp.ne.s32.totalorder %s116, %s117
      %p126 = scmp.eq.s32.totalorder %s22, 0
      %p127 = por %p125, %p126
      %p128 = scmp.ne.s32.totalorder %s116, %s117
      %p129 = scmp.eq.s32.totalorder %s23, 3
      %p130 = por %p128, %p129
      %p132 = scmp.ne.s32.totalorder %s117, %s131
      %p133 = scmp.eq.s32.totalorder %s23, 0
      %p134 = por %p132, %p133
      %s135 = ssub.s32 %s24, %s36
      %s136 = ssub.s32 %s25, %s32
      %s137 = sor.u32 %s135, %s136
      %p138 = scmp.eq.s32.totalorder %s137, 0
      %s140 = sadd.s32 %s139, 1
      %s141 = scalar_select %p138, %s139, %s140
      %p144 = pneg %p138
      %p145 = scmp.eq.s32.totalorder %s17, 3
      %p146 = por %p144, %p145
      %p147 = scmp.ne.s32.totalorder %s139, %s142
      %p148 = scmp.eq.s32.totalorder %s17, 0
      %p149 = por %p147, %p148
      %p150 = scmp.ne.s32.totalorder %s139, %s142
      %p151 = scmp.eq.s32.totalorder %s22, 3
      %p152 = por %p150, %p151
      %p153 = scmp.ne.s32.totalorder %s142, %s143
      %p154 = scmp.eq.s32.totalorder %s22, 0
      %p155 = por %p153, %p154
      %p156 = scmp.ne.s32.totalorder %s142, %s143
      %p157 = scmp.eq.s32.totalorder %s23, 3
      %p158 = por %p156, %p157
      %p160 = scmp.ne.s32.totalorder %s143, %s159
      %p161 = scmp.eq.s32.totalorder %s23, 0
      %p162 = por %p160, %p161
      %p163 = scmp.le.s32.totalorder 1, %s17
      %p164 = scmp.lt.s32.totalorder %s17, 5
      %p165 = pnand %p163, %p164
      %p166 = pneg %p165
      // Predicated region
      $region9: #{_lambda_.1} parent=5 // pred_check
        _
      $region10: #{_lambda_.1} parent=5 // pred_check_branch
        %168 = sbr.rel (%p165) target = $region12
      $region11: #{_lambda_.1} parent=5 // pred_region
        %s169 = ssub.s32 %s17, 1
        // Predicated region
        $region13: #{_lambda_.1} parent=11 // pred_check
          %p170 = pneg %p106
        $region14: #{_lambda_.1} parent=11 // pred_check_branch
          %172 = sbr.rel (%p170) target = $region16
        $region15: #{_lambda_.1} parent=11 // pred_region
          %s174 = ssub.s32 256, 256
          %175 = vsyncadd [#allocation10], %s174
          %s176 = sshll.u32 [#allocation11], 4
          %s177 = int_to_ptr.vmem [resolvable:$true] %s176
          %182 = dma.hbm_to_vmem [thread:$0]  %s2, 256, %s177, [#allocation10], 128, 128, 8
        $region16: #{_lambda_.1} parent=11 // pred_fallthru
          _
        // Predicated region
        $region17: #{_lambda_.1} parent=11 // pred_check
          %p183 = pneg %p127
        $region18: #{_lambda_.1} parent=11 // pred_check_branch
          %185 = sbr.rel (%p183) target = $region20
        $region19: #{_lambda_.1} parent=11 // pred_region
          %s187 = ssub.s32 256, 256
          %188 = vsyncadd [#allocation13], %s187
          %s189 = sshll.u32 [#allocation12], 4
          %s190 = int_to_ptr.vmem [resolvable:$true] %s189
          %195 = dma.hbm_to_vmem [thread:$0]  %s3, 256, %s190, [#allocation13], 128, 128, 8
        $region20: #{_lambda_.1} parent=11 // pred_fallthru
          _
      $region12: #{_lambda_.1} parent=5 // pred_fallthru
        _
      %p196 = scmp.lt.s32.totalorder %s17, 4
      // Predicated region
      $region21: #{_lambda_.1} parent=5 // pred_check
        %p197 = pneg %p196
      $region22: #{_lambda_.1} parent=5 // pred_check_branch
        %199 = sbr.rel (%p197) target = $region24
      $region23: #{_lambda_.1} parent=5 // pred_region
        // Predicated region
        $region25: #{_lambda_.1} parent=23 // pred_check
          %p200 = pneg %p51
        $region26: #{_lambda_.1} parent=23 // pred_check_branch
          %202 = sbr.rel (%p200) target = $region28
        $region27: #{_lambda_.1} parent=23 // pred_region
          %s203 = sand.u32 %s41, 1
          %s204 = scalar_lea.sflag [#allocation8], %s203
          %s205 = sand.u32 %s41, 1
          %s206 = smul.addr %s205, 64
          %s207 = scalar_lea.vmem [#allocation7], %s206
          %s208 = smul.u32 4, %s25
          %s210 = ssub.s32 1024, 1024
          %211 = vsyncadd %s204, %s210
          %s212 = smul.addr %s208, 2
          %s213 = smul.addr %s24, 16
          %s214 = sadd.s32 %s212, %s213
          %s215 = smul.addr %s214, 128
          %s216 = scalar_lea.hbm %s0, %s215
          %s217 = sshll.u32 %s207, 4
          %s218 = int_to_ptr.vmem [resolvable:$true] %s217
          %223 = dma.hbm_to_vmem [thread:$0]  %s216, 1024, %s218, %s204, 128, 128, 8
        $region28: #{_lambda_.1} parent=23 // pred_fallthru
          _
        // Predicated region
        $region29: #{_lambda_.1} parent=23 // pred_check
          %p224 = pneg %p79
        $region30: #{_lambda_.1} parent=23 // pred_check_branch
          %226 = sbr.rel (%p224) target = $region32
        $region31: #{_lambda_.1} parent=23 // pred_region
          %s227 = sand.u32 %s17, 1
          %s228 = scalar_lea.sflag [#allocation10], %s227
          %s229 = sand.u32 %s69, 1
          %s230 = smul.addr %s229, 64
          %s231 = scalar_lea.vmem [#allocation9], %s230
          %s232 = smul.u32 4, %s25
          %s234 = ssub.s32 1024, 1024
          %235 = vsyncadd %s228, %s234
          %s236 = smul.addr %s232, 2
          %s237 = smul.addr %s24, 16
          %s238 = sadd.s32 %s236, %s237
          %s239 = smul.addr %s238, 128
          %s240 = scalar_lea.hbm %s1, %s239
          %s241 = sshll.u32 %s231, 4
          %s242 = int_to_ptr.vmem [resolvable:$true] %s241
          %247 = dma.hbm_to_vmem [thread:$0]  %s240, 1024, %s242, %s228, 128, 128, 8
        $region32: #{_lambda_.1} parent=23 // pred_fallthru
          _
      $region24: #{_lambda_.1} parent=5 // pred_fallthru
        _
      %p248 = scmp.le.s32.totalorder 1, %s17
      %p249 = scmp.lt.s32.totalorder %s17, 5
      %p250 = pnand %p248, %p249
      %p251 = pneg %p250
      // Predicated region
      $region33: #{_lambda_.1} parent=5 // pred_check
        _
      $region34: #{_lambda_.1} parent=5 // pred_check_branch
        %253 = sbr.rel (%p250) target = $region36
      $region35: #{_lambda_.1} parent=5 // pred_region
        %s254 = ssub.s32 %s17, 1
        %s255 = sand.u32 %s44, 1
        %s256 = scalar_lea.sflag [#allocation8], %s255
        %s257 = sand.u32 %s44, 1
        %s258 = smul.addr %s257, 64
        %s259 = scalar_lea.vmem [#allocation7], %s258
        // Predicated region
        $region37: #{_lambda_.1} parent=35 // pred_check
          %p260 = pneg %p57
        $region38: #{_lambda_.1} parent=35 // pred_check_branch
          %262 = sbr.rel (%p260) target = $region40
        $region39: #{_lambda_.1} parent=35 // pred_region
          %263 = dma.done %s256, 1024
        $region40: #{_lambda_.1} parent=35 // pred_fallthru
          _
        %s264 = sand.u32 %s22, 1
        %s265 = scalar_lea.sflag [#allocation10], %s264
        %s266 = sand.u32 %s72, 1
        %s267 = smul.addr %s266, 64
        %s268 = scalar_lea.vmem [#allocation9], %s267
        // Predicated region
        $region41: #{_lambda_.1} parent=35 // pred_check
          %p269 = pneg %p85
        $region42: #{_lambda_.1} parent=35 // pred_check_branch
          %271 = sbr.rel (%p269) target = $region44
        $region43: #{_lambda_.1} parent=35 // pred_region
          %272 = dma.done %s265, 1024
        $region44: #{_lambda_.1} parent=35 // pred_fallthru
          _
        // Predicated region
        $region45: #{_lambda_.1} parent=35 // pred_check
          %p273 = pneg %p106
        $region46: #{_lambda_.1} parent=35 // pred_check_branch
          %275 = sbr.rel (%p273) target = $region48
        $region47: #{_lambda_.1} parent=35 // pred_region
          %276 = dma.done [#allocation10], 256
        $region48: #{_lambda_.1} parent=35 // pred_fallthru
          _
        // Predicated region
        $region49: #{_lambda_.1} parent=35 // pred_check
          %p277 = pneg %p127
        $region50: #{_lambda_.1} parent=35 // pred_check_branch
          %279 = sbr.rel (%p277) target = $region52
        $region51: #{_lambda_.1} parent=35 // pred_region
          %280 = dma.done [#allocation13], 256
        $region52: #{_lambda_.1} parent=35 // pred_fallthru
          _
        %s281 = sand.u32 %s44, 1
        %s282 = scalar_lea.sflag [#allocation8], %s281
        %s283 = sand.u32 %s44, 1
        %s284 = smul.addr %s283, 64
        %s285 = scalar_lea.vmem [#allocation7], %s284
        %p286 = pneg %p57
        %p287 = pneg %p54
        %s288 = sand.u32 %s22, 1
        %s289 = scalar_lea.sflag [#allocation10], %s288
        %s290 = sand.u32 %s72, 1
        %s291 = smul.addr %s290, 64
        %s292 = scalar_lea.vmem [#allocation9], %s291
        %p293 = pneg %p85
        %p294 = pneg %p82
        %p295 = pneg %p106
        %p296 = pneg %p103
        %p297 = pneg %p127
        %p298 = pneg %p124
        %p299 = pneg %p155
        %p300 = pneg %p152
        %p301 = scmp.lt.s32.totalorder %s26, 1
        %s302 = scalar_select %p301, %s26, 1
        %p303 = scmp.lt.s32.totalorder %s27, 1
        %s304 = scalar_select %p303, %s27, 1
        %s305 = smul.addr %s302, 2
        %s306 = sadd.s32 %s304, %s305
        %s307 = scalar_lea.vmem %s4, %s306
        %s308 = smul.u32 4, %s27
        %s309 = smul.u32 4, %s27
        %p310 = scmp.lt.s32.totalorder %s26, 1
        %s311 = scalar_select %p310, %s26, 1
        %p312 = scmp.lt.s32.totalorder %s27, 1
        %s313 = scalar_select %p312, %s27, 1
        %s314 = smul.addr %s311, 2
        %s315 = sadd.s32 %s313, %s314
        %s316 = scalar_lea.vmem %s4, %s315
        %p317 = scmp.eq.s32.totalorder %s27, 0
        // Predicated region
        $region53: #{_lambda_.1} parent=35 // pred_check
          %p318 = pneg %p317
        $region54: #{_lambda_.1} parent=35 // pred_check_branch
          %320 = sbr.rel (%p318) target = $region56
        $region55: #{_lambda_.1} parent=35 // pred_region
          %vm321 = vcmask 130048
          %322 = vst.msk [vmem:[#allocation2] sm:$0xff] %vm321, 0.0
          %323 = vst.msk [vmem:[#allocation2 + $0x8] sm:$0xff] %vm321, 0.0
          %324 = vst.msk [vmem:[#allocation2 + $0x10] sm:$0xff] %vm321, 0.0
          %325 = vst.msk [vmem:[#allocation2 + $0x18] sm:$0xff] %vm321, 0.0
          %326 = vst.msk [vmem:[#allocation2 + $0x20] sm:$0xff] %vm321, 0.0
          %327 = vst.msk [vmem:[#allocation2 + $0x28] sm:$0xff] %vm321, 0.0
          %328 = vst.msk [vmem:[#allocation3] sm:$0xff] %vm321, 0.0
          %329 = vst.msk [vmem:[#allocation3 + $0x8] sm:$0xff] %vm321, 0.0
          %330 = vst.msk [vmem:[#allocation3 + $0x10] sm:$0xff] %vm321, 0.0
          %331 = vst.msk [vmem:[#allocation3 + $0x18] sm:$0xff] %vm321, 0.0
          %332 = vst.msk [vmem:[#allocation3 + $0x20] sm:$0xff] %vm321, 0.0
          %333 = vst.msk [vmem:[#allocation3 + $0x28] sm:$0xff] %vm321, 0.0
          %334 = vst.msk [vmem:[#allocation4] sm:$0xff] %vm321, 0.0
          %335 = vst.msk [vmem:[#allocation4 + $0x8] sm:$0xff] %vm321, 0.0
          %336 = vst.msk [vmem:[#allocation4 + $0x10] sm:$0xff] %vm321, 0.0
          %337 = vst.msk [vmem:[#allocation4 + $0x18] sm:$0xff] %vm321, 0.0
          %338 = vst.msk [vmem:[#allocation4 + $0x20] sm:$0xff] %vm321, 0.0
          %339 = vst.msk [vmem:[#allocation4 + $0x28] sm:$0xff] %vm321, 0.0
          %340 = vst.msk [vmem:[#allocation5] sm:$0xff] %vm321, 0.0
          %341 = vst.msk [vmem:[#allocation5 + $0x8] sm:$0xff] %vm321, 0.0
          %342 = vst.msk [vmem:[#allocation5 + $0x10] sm:$0xff] %vm321, 0.0
          %343 = vst.msk [vmem:[#allocation5 + $0x18] sm:$0xff] %vm321, 0.0
          %344 = vst.msk [vmem:[#allocation5 + $0x20] sm:$0xff] %vm321, 0.0
          %345 = vst.msk [vmem:[#allocation5 + $0x28] sm:$0xff] %vm321, 0.0
          %346 = vst.msk [vmem:[#allocation6] sm:$0xff] %vm321, 0.0
          %347 = vst.msk [vmem:[#allocation6 + $0x8] sm:$0xff] %vm321, 0.0
          %348 = vst.msk [vmem:[#allocation6 + $0x10] sm:$0xff] %vm321, 0.0
          %349 = vst.msk [vmem:[#allocation6 + $0x18] sm:$0xff] %vm321, 0.0
          %350 = vst.msk [vmem:[#allocation6 + $0x20] sm:$0xff] %vm321, 0.0
          %351 = vst.msk [vmem:[#allocation6 + $0x28] sm:$0xff] %vm321, 0.0
        $region56: #{_lambda_.1} parent=35 // pred_fallthru
          _
        %s352 = smul.u32 %s27, 4
        %s353 = ssub.s32 9, %s352
        %p354 = scmp.gt.s32.totalorder %s353, 0
        %s355 = scalar_select %p354, %s353, 0
        %p356 = scmp.lt.s32.totalorder %s355, 4
        %s357 = scalar_select %p356, %s355, 4
        // While loop
        $region57: #{_lambda_.1} parent=35 // loop_pre_header
          _
        $region58: #{_lambda_.1} parent=35 // loop_header
          %s359 = sphi 0, %s361
          %p360 = scmp.ge.s32.totalorder %s359, %s357
          %v364 = vphi 0.0, %v5618
        $region59: #{_lambda_.1} parent=35 // loop_header_branch
          %363 = sbr.rel (%p360) target = $region63
        $region60: #{_lambda_.1} parent=35 // loop_body
          %s365 = sadd.s32 %s352, %s359
          %s366 = smul.u32 %s359, 16
          %s367 = scalar_lea.vmem %s259, %s366 [#allocation7]
          %v368 = vld [vmem:[%s367] sm:$0xff]
          %v369 = vld [vmem:[%s367 + $0x8] sm:$0xff]
          %s370 = scalar_lea.vmem %s268, %s366 [#allocation9]
          %v371 = vld [vmem:[%s370] sm:$0xff]
          %v372 = vld [vmem:[%s370 + $0x8] sm:$0xff]
          %v373 = vmul.f32 %v368, %v368
          %v374 = vmul.f32 %v369, %v369
          %v375 = vmul.f32 %v371, %v371
          %v376 = vmul.f32 %v372, %v372
          %v377 = vmul.f32 %v368, %v371
          %v378 = vmul.f32 %v369, %v372
          %p379 = scmp.lt.s32.totalorder %s365, 0
          %s380 = ssub.s32 0, %s365
          %s381 = scalar_select %p379, %s380, %s365
          %s382 = sdiv.u32.pop %s381, 3
          %s383 = srem.u32.pop %s381, 3
          %s384 = ssub.s32 0, %s383
          %s385 = scalar_select %p379, %s384, %s383
          %p386 = scmp.ne.s32.totalorder %s385, 0
          %p387 = scmp.lt.s32.totalorder %s385, 0
          %p388 = pnand %p387, %p386
          %p389 = pneg %p388
          %s390 = sadd.s32 %s385, 3
          %s391 = scalar_select %p389, %s390, %s385
          %v392 = vld [vmem:[#allocation12] sm:$0xff]
          %v393 = vld [vmem:[#allocation12 + $0x8] sm:$0xff]
          %vm394 = vcmask 130048
          %v396 = vsel %vm394, %v368, 0
          %v399 = vsel %vm394, %v369, 0
          %401 = vmatprep.subr.mxu0 0.0
          %402 = vmatpush1.msra.mxu0 0.0
          %403 = vmatprep.subr.mxu0 0.0
          %404 = vmatpush1.msra.mxu0 0.0
          %405 = vmatprep.subr.mxu0 0.0
          %406 = vmatpush1.msra.mxu0 0.0
          %407 = vmatprep.subr.mxu0 0.0
          %408 = vmatpush1.msra.mxu0 0.0
          %409 = vmatprep.subr.mxu0 0.0
          %410 = vmatpush1.msra.mxu0 0.0
          %411 = vmatprep.subr.mxu0 0.0
          %412 = vmatpush1.msra.mxu0 0.0
          %413 = vmatprep.subr.mxu0 0.0
          %414 = vmatpush1.msra.mxu0 0.0
          %415 = vmatprep.subr.mxu0 0.0
          %416 = vmatpush1.msra.mxu0 0.0
          %417 = vmatprep.subr.mxu0 0.0
          %418 = vmatpush1.msra.mxu0 0.0
          %419 = vmatprep.subr.mxu0 0.0
          %420 = vmatpush1.msra.mxu0 0.0
          %421 = vmatprep.subr.mxu0 0.0
          %422 = vmatpush1.msra.mxu0 0.0
          %423 = vmatprep.subr.mxu0 0.0
          %424 = vmatpush1.msra.mxu0 0.0
          %425 = vmatprep.subr.mxu0 0.0
          %426 = vmatpush1.msra.mxu0 0.0
          %427 = vmatprep.subr.mxu0 0.0
          %428 = vmatpush1.msra.mxu0 0.0
          %429 = vmatprep.subr.mxu0 0.0
          %v430 = vand.u32 %v393, 4294901760
          %431 = vmatpush1.msra.mxu0 %v430
          %432 = vmatprep.subr.mxu0 0.0
          %v433 = vand.u32 %v392, 4294901760
          %434 = vmatpush1.msra.mxu0 %v433
          %435 = vmatprep.subr.mxu0 0.0
          %436 = vmatpush2.msra.mxu0 0.0
          %437 = vmatprep.subr.mxu0 0.0
          %438 = vmatpush2.msra.mxu0 0.0
          %439 = vmatprep.subr.mxu0 0.0
          %440 = vmatpush2.msra.mxu0 0.0
          %441 = vmatprep.subr.mxu0 0.0
          %442 = vmatpush2.msra.mxu0 0.0
          %443 = vmatprep.subr.mxu0 0.0
          %444 = vmatpush2.msra.mxu0 0.0
          %445 = vmatprep.subr.mxu0 0.0
          %446 = vmatpush2.msra.mxu0 0.0
          %447 = vmatprep.subr.mxu0 0.0
          %448 = vmatpush2.msra.mxu0 0.0
          %449 = vmatprep.subr.mxu0 0.0
          %450 = vmatpush2.msra.mxu0 0.0
          %451 = vmatprep.subr.mxu0 0.0
          %452 = vmatpush2.msra.mxu0 0.0
          %453 = vmatprep.subr.mxu0 0.0
          %454 = vmatpush2.msra.mxu0 0.0
          %455 = vmatprep.subr.mxu0 0.0
          %456 = vmatpush2.msra.mxu0 0.0
          %457 = vmatprep.subr.mxu0 0.0
          %458 = vmatpush2.msra.mxu0 0.0
          %459 = vmatprep.subr.mxu0 0.0
          %460 = vmatpush2.msra.mxu0 0.0
          %461 = vmatprep.subr.mxu0 0.0
          %462 = vmatpush2.msra.mxu0 0.0
          %463 = vmatprep.subr.mxu0 0.0
          %464 = vmatpush2.msra.mxu0 0.0
          %465 = vmatprep.subr.mxu0 0.0
          %466 = vmatpush2.msra.mxu0 0.0
          %467 = vmatprep.mubr.f32.mxu0 0.0
          %v468 = vand.u32 %v396, 4294901760
          %v469 = vsub.f32 %v396, %v468
          %v470 = vand.u32 %v469, 4294901760
          %v471 = vsub.f32 %v469, %v470
          %v472 = vand.u32 %v471, 4294901760
          %473 = vmatmul.mubr.f32.gmra.mxu0 %v472
          %v474 = vpop.f32.mrf.mxu0
          %v475 = vadd.f32 0.0, %v474
          %v476 = vpop.f32.mrf.mxu0
          %477 = vmatprep.mubr.f32.mxu0 0.0
          %v478 = vand.u32 %v399, 4294901760
          %v479 = vsub.f32 %v399, %v478
          %v480 = vand.u32 %v479, 4294901760
          %v481 = vsub.f32 %v479, %v480
          %v482 = vand.u32 %v481, 4294901760
          %483 = vmatmul.mubr.f32.gmra.mxu0 %v482
          %v484 = vpop.f32.mrf.mxu0
          %v485 = vadd.f32 0.0, %v484
          %v486 = vpop.f32.mrf.mxu0
          %487 = vdwg.mxu0
          %488 = vmatprep.subr.mxu0 0.0
          %489 = vmatpush1.msra.mxu0 0.0
          %490 = vmatprep.subr.mxu0 0.0
          %491 = vmatpush1.msra.mxu0 0.0
          %492 = vmatprep.subr.mxu0 0.0
          %493 = vmatpush1.msra.mxu0 0.0
          %494 = vmatprep.subr.mxu0 0.0
          %495 = vmatpush1.msra.mxu0 0.0
          %496 = vmatprep.subr.mxu0 0.0
          %497 = vmatpush1.msra.mxu0 0.0
          %498 = vmatprep.subr.mxu0 0.0
          %499 = vmatpush1.msra.mxu0 0.0
          %500 = vmatprep.subr.mxu0 0.0
          %501 = vmatpush1.msra.mxu0 0.0
          %502 = vmatprep.subr.mxu0 0.0
          %503 = vmatpush1.msra.mxu0 0.0
          %504 = vmatprep.subr.mxu0 0.0
          %505 = vmatpush1.msra.mxu0 0.0
          %506 = vmatprep.subr.mxu0 0.0
          %507 = vmatpush1.msra.mxu0 0.0
          %508 = vmatprep.subr.mxu0 0.0
          %509 = vmatpush1.msra.mxu0 0.0
          %510 = vmatprep.subr.mxu0 0.0
          %511 = vmatpush1.msra.mxu0 0.0
          %512 = vmatprep.subr.mxu0 0.0
          %513 = vmatpush1.msra.mxu0 0.0
          %514 = vmatprep.subr.mxu0 0.0
          %515 = vmatpush1.msra.mxu0 0.0
          %516 = vmatprep.subr.mxu0 0.0
          %v517 = vand.u32 %v393, 4294901760
          %v518 = vsub.f32 %v393, %v517
          %v519 = vand.u32 %v518, 4294901760
          %v520 = vsub.f32 %v518, %v519
          %v521 = vand.u32 %v520, 4294901760
          %522 = vmatpush1.msra.mxu0 %v521
          %523 = vmatprep.subr.mxu0 0.0
          %v524 = vand.u32 %v392, 4294901760
          %v525 = vsub.f32 %v392, %v524
          %v526 = vand.u32 %v525, 4294901760
          %v527 = vsub.f32 %v525, %v526
          %v528 = vand.u32 %v527, 4294901760
          %529 = vmatpush1.msra.mxu0 %v528
          %530 = vmatprep.subr.mxu0 0.0
          %531 = vmatpush2.msra.mxu0 0.0
          %532 = vmatprep.subr.mxu0 0.0
          %533 = vmatpush2.msra.mxu0 0.0
          %534 = vmatprep.subr.mxu0 0.0
          %535 = vmatpush2.msra.mxu0 0.0
          %536 = vmatprep.subr.mxu0 0.0
          %537 = vmatpush2.msra.mxu0 0.0
          %538 = vmatprep.subr.mxu0 0.0
          %539 = vmatpush2.msra.mxu0 0.0
          %540 = vmatprep.subr.mxu0 0.0
          %541 = vmatpush2.msra.mxu0 0.0
          %542 = vmatprep.subr.mxu0 0.0
          %543 = vmatpush2.msra.mxu0 0.0
          %544 = vmatprep.subr.mxu0 0.0
          %545 = vmatpush2.msra.mxu0 0.0
          %546 = vmatprep.subr.mxu0 0.0
          %547 = vmatpush2.msra.mxu0 0.0
          %548 = vmatprep.subr.mxu0 0.0
          %549 = vmatpush2.msra.mxu0 0.0
          %550 = vmatprep.subr.mxu0 0.0
          %551 = vmatpush2.msra.mxu0 0.0
          %552 = vmatprep.subr.mxu0 0.0
          %553 = vmatpush2.msra.mxu0 0.0
          %554 = vmatprep.subr.mxu0 0.0
          %555 = vmatpush2.msra.mxu0 0.0
          %556 = vmatprep.subr.mxu0 0.0
          %557 = vmatpush2.msra.mxu0 0.0
          %558 = vmatprep.subr.mxu0 0.0
          %559 = vmatpush2.msra.mxu0 0.0
          %560 = vmatprep.subr.mxu0 0.0
          %561 = vmatpush2.msra.mxu0 0.0
          %562 = vmatprep.mubr.f32.mxu0 0.0
          %v563 = vand.u32 %v396, 4294901760
          %564 = vmatmul.mubr.f32.gmra.mxu0 %v563
          %v565 = vpop.f32.mrf.mxu0
          %v566 = vadd.f32 %v475, %v565
          %v567 = vpop.f32.mrf.mxu0
          %568 = vmatprep.mubr.f32.mxu0 0.0
          %v569 = vand.u32 %v399, 4294901760
          %570 = vmatmul.mubr.f32.gmra.mxu0 %v569
          %v571 = vpop.f32.mrf.mxu0
          %v572 = vadd.f32 %v485, %v571
          %v573 = vpop.f32.mrf.mxu0
          %574 = vdwg.mxu0
          %575 = vmatprep.subr.mxu0 0.0
          %576 = vmatpush1.msra.mxu0 0.0
          %577 = vmatprep.subr.mxu0 0.0
          %578 = vmatpush1.msra.mxu0 0.0
          %579 = vmatprep.subr.mxu0 0.0
          %580 = vmatpush1.msra.mxu0 0.0
          %581 = vmatprep.subr.mxu0 0.0
          %582 = vmatpush1.msra.mxu0 0.0
          %583 = vmatprep.subr.mxu0 0.0
          %584 = vmatpush1.msra.mxu0 0.0
          %585 = vmatprep.subr.mxu0 0.0
          %586 = vmatpush1.msra.mxu0 0.0
          %587 = vmatprep.subr.mxu0 0.0
          %588 = vmatpush1.msra.mxu0 0.0
          %589 = vmatprep.subr.mxu0 0.0
          %590 = vmatpush1.msra.mxu0 0.0
          %591 = vmatprep.subr.mxu0 0.0
          %592 = vmatpush1.msra.mxu0 0.0
          %593 = vmatprep.subr.mxu0 0.0
          %594 = vmatpush1.msra.mxu0 0.0
          %595 = vmatprep.subr.mxu0 0.0
          %596 = vmatpush1.msra.mxu0 0.0
          %597 = vmatprep.subr.mxu0 0.0
          %598 = vmatpush1.msra.mxu0 0.0
          %599 = vmatprep.subr.mxu0 0.0
          %600 = vmatpush1.msra.mxu0 0.0
          %601 = vmatprep.subr.mxu0 0.0
          %602 = vmatpush1.msra.mxu0 0.0
          %603 = vmatprep.subr.mxu0 0.0
          %v604 = vand.u32 %v393, 4294901760
          %v605 = vsub.f32 %v393, %v604
          %606 = vmatpush1.msra.mxu0 %v605
          %607 = vmatprep.subr.mxu0 0.0
          %v608 = vand.u32 %v392, 4294901760
          %v609 = vsub.f32 %v392, %v608
          %610 = vmatpush1.msra.mxu0 %v609
          %611 = vmatprep.subr.mxu0 0.0
          %612 = vmatpush2.msra.mxu0 0.0
          %613 = vmatprep.subr.mxu0 0.0
          %614 = vmatpush2.msra.mxu0 0.0
          %615 = vmatprep.subr.mxu0 0.0
          %616 = vmatpush2.msra.mxu0 0.0
          %617 = vmatprep.subr.mxu0 0.0
          %618 = vmatpush2.msra.mxu0 0.0
          %619 = vmatprep.subr.mxu0 0.0
          %620 = vmatpush2.msra.mxu0 0.0
          %621 = vmatprep.subr.mxu0 0.0
          %622 = vmatpush2.msra.mxu0 0.0
          %623 = vmatprep.subr.mxu0 0.0
          %624 = vmatpush2.msra.mxu0 0.0
          %625 = vmatprep.subr.mxu0 0.0
          %626 = vmatpush2.msra.mxu0 0.0
          %627 = vmatprep.subr.mxu0 0.0
          %628 = vmatpush2.msra.mxu0 0.0
          %629 = vmatprep.subr.mxu0 0.0
          %630 = vmatpush2.msra.mxu0 0.0
          %631 = vmatprep.subr.mxu0 0.0
          %632 = vmatpush2.msra.mxu0 0.0
          %633 = vmatprep.subr.mxu0 0.0
          %634 = vmatpush2.msra.mxu0 0.0
          %635 = vmatprep.subr.mxu0 0.0
          %636 = vmatpush2.msra.mxu0 0.0
          %637 = vmatprep.subr.mxu0 0.0
          %638 = vmatpush2.msra.mxu0 0.0
          %639 = vmatprep.subr.mxu0 0.0
          %640 = vmatpush2.msra.mxu0 0.0
          %641 = vmatprep.subr.mxu0 0.0
          %642 = vmatpush2.msra.mxu0 0.0
          %643 = vmatprep.mubr.f32.mxu0 0.0
          %v644 = vand.u32 %v396, 4294901760
          %v645 = vsub.f32 %v396, %v644
          %646 = vmatmul.mubr.f32.gmra.mxu0 %v645
          %v647 = vpop.f32.mrf.mxu0
          %v648 = vadd.f32 %v566, %v647
          %v649 = vpop.f32.mrf.mxu0
          %650 = vmatprep.mubr.f32.mxu0 0.0
          %v651 = vand.u32 %v399, 4294901760
          %v652 = vsub.f32 %v399, %v651
          %653 = vmatmul.mubr.f32.gmra.mxu0 %v652
          %v654 = vpop.f32.mrf.mxu0
          %v655 = vadd.f32 %v572, %v654
          %v656 = vpop.f32.mrf.mxu0
          %657 = vdwg.mxu0
          %658 = vmatprep.subr.mxu0 0.0
          %659 = vmatpush1.msra.mxu0 0.0
          %660 = vmatprep.subr.mxu0 0.0
          %661 = vmatpush1.msra.mxu0 0.0
          %662 = vmatprep.subr.mxu0 0.0
          %663 = vmatpush1.msra.mxu0 0.0
          %664 = vmatprep.subr.mxu0 0.0
          %665 = vmatpush1.msra.mxu0 0.0
          %666 = vmatprep.subr.mxu0 0.0
          %667 = vmatpush1.msra.mxu0 0.0
          %668 = vmatprep.subr.mxu0 0.0
          %669 = vmatpush1.msra.mxu0 0.0
          %670 = vmatprep.subr.mxu0 0.0
          %671 = vmatpush1.msra.mxu0 0.0
          %672 = vmatprep.subr.mxu0 0.0
          %673 = vmatpush1.msra.mxu0 0.0
          %674 = vmatprep.subr.mxu0 0.0
          %675 = vmatpush1.msra.mxu0 0.0
          %676 = vmatprep.subr.mxu0 0.0
          %677 = vmatpush1.msra.mxu0 0.0
          %678 = vmatprep.subr.mxu0 0.0
          %679 = vmatpush1.msra.mxu0 0.0
          %680 = vmatprep.subr.mxu0 0.0
          %681 = vmatpush1.msra.mxu0 0.0
          %682 = vmatprep.subr.mxu0 0.0
          %683 = vmatpush1.msra.mxu0 0.0
          %684 = vmatprep.subr.mxu0 0.0
          %685 = vmatpush1.msra.mxu0 0.0
          %686 = vmatprep.subr.mxu0 0.0
          %v687 = vand.u32 %v393, 4294901760
          %688 = vmatpush1.msra.mxu0 %v687
          %689 = vmatprep.subr.mxu0 0.0
          %v690 = vand.u32 %v392, 4294901760
          %691 = vmatpush1.msra.mxu0 %v690
          %692 = vmatprep.subr.mxu0 0.0
          %693 = vmatpush2.msra.mxu0 0.0
          %694 = vmatprep.subr.mxu0 0.0
          %695 = vmatpush2.msra.mxu0 0.0
          %696 = vmatprep.subr.mxu0 0.0
          %697 = vmatpush2.msra.mxu0 0.0
          %698 = vmatprep.subr.mxu0 0.0
          %699 = vmatpush2.msra.mxu0 0.0
          %700 = vmatprep.subr.mxu0 0.0
          %701 = vmatpush2.msra.mxu0 0.0
          %702 = vmatprep.subr.mxu0 0.0
          %703 = vmatpush2.msra.mxu0 0.0
          %704 = vmatprep.subr.mxu0 0.0
          %705 = vmatpush2.msra.mxu0 0.0
          %706 = vmatprep.subr.mxu0 0.0
          %707 = vmatpush2.msra.mxu0 0.0
          %708 = vmatprep.subr.mxu0 0.0
          %709 = vmatpush2.msra.mxu0 0.0
          %710 = vmatprep.subr.mxu0 0.0
          %711 = vmatpush2.msra.mxu0 0.0
          %712 = vmatprep.subr.mxu0 0.0
          %713 = vmatpush2.msra.mxu0 0.0
          %714 = vmatprep.subr.mxu0 0.0
          %715 = vmatpush2.msra.mxu0 0.0
          %716 = vmatprep.subr.mxu0 0.0
          %717 = vmatpush2.msra.mxu0 0.0
          %718 = vmatprep.subr.mxu0 0.0
          %719 = vmatpush2.msra.mxu0 0.0
          %720 = vmatprep.subr.mxu0 0.0
          %721 = vmatpush2.msra.mxu0 0.0
          %722 = vmatprep.subr.mxu0 0.0
          %723 = vmatpush2.msra.mxu0 0.0
          %724 = vmatprep.mubr.f32.mxu0 0.0
          %v725 = vand.u32 %v396, 4294901760
          %v726 = vsub.f32 %v396, %v725
          %v727 = vand.u32 %v726, 4294901760
          %728 = vmatmul.mubr.f32.gmra.mxu0 %v727
          %v729 = vpop.f32.mrf.mxu0
          %v730 = vadd.f32 %v648, %v729
          %v731 = vpop.f32.mrf.mxu0
          %732 = vmatprep.mubr.f32.mxu0 0.0
          %v733 = vand.u32 %v399, 4294901760
          %v734 = vsub.f32 %v399, %v733
          %v735 = vand.u32 %v734, 4294901760
          %736 = vmatmul.mubr.f32.gmra.mxu0 %v735
          %v737 = vpop.f32.mrf.mxu0
          %v738 = vadd.f32 %v655, %v737
          %v739 = vpop.f32.mrf.mxu0
          %740 = vdwg.mxu0
          %741 = vmatprep.subr.mxu0 0.0
          %742 = vmatpush1.msra.mxu0 0.0
          %743 = vmatprep.subr.mxu0 0.0
          %744 = vmatpush1.msra.mxu0 0.0
          %745 = vmatprep.subr.mxu0 0.0
          %746 = vmatpush1.msra.mxu0 0.0
          %747 = vmatprep.subr.mxu0 0.0
          %748 = vmatpush1.msra.mxu0 0.0
          %749 = vmatprep.subr.mxu0 0.0
          %750 = vmatpush1.msra.mxu0 0.0
          %751 = vmatprep.subr.mxu0 0.0
          %752 = vmatpush1.msra.mxu0 0.0
          %753 = vmatprep.subr.mxu0 0.0
          %754 = vmatpush1.msra.mxu0 0.0
          %755 = vmatprep.subr.mxu0 0.0
          %756 = vmatpush1.msra.mxu0 0.0
          %757 = vmatprep.subr.mxu0 0.0
          %758 = vmatpush1.msra.mxu0 0.0
          %759 = vmatprep.subr.mxu0 0.0
          %760 = vmatpush1.msra.mxu0 0.0
          %761 = vmatprep.subr.mxu0 0.0
          %762 = vmatpush1.msra.mxu0 0.0
          %763 = vmatprep.subr.mxu0 0.0
          %764 = vmatpush1.msra.mxu0 0.0
          %765 = vmatprep.subr.mxu0 0.0
          %766 = vmatpush1.msra.mxu0 0.0
          %767 = vmatprep.subr.mxu0 0.0
          %768 = vmatpush1.msra.mxu0 0.0
          %769 = vmatprep.subr.mxu0 0.0
          %v770 = vand.u32 %v393, 4294901760
          %v771 = vsub.f32 %v393, %v770
          %v772 = vand.u32 %v771, 4294901760
          %773 = vmatpush1.msra.mxu0 %v772
          %774 = vmatprep.subr.mxu0 0.0
          %v775 = vand.u32 %v392, 4294901760
          %v776 = vsub.f32 %v392, %v775
          %v777 = vand.u32 %v776, 4294901760
          %778 = vmatpush1.msra.mxu0 %v777
          %779 = vmatprep.subr.mxu0 0.0
          %780 = vmatpush2.msra.mxu0 0.0
          %781 = vmatprep.subr.mxu0 0.0
          %782 = vmatpush2.msra.mxu0 0.0
          %783 = vmatprep.subr.mxu0 0.0
          %784 = vmatpush2.msra.mxu0 0.0
          %785 = vmatprep.subr.mxu0 0.0
          %786 = vmatpush2.msra.mxu0 0.0
          %787 = vmatprep.subr.mxu0 0.0
          %788 = vmatpush2.msra.mxu0 0.0
          %789 = vmatprep.subr.mxu0 0.0
          %790 = vmatpush2.msra.mxu0 0.0
          %791 = vmatprep.subr.mxu0 0.0
          %792 = vmatpush2.msra.mxu0 0.0
          %793 = vmatprep.subr.mxu0 0.0
          %794 = vmatpush2.msra.mxu0 0.0
          %795 = vmatprep.subr.mxu0 0.0
          %796 = vmatpush2.msra.mxu0 0.0
          %797 = vmatprep.subr.mxu0 0.0
          %798 = vmatpush2.msra.mxu0 0.0
          %799 = vmatprep.subr.mxu0 0.0
          %800 = vmatpush2.msra.mxu0 0.0
          %801 = vmatprep.subr.mxu0 0.0
          %802 = vmatpush2.msra.mxu0 0.0
          %803 = vmatprep.subr.mxu0 0.0
          %804 = vmatpush2.msra.mxu0 0.0
          %805 = vmatprep.subr.mxu0 0.0
          %806 = vmatpush2.msra.mxu0 0.0
          %807 = vmatprep.subr.mxu0 0.0
          %808 = vmatpush2.msra.mxu0 0.0
          %809 = vmatprep.subr.mxu0 0.0
          %810 = vmatpush2.msra.mxu0 0.0
          %811 = vmatprep.mubr.f32.mxu0 0.0
          %v812 = vand.u32 %v396, 4294901760
          %813 = vmatmul.mubr.f32.gmra.mxu0 %v812
          %v814 = vpop.f32.mrf.mxu0
          %v815 = vadd.f32 %v730, %v814
          %v816 = vpop.f32.mrf.mxu0
          %817 = vmatprep.mubr.f32.mxu0 0.0
          %v818 = vand.u32 %v399, 4294901760
          %819 = vmatmul.mubr.f32.gmra.mxu0 %v818
          %v820 = vpop.f32.mrf.mxu0
          %v821 = vadd.f32 %v738, %v820
          %v822 = vpop.f32.mrf.mxu0
          %823 = vdwg.mxu0
          %824 = vmatprep.subr.mxu0 0.0
          %825 = vmatpush1.msra.mxu0 0.0
          %826 = vmatprep.subr.mxu0 0.0
          %827 = vmatpush1.msra.mxu0 0.0
          %828 = vmatprep.subr.mxu0 0.0
          %829 = vmatpush1.msra.mxu0 0.0
          %830 = vmatprep.subr.mxu0 0.0
          %831 = vmatpush1.msra.mxu0 0.0
          %832 = vmatprep.subr.mxu0 0.0
          %833 = vmatpush1.msra.mxu0 0.0
          %834 = vmatprep.subr.mxu0 0.0
          %835 = vmatpush1.msra.mxu0 0.0
          %836 = vmatprep.subr.mxu0 0.0
          %837 = vmatpush1.msra.mxu0 0.0
          %838 = vmatprep.subr.mxu0 0.0
          %839 = vmatpush1.msra.mxu0 0.0
          %840 = vmatprep.subr.mxu0 0.0
          %841 = vmatpush1.msra.mxu0 0.0
          %842 = vmatprep.subr.mxu0 0.0
          %843 = vmatpush1.msra.mxu0 0.0
          %844 = vmatprep.subr.mxu0 0.0
          %845 = vmatpush1.msra.mxu0 0.0
          %846 = vmatprep.subr.mxu0 0.0
          %847 = vmatpush1.msra.mxu0 0.0
          %848 = vmatprep.subr.mxu0 0.0
          %849 = vmatpush1.msra.mxu0 0.0
          %850 = vmatprep.subr.mxu0 0.0
          %851 = vmatpush1.msra.mxu0 0.0
          %852 = vmatprep.subr.mxu0 0.0
          %v853 = vand.u32 %v393, 4294901760
          %854 = vmatpush1.msra.mxu0 %v853
          %855 = vmatprep.subr.mxu0 0.0
          %v856 = vand.u32 %v392, 4294901760
          %857 = vmatpush1.msra.mxu0 %v856
          %858 = vmatprep.subr.mxu0 0.0
          %859 = vmatpush2.msra.mxu0 0.0
          %860 = vmatprep.subr.mxu0 0.0
          %861 = vmatpush2.msra.mxu0 0.0
          %862 = vmatprep.subr.mxu0 0.0
          %863 = vmatpush2.msra.mxu0 0.0
          %864 = vmatprep.subr.mxu0 0.0
          %865 = vmatpush2.msra.mxu0 0.0
          %866 = vmatprep.subr.mxu0 0.0
          %867 = vmatpush2.msra.mxu0 0.0
          %868 = vmatprep.subr.mxu0 0.0
          %869 = vmatpush2.msra.mxu0 0.0
          %870 = vmatprep.subr.mxu0 0.0
          %871 = vmatpush2.msra.mxu0 0.0
          %872 = vmatprep.subr.mxu0 0.0
          %873 = vmatpush2.msra.mxu0 0.0
          %874 = vmatprep.subr.mxu0 0.0
          %875 = vmatpush2.msra.mxu0 0.0
          %876 = vmatprep.subr.mxu0 0.0
          %877 = vmatpush2.msra.mxu0 0.0
          %878 = vmatprep.subr.mxu0 0.0
          %879 = vmatpush2.msra.mxu0 0.0
          %880 = vmatprep.subr.mxu0 0.0
          %881 = vmatpush2.msra.mxu0 0.0
          %882 = vmatprep.subr.mxu0 0.0
          %883 = vmatpush2.msra.mxu0 0.0
          %884 = vmatprep.subr.mxu0 0.0
          %885 = vmatpush2.msra.mxu0 0.0
          %886 = vmatprep.subr.mxu0 0.0
          %887 = vmatpush2.msra.mxu0 0.0
          %888 = vmatprep.subr.mxu0 0.0
          %889 = vmatpush2.msra.mxu0 0.0
          %890 = vmatprep.mubr.f32.mxu0 0.0
          %v891 = vand.u32 %v396, 4294901760
          %892 = vmatmul.mubr.f32.gmra.mxu0 %v891
          %v893 = vpop.f32.mrf.mxu0
          %v894 = vadd.f32 %v815, %v893
          %v895 = vpop.f32.mrf.mxu0
          %896 = vmatprep.mubr.f32.mxu0 0.0
          %v897 = vand.u32 %v399, 4294901760
          %898 = vmatmul.mubr.f32.gmra.mxu0 %v897
          %v899 = vpop.f32.mrf.mxu0
          %v900 = vadd.f32 %v821, %v899
          %v901 = vpop.f32.mrf.mxu0
          %902 = vdwg.mxu0
          %v903 = vld [vmem:[#allocation11] sm:$0xff]
          %v904 = vld [vmem:[#allocation11 + $0x8] sm:$0xff]
          %v906 = vsel %vm394, %v903, 0
          %v909 = vsel %vm394, %v904, 0
          %911 = vmatprep.subr.mxu0 0.0
          %912 = vmatpush1.msra.mxu0 0.0
          %913 = vmatprep.subr.mxu0 0.0
          %914 = vmatpush1.msra.mxu0 0.0
          %915 = vmatprep.subr.mxu0 0.0
          %916 = vmatpush1.msra.mxu0 0.0
          %917 = vmatprep.subr.mxu0 0.0
          %918 = vmatpush1.msra.mxu0 0.0
          %919 = vmatprep.subr.mxu0 0.0
          %920 = vmatpush1.msra.mxu0 0.0
          %921 = vmatprep.subr.mxu0 0.0
          %922 = vmatpush1.msra.mxu0 0.0
          %923 = vmatprep.subr.mxu0 0.0
          %924 = vmatpush1.msra.mxu0 0.0
          %925 = vmatprep.subr.mxu0 0.0
          %926 = vmatpush1.msra.mxu0 0.0
          %927 = vmatprep.subr.mxu0 0.0
          %928 = vmatpush1.msra.mxu0 0.0
          %929 = vmatprep.subr.mxu0 0.0
          %930 = vmatpush1.msra.mxu0 0.0
          %931 = vmatprep.subr.mxu0 0.0
          %932 = vmatpush1.msra.mxu0 0.0
          %933 = vmatprep.subr.mxu0 0.0
          %934 = vmatpush1.msra.mxu0 0.0
          %935 = vmatprep.subr.mxu0 0.0
          %936 = vmatpush1.msra.mxu0 0.0
          %937 = vmatprep.subr.mxu0 0.0
          %938 = vmatpush1.msra.mxu0 0.0
          %939 = vmatprep.subr.mxu0 0.0
          %v940 = vand.u32 %v900, 4294901760
          %941 = vmatpush1.msra.mxu0 %v940
          %942 = vmatprep.subr.mxu0 0.0
          %v943 = vand.u32 %v894, 4294901760
          %944 = vmatpush1.msra.mxu0 %v943
          %945 = vmatprep.subr.mxu0 0.0
          %946 = vmatpush2.msra.mxu0 0.0
          %947 = vmatprep.subr.mxu0 0.0
          %948 = vmatpush2.msra.mxu0 0.0
          %949 = vmatprep.subr.mxu0 0.0
          %950 = vmatpush2.msra.mxu0 0.0
          %951 = vmatprep.subr.mxu0 0.0
          %952 = vmatpush2.msra.mxu0 0.0
          %953 = vmatprep.subr.mxu0 0.0
          %954 = vmatpush2.msra.mxu0 0.0
          %955 = vmatprep.subr.mxu0 0.0
          %956 = vmatpush2.msra.mxu0 0.0
          %957 = vmatprep.subr.mxu0 0.0
          %958 = vmatpush2.msra.mxu0 0.0
          %959 = vmatprep.subr.mxu0 0.0
          %960 = vmatpush2.msra.mxu0 0.0
          %961 = vmatprep.subr.mxu0 0.0
          %962 = vmatpush2.msra.mxu0 0.0
          %963 = vmatprep.subr.mxu0 0.0
          %964 = vmatpush2.msra.mxu0 0.0
          %965 = vmatprep.subr.mxu0 0.0
          %966 = vmatpush2.msra.mxu0 0.0
          %967 = vmatprep.subr.mxu0 0.0
          %968 = vmatpush2.msra.mxu0 0.0
          %969 = vmatprep.subr.mxu0 0.0
          %970 = vmatpush2.msra.mxu0 0.0
          %971 = vmatprep.subr.mxu0 0.0
          %972 = vmatpush2.msra.mxu0 0.0
          %973 = vmatprep.subr.mxu0 0.0
          %974 = vmatpush2.msra.mxu0 0.0
          %975 = vmatprep.subr.mxu0 0.0
          %976 = vmatpush2.msra.mxu0 0.0
          %977 = vmatprep.mubr.f32.mxu0 0.0
          %v978 = vand.u32 %v906, 4294901760
          %v979 = vsub.f32 %v906, %v978
          %v980 = vand.u32 %v979, 4294901760
          %v981 = vsub.f32 %v979, %v980
          %v982 = vand.u32 %v981, 4294901760
          %983 = vmatmul.mubr.f32.gmra.mxu0 %v982
          %v984 = vpop.f32.mrf.mxu0
          %v985 = vadd.f32 0.0, %v984
          %v986 = vpop.f32.mrf.mxu0
          %987 = vmatprep.mubr.f32.mxu0 0.0
          %v988 = vand.u32 %v909, 4294901760
          %v989 = vsub.f32 %v909, %v988
          %v990 = vand.u32 %v989, 4294901760
          %v991 = vsub.f32 %v989, %v990
          %v992 = vand.u32 %v991, 4294901760
          %993 = vmatmul.mubr.f32.gmra.mxu0 %v992
          %v994 = vpop.f32.mrf.mxu0
          %v995 = vadd.f32 0.0, %v994
          %v996 = vpop.f32.mrf.mxu0
          %997 = vdwg.mxu0
          %998 = vmatprep.subr.mxu0 0.0
          %999 = vmatpush1.msra.mxu0 0.0
          %1000 = vmatprep.subr.mxu0 0.0
          %1001 = vmatpush1.msra.mxu0 0.0
          %1002 = vmatprep.subr.mxu0 0.0
          %1003 = vmatpush1.msra.mxu0 0.0
          %1004 = vmatprep.subr.mxu0 0.0
          %1005 = vmatpush1.msra.mxu0 0.0
          %1006 = vmatprep.subr.mxu0 0.0
          %1007 = vmatpush1.msra.mxu0 0.0
          %1008 = vmatprep.subr.mxu0 0.0
          %1009 = vmatpush1.msra.mxu0 0.0
          %1010 = vmatprep.subr.mxu0 0.0
          %1011 = vmatpush1.msra.mxu0 0.0
          %1012 = vmatprep.subr.mxu0 0.0
          %1013 = vmatpush1.msra.mxu0 0.0
          %1014 = vmatprep.subr.mxu0 0.0
          %1015 = vmatpush1.msra.mxu0 0.0
          %1016 = vmatprep.subr.mxu0 0.0
          %1017 = vmatpush1.msra.mxu0 0.0
          %1018 = vmatprep.subr.mxu0 0.0
          %1019 = vmatpush1.msra.mxu0 0.0
          %1020 = vmatprep.subr.mxu0 0.0
          %1021 = vmatpush1.msra.mxu0 0.0
          %1022 = vmatprep.subr.mxu0 0.0
          %1023 = vmatpush1.msra.mxu0 0.0
          %1024 = vmatprep.subr.mxu0 0.0
          %1025 = vmatpush1.msra.mxu0 0.0
          %1026 = vmatprep.subr.mxu0 0.0
          %v1027 = vand.u32 %v900, 4294901760
          %v1028 = vsub.f32 %v900, %v1027
          %v1029 = vand.u32 %v1028, 4294901760
          %v1030 = vsub.f32 %v1028, %v1029
          %v1031 = vand.u32 %v1030, 4294901760
          %1032 = vmatpush1.msra.mxu0 %v1031
          %1033 = vmatprep.subr.mxu0 0.0
          %v1034 = vand.u32 %v894, 4294901760
          %v1035 = vsub.f32 %v894, %v1034
          %v1036 = vand.u32 %v1035, 4294901760
          %v1037 = vsub.f32 %v1035, %v1036
          %v1038 = vand.u32 %v1037, 4294901760
          %1039 = vmatpush1.msra.mxu0 %v1038
          %1040 = vmatprep.subr.mxu0 0.0
          %1041 = vmatpush2.msra.mxu0 0.0
          %1042 = vmatprep.subr.mxu0 0.0
          %1043 = vmatpush2.msra.mxu0 0.0
          %1044 = vmatprep.subr.mxu0 0.0
          %1045 = vmatpush2.msra.mxu0 0.0
          %1046 = vmatprep.subr.mxu0 0.0
          %1047 = vmatpush2.msra.mxu0 0.0
          %1048 = vmatprep.subr.mxu0 0.0
          %1049 = vmatpush2.msra.mxu0 0.0
          %1050 = vmatprep.subr.mxu0 0.0
          %1051 = vmatpush2.msra.mxu0 0.0
          %1052 = vmatprep.subr.mxu0 0.0
          %1053 = vmatpush2.msra.mxu0 0.0
          %1054 = vmatprep.subr.mxu0 0.0
          %1055 = vmatpush2.msra.mxu0 0.0
          %1056 = vmatprep.subr.mxu0 0.0
          %1057 = vmatpush2.msra.mxu0 0.0
          %1058 = vmatprep.subr.mxu0 0.0
          %1059 = vmatpush2.msra.mxu0 0.0
          %1060 = vmatprep.subr.mxu0 0.0
          %1061 = vmatpush2.msra.mxu0 0.0
          %1062 = vmatprep.subr.mxu0 0.0
          %1063 = vmatpush2.msra.mxu0 0.0
          %1064 = vmatprep.subr.mxu0 0.0
          %1065 = vmatpush2.msra.mxu0 0.0
          %1066 = vmatprep.subr.mxu0 0.0
          %1067 = vmatpush2.msra.mxu0 0.0
          %1068 = vmatprep.subr.mxu0 0.0
          %1069 = vmatpush2.msra.mxu0 0.0
          %1070 = vmatprep.subr.mxu0 0.0
          %1071 = vmatpush2.msra.mxu0 0.0
          %1072 = vmatprep.mubr.f32.mxu0 0.0
          %v1073 = vand.u32 %v906, 4294901760
          %1074 = vmatmul.mubr.f32.gmra.mxu0 %v1073
          %v1075 = vpop.f32.mrf.mxu0
          %v1076 = vadd.f32 %v985, %v1075
          %v1077 = vpop.f32.mrf.mxu0
          %1078 = vmatprep.mubr.f32.mxu0 0.0
          %v1079 = vand.u32 %v909, 4294901760
          %1080 = vmatmul.mubr.f32.gmra.mxu0 %v1079
          %v1081 = vpop.f32.mrf.mxu0
          %v1082 = vadd.f32 %v995, %v1081
          %v1083 = vpop.f32.mrf.mxu0
          %1084 = vdwg.mxu0
          %1085 = vmatprep.subr.mxu0 0.0
          %1086 = vmatpush1.msra.mxu0 0.0
          %1087 = vmatprep.subr.mxu0 0.0
          %1088 = vmatpush1.msra.mxu0 0.0
          %1089 = vmatprep.subr.mxu0 0.0
          %1090 = vmatpush1.msra.mxu0 0.0
          %1091 = vmatprep.subr.mxu0 0.0
          %1092 = vmatpush1.msra.mxu0 0.0
          %1093 = vmatprep.subr.mxu0 0.0
          %1094 = vmatpush1.msra.mxu0 0.0
          %1095 = vmatprep.subr.mxu0 0.0
          %1096 = vmatpush1.msra.mxu0 0.0
          %1097 = vmatprep.subr.mxu0 0.0
          %1098 = vmatpush1.msra.mxu0 0.0
          %1099 = vmatprep.subr.mxu0 0.0
          %1100 = vmatpush1.msra.mxu0 0.0
          %1101 = vmatprep.subr.mxu0 0.0
          %1102 = vmatpush1.msra.mxu0 0.0
          %1103 = vmatprep.subr.mxu0 0.0
          %1104 = vmatpush1.msra.mxu0 0.0
          %1105 = vmatprep.subr.mxu0 0.0
          %1106 = vmatpush1.msra.mxu0 0.0
          %1107 = vmatprep.subr.mxu0 0.0
          %1108 = vmatpush1.msra.mxu0 0.0
          %1109 = vmatprep.subr.mxu0 0.0
          %1110 = vmatpush1.msra.mxu0 0.0
          %1111 = vmatprep.subr.mxu0 0.0
          %1112 = vmatpush1.msra.mxu0 0.0
          %1113 = vmatprep.subr.mxu0 0.0
          %v1114 = vand.u32 %v900, 4294901760
          %v1115 = vsub.f32 %v900, %v1114
          %1116 = vmatpush1.msra.mxu0 %v1115
          %1117 = vmatprep.subr.mxu0 0.0
          %v1118 = vand.u32 %v894, 4294901760
          %v1119 = vsub.f32 %v894, %v1118
          %1120 = vmatpush1.msra.mxu0 %v1119
          %1121 = vmatprep.subr.mxu0 0.0
          %1122 = vmatpush2.msra.mxu0 0.0
          %1123 = vmatprep.subr.mxu0 0.0
          %1124 = vmatpush2.msra.mxu0 0.0
          %1125 = vmatprep.subr.mxu0 0.0
          %1126 = vmatpush2.msra.mxu0 0.0
          %1127 = vmatprep.subr.mxu0 0.0
          %1128 = vmatpush2.msra.mxu0 0.0
          %1129 = vmatprep.subr.mxu0 0.0
          %1130 = vmatpush2.msra.mxu0 0.0
          %1131 = vmatprep.subr.mxu0 0.0
          %1132 = vmatpush2.msra.mxu0 0.0
          %1133 = vmatprep.subr.mxu0 0.0
          %1134 = vmatpush2.msra.mxu0 0.0
          %1135 = vmatprep.subr.mxu0 0.0
          %1136 = vmatpush2.msra.mxu0 0.0
          %1137 = vmatprep.subr.mxu0 0.0
          %1138 = vmatpush2.msra.mxu0 0.0
          %1139 = vmatprep.subr.mxu0 0.0
          %1140 = vmatpush2.msra.mxu0 0.0
          %1141 = vmatprep.subr.mxu0 0.0
          %1142 = vmatpush2.msra.mxu0 0.0
          %1143 = vmatprep.subr.mxu0 0.0
          %1144 = vmatpush2.msra.mxu0 0.0
          %1145 = vmatprep.subr.mxu0 0.0
          %1146 = vmatpush2.msra.mxu0 0.0
          %1147 = vmatprep.subr.mxu0 0.0
          %1148 = vmatpush2.msra.mxu0 0.0
          %1149 = vmatprep.subr.mxu0 0.0
          %1150 = vmatpush2.msra.mxu0 0.0
          %1151 = vmatprep.subr.mxu0 0.0
          %1152 = vmatpush2.msra.mxu0 0.0
          %1153 = vmatprep.mubr.f32.mxu0 0.0
          %v1154 = vand.u32 %v906, 4294901760
          %v1155 = vsub.f32 %v906, %v1154
          %1156 = vmatmul.mubr.f32.gmra.mxu0 %v1155
          %v1157 = vpop.f32.mrf.mxu0
          %v1158 = vadd.f32 %v1076, %v1157
          %v1159 = vpop.f32.mrf.mxu0
          %1160 = vmatprep.mubr.f32.mxu0 0.0
          %v1161 = vand.u32 %v909, 4294901760
          %v1162 = vsub.f32 %v909, %v1161
          %1163 = vmatmul.mubr.f32.gmra.mxu0 %v1162
          %v1164 = vpop.f32.mrf.mxu0
          %v1165 = vadd.f32 %v1082, %v1164
          %v1166 = vpop.f32.mrf.mxu0
          %1167 = vdwg.mxu0
          %1168 = vmatprep.subr.mxu0 0.0
          %1169 = vmatpush1.msra.mxu0 0.0
          %1170 = vmatprep.subr.mxu0 0.0
          %1171 = vmatpush1.msra.mxu0 0.0
          %1172 = vmatprep.subr.mxu0 0.0
          %1173 = vmatpush1.msra.mxu0 0.0
          %1174 = vmatprep.subr.mxu0 0.0
          %1175 = vmatpush1.msra.mxu0 0.0
          %1176 = vmatprep.subr.mxu0 0.0
          %1177 = vmatpush1.msra.mxu0 0.0
          %1178 = vmatprep.subr.mxu0 0.0
          %1179 = vmatpush1.msra.mxu0 0.0
          %1180 = vmatprep.subr.mxu0 0.0
          %1181 = vmatpush1.msra.mxu0 0.0
          %1182 = vmatprep.subr.mxu0 0.0
          %1183 = vmatpush1.msra.mxu0 0.0
          %1184 = vmatprep.subr.mxu0 0.0
          %1185 = vmatpush1.msra.mxu0 0.0
          %1186 = vmatprep.subr.mxu0 0.0
          %1187 = vmatpush1.msra.mxu0 0.0
          %1188 = vmatprep.subr.mxu0 0.0
          %1189 = vmatpush1.msra.mxu0 0.0
          %1190 = vmatprep.subr.mxu0 0.0
          %1191 = vmatpush1.msra.mxu0 0.0
          %1192 = vmatprep.subr.mxu0 0.0
          %1193 = vmatpush1.msra.mxu0 0.0
          %1194 = vmatprep.subr.mxu0 0.0
          %1195 = vmatpush1.msra.mxu0 0.0
          %1196 = vmatprep.subr.mxu0 0.0
          %v1197 = vand.u32 %v900, 4294901760
          %1198 = vmatpush1.msra.mxu0 %v1197
          %1199 = vmatprep.subr.mxu0 0.0
          %v1200 = vand.u32 %v894, 4294901760
          %1201 = vmatpush1.msra.mxu0 %v1200
          %1202 = vmatprep.subr.mxu0 0.0
          %1203 = vmatpush2.msra.mxu0 0.0
          %1204 = vmatprep.subr.mxu0 0.0
          %1205 = vmatpush2.msra.mxu0 0.0
          %1206 = vmatprep.subr.mxu0 0.0
          %1207 = vmatpush2.msra.mxu0 0.0
          %1208 = vmatprep.subr.mxu0 0.0
          %1209 = vmatpush2.msra.mxu0 0.0
          %1210 = vmatprep.subr.mxu0 0.0
          %1211 = vmatpush2.msra.mxu0 0.0
          %1212 = vmatprep.subr.mxu0 0.0
          %1213 = vmatpush2.msra.mxu0 0.0
          %1214 = vmatprep.subr.mxu0 0.0
          %1215 = vmatpush2.msra.mxu0 0.0
          %1216 = vmatprep.subr.mxu0 0.0
          %1217 = vmatpush2.msra.mxu0 0.0
          %1218 = vmatprep.subr.mxu0 0.0
          %1219 = vmatpush2.msra.mxu0 0.0
          %1220 = vmatprep.subr.mxu0 0.0
          %1221 = vmatpush2.msra.mxu0 0.0
          %1222 = vmatprep.subr.mxu0 0.0
          %1223 = vmatpush2.msra.mxu0 0.0
          %1224 = vmatprep.subr.mxu0 0.0
          %1225 = vmatpush2.msra.mxu0 0.0
          %1226 = vmatprep.subr.mxu0 0.0
          %1227 = vmatpush2.msra.mxu0 0.0
          %1228 = vmatprep.subr.mxu0 0.0
          %1229 = vmatpush2.msra.mxu0 0.0
          %1230 = vmatprep.subr.mxu0 0.0
          %1231 = vmatpush2.msra.mxu0 0.0
          %1232 = vmatprep.subr.mxu0 0.0
          %1233 = vmatpush2.msra.mxu0 0.0
          %1234 = vmatprep.mubr.f32.mxu0 0.0
          %v1235 = vand.u32 %v906, 4294901760
          %v1236 = vsub.f32 %v906, %v1235
          %v1237 = vand.u32 %v1236, 4294901760
          %1238 = vmatmul.mubr.f32.gmra.mxu0 %v1237
          %v1239 = vpop.f32.mrf.mxu0
          %v1240 = vadd.f32 %v1158, %v1239
          %v1241 = vpop.f32.mrf.mxu0
          %1242 = vmatprep.mubr.f32.mxu0 0.0
          %v1243 = vand.u32 %v909, 4294901760
          %v1244 = vsub.f32 %v909, %v1243
          %v1245 = vand.u32 %v1244, 4294901760
          %1246 = vmatmul.mubr.f32.gmra.mxu0 %v1245
          %v1247 = vpop.f32.mrf.mxu0
          %v1248 = vadd.f32 %v1165, %v1247
          %v1249 = vpop.f32.mrf.mxu0
          %1250 = vdwg.mxu0
          %1251 = vmatprep.subr.mxu0 0.0
          %1252 = vmatpush1.msra.mxu0 0.0
          %1253 = vmatprep.subr.mxu0 0.0
          %1254 = vmatpush1.msra.mxu0 0.0
          %1255 = vmatprep.subr.mxu0 0.0
          %1256 = vmatpush1.msra.mxu0 0.0
          %1257 = vmatprep.subr.mxu0 0.0
          %1258 = vmatpush1.msra.mxu0 0.0
          %1259 = vmatprep.subr.mxu0 0.0
          %1260 = vmatpush1.msra.mxu0 0.0
          %1261 = vmatprep.subr.mxu0 0.0
          %1262 = vmatpush1.msra.mxu0 0.0
          %1263 = vmatprep.subr.mxu0 0.0
          %1264 = vmatpush1.msra.mxu0 0.0
          %1265 = vmatprep.subr.mxu0 0.0
          %1266 = vmatpush1.msra.mxu0 0.0
          %1267 = vmatprep.subr.mxu0 0.0
          %1268 = vmatpush1.msra.mxu0 0.0
          %1269 = vmatprep.subr.mxu0 0.0
          %1270 = vmatpush1.msra.mxu0 0.0
          %1271 = vmatprep.subr.mxu0 0.0
          %1272 = vmatpush1.msra.mxu0 0.0
          %1273 = vmatprep.subr.mxu0 0.0
          %1274 = vmatpush1.msra.mxu0 0.0
          %1275 = vmatprep.subr.mxu0 0.0
          %1276 = vmatpush1.msra.mxu0 0.0
          %1277 = vmatprep.subr.mxu0 0.0
          %1278 = vmatpush1.msra.mxu0 0.0
          %1279 = vmatprep.subr.mxu0 0.0
          %v1280 = vand.u32 %v900, 4294901760
          %v1281 = vsub.f32 %v900, %v1280
          %v1282 = vand.u32 %v1281, 4294901760
          %1283 = vmatpush1.msra.mxu0 %v1282
          %1284 = vmatprep.subr.mxu0 0.0
          %v1285 = vand.u32 %v894, 4294901760
          %v1286 = vsub.f32 %v894, %v1285
          %v1287 = vand.u32 %v1286, 4294901760
          %1288 = vmatpush1.msra.mxu0 %v1287
          %1289 = vmatprep.subr.mxu0 0.0
          %1290 = vmatpush2.msra.mxu0 0.0
          %1291 = vmatprep.subr.mxu0 0.0
          %1292 = vmatpush2.msra.mxu0 0.0
          %1293 = vmatprep.subr.mxu0 0.0
          %1294 = vmatpush2.msra.mxu0 0.0
          %1295 = vmatprep.subr.mxu0 0.0
          %1296 = vmatpush2.msra.mxu0 0.0
          %1297 = vmatprep.subr.mxu0 0.0
          %1298 = vmatpush2.msra.mxu0 0.0
          %1299 = vmatprep.subr.mxu0 0.0
          %1300 = vmatpush2.msra.mxu0 0.0
          %1301 = vmatprep.subr.mxu0 0.0
          %1302 = vmatpush2.msra.mxu0 0.0
          %1303 = vmatprep.subr.mxu0 0.0
          %1304 = vmatpush2.msra.mxu0 0.0
          %1305 = vmatprep.subr.mxu0 0.0
          %1306 = vmatpush2.msra.mxu0 0.0
          %1307 = vmatprep.subr.mxu0 0.0
          %1308 = vmatpush2.msra.mxu0 0.0
          %1309 = vmatprep.subr.mxu0 0.0
          %1310 = vmatpush2.msra.mxu0 0.0
          %1311 = vmatprep.subr.mxu0 0.0
          %1312 = vmatpush2.msra.mxu0 0.0
          %1313 = vmatprep.subr.mxu0 0.0
          %1314 = vmatpush2.msra.mxu0 0.0
          %1315 = vmatprep.subr.mxu0 0.0
          %1316 = vmatpush2.msra.mxu0 0.0
          %1317 = vmatprep.subr.mxu0 0.0
          %1318 = vmatpush2.msra.mxu0 0.0
          %1319 = vmatprep.subr.mxu0 0.0
          %1320 = vmatpush2.msra.mxu0 0.0
          %1321 = vmatprep.mubr.f32.mxu0 0.0
          %v1322 = vand.u32 %v906, 4294901760
          %1323 = vmatmul.mubr.f32.gmra.mxu0 %v1322
          %v1324 = vpop.f32.mrf.mxu0
          %v1325 = vadd.f32 %v1240, %v1324
          %v1326 = vpop.f32.mrf.mxu0
          %1327 = vmatprep.mubr.f32.mxu0 0.0
          %v1328 = vand.u32 %v909, 4294901760
          %1329 = vmatmul.mubr.f32.gmra.mxu0 %v1328
          %v1330 = vpop.f32.mrf.mxu0
          %v1331 = vadd.f32 %v1248, %v1330
          %v1332 = vpop.f32.mrf.mxu0
          %1333 = vdwg.mxu0
          %1334 = vmatprep.subr.mxu0 0.0
          %1335 = vmatpush1.msra.mxu0 0.0
          %1336 = vmatprep.subr.mxu0 0.0
          %1337 = vmatpush1.msra.mxu0 0.0
          %1338 = vmatprep.subr.mxu0 0.0
          %1339 = vmatpush1.msra.mxu0 0.0
          %1340 = vmatprep.subr.mxu0 0.0
          %1341 = vmatpush1.msra.mxu0 0.0
          %1342 = vmatprep.subr.mxu0 0.0
          %1343 = vmatpush1.msra.mxu0 0.0
          %1344 = vmatprep.subr.mxu0 0.0
          %1345 = vmatpush1.msra.mxu0 0.0
          %1346 = vmatprep.subr.mxu0 0.0
          %1347 = vmatpush1.msra.mxu0 0.0
          %1348 = vmatprep.subr.mxu0 0.0
          %1349 = vmatpush1.msra.mxu0 0.0
          %1350 = vmatprep.subr.mxu0 0.0
          %1351 = vmatpush1.msra.mxu0 0.0
          %1352 = vmatprep.subr.mxu0 0.0
          %1353 = vmatpush1.msra.mxu0 0.0
          %1354 = vmatprep.subr.mxu0 0.0
          %1355 = vmatpush1.msra.mxu0 0.0
          %1356 = vmatprep.subr.mxu0 0.0
          %1357 = vmatpush1.msra.mxu0 0.0
          %1358 = vmatprep.subr.mxu0 0.0
          %1359 = vmatpush1.msra.mxu0 0.0
          %1360 = vmatprep.subr.mxu0 0.0
          %1361 = vmatpush1.msra.mxu0 0.0
          %1362 = vmatprep.subr.mxu0 0.0
          %v1363 = vand.u32 %v900, 4294901760
          %1364 = vmatpush1.msra.mxu0 %v1363
          %1365 = vmatprep.subr.mxu0 0.0
          %v1366 = vand.u32 %v894, 4294901760
          %1367 = vmatpush1.msra.mxu0 %v1366
          %1368 = vmatprep.subr.mxu0 0.0
          %1369 = vmatpush2.msra.mxu0 0.0
          %1370 = vmatprep.subr.mxu0 0.0
          %1371 = vmatpush2.msra.mxu0 0.0
          %1372 = vmatprep.subr.mxu0 0.0
          %1373 = vmatpush2.msra.mxu0 0.0
          %1374 = vmatprep.subr.mxu0 0.0
          %1375 = vmatpush2.msra.mxu0 0.0
          %1376 = vmatprep.subr.mxu0 0.0
          %1377 = vmatpush2.msra.mxu0 0.0
          %1378 = vmatprep.subr.mxu0 0.0
          %1379 = vmatpush2.msra.mxu0 0.0
          %1380 = vmatprep.subr.mxu0 0.0
          %1381 = vmatpush2.msra.mxu0 0.0
          %1382 = vmatprep.subr.mxu0 0.0
          %1383 = vmatpush2.msra.mxu0 0.0
          %1384 = vmatprep.subr.mxu0 0.0
          %1385 = vmatpush2.msra.mxu0 0.0
          %1386 = vmatprep.subr.mxu0 0.0
          %1387 = vmatpush2.msra.mxu0 0.0
          %1388 = vmatprep.subr.mxu0 0.0
          %1389 = vmatpush2.msra.mxu0 0.0
          %1390 = vmatprep.subr.mxu0 0.0
          %1391 = vmatpush2.msra.mxu0 0.0
          %1392 = vmatprep.subr.mxu0 0.0
          %1393 = vmatpush2.msra.mxu0 0.0
          %1394 = vmatprep.subr.mxu0 0.0
          %1395 = vmatpush2.msra.mxu0 0.0
          %1396 = vmatprep.subr.mxu0 0.0
          %1397 = vmatpush2.msra.mxu0 0.0
          %1398 = vmatprep.subr.mxu0 0.0
          %1399 = vmatpush2.msra.mxu0 0.0
          %1400 = vmatprep.mubr.f32.mxu0 0.0
          %v1401 = vand.u32 %v906, 4294901760
          %1402 = vmatmul.mubr.f32.gmra.mxu0 %v1401
          %v1403 = vpop.f32.mrf.mxu0
          %v1404 = vadd.f32 %v1325, %v1403
          %v1405 = vpop.f32.mrf.mxu0
          %1406 = vmatprep.mubr.f32.mxu0 0.0
          %v1407 = vand.u32 %v909, 4294901760
          %1408 = vmatmul.mubr.f32.gmra.mxu0 %v1407
          %v1409 = vpop.f32.mrf.mxu0
          %v1410 = vadd.f32 %v1331, %v1409
          %v1411 = vpop.f32.mrf.mxu0
          %1412 = vdwg.mxu0
          %s1413 = smul.u32 %s391, 16
          %s1414 = scalar_lea.vmem [#allocation2], %s1413
          %1415 = vst.msk [vmem:[%s1414] sm:$0xff] %vm394, %v1404
          %1416 = vst.msk [vmem:[%s1414 + $0x8] sm:$0xff] %vm394, %v1410
          %v1417 = vld [vmem:[#allocation12] sm:$0xff]
          %v1418 = vld [vmem:[#allocation12 + $0x8] sm:$0xff]
          %v1420 = vsel %vm394, %v371, 0
          %v1423 = vsel %vm394, %v372, 0
          %1425 = vmatprep.subr.mxu0 0.0
          %1426 = vmatpush1.msra.mxu0 0.0
          %1427 = vmatprep.subr.mxu0 0.0
          %1428 = vmatpush1.msra.mxu0 0.0
          %1429 = vmatprep.subr.mxu0 0.0
          %1430 = vmatpush1.msra.mxu0 0.0
          %1431 = vmatprep.subr.mxu0 0.0
          %1432 = vmatpush1.msra.mxu0 0.0
          %1433 = vmatprep.subr.mxu0 0.0
          %1434 = vmatpush1.msra.mxu0 0.0
          %1435 = vmatprep.subr.mxu0 0.0
          %1436 = vmatpush1.msra.mxu0 0.0
          %1437 = vmatprep.subr.mxu0 0.0
          %1438 = vmatpush1.msra.mxu0 0.0
          %1439 = vmatprep.subr.mxu0 0.0
          %1440 = vmatpush1.msra.mxu0 0.0
          %1441 = vmatprep.subr.mxu0 0.0
          %1442 = vmatpush1.msra.mxu0 0.0
          %1443 = vmatprep.subr.mxu0 0.0
          %1444 = vmatpush1.msra.mxu0 0.0
          %1445 = vmatprep.subr.mxu0 0.0
          %1446 = vmatpush1.msra.mxu0 0.0
          %1447 = vmatprep.subr.mxu0 0.0
          %1448 = vmatpush1.msra.mxu0 0.0
          %1449 = vmatprep.subr.mxu0 0.0
          %1450 = vmatpush1.msra.mxu0 0.0
          %1451 = vmatprep.subr.mxu0 0.0
          %1452 = vmatpush1.msra.mxu0 0.0
          %1453 = vmatprep.subr.mxu0 0.0
          %v1454 = vand.u32 %v1418, 4294901760
          %1455 = vmatpush1.msra.mxu0 %v1454
          %1456 = vmatprep.subr.mxu0 0.0
          %v1457 = vand.u32 %v1417, 4294901760
          %1458 = vmatpush1.msra.mxu0 %v1457
          %1459 = vmatprep.subr.mxu0 0.0
          %1460 = vmatpush2.msra.mxu0 0.0
          %1461 = vmatprep.subr.mxu0 0.0
          %1462 = vmatpush2.msra.mxu0 0.0
          %1463 = vmatprep.subr.mxu0 0.0
          %1464 = vmatpush2.msra.mxu0 0.0
          %1465 = vmatprep.subr.mxu0 0.0
          %1466 = vmatpush2.msra.mxu0 0.0
          %1467 = vmatprep.subr.mxu0 0.0
          %1468 = vmatpush2.msra.mxu0 0.0
          %1469 = vmatprep.subr.mxu0 0.0
          %1470 = vmatpush2.msra.mxu0 0.0
          %1471 = vmatprep.subr.mxu0 0.0
          %1472 = vmatpush2.msra.mxu0 0.0
          %1473 = vmatprep.subr.mxu0 0.0
          %1474 = vmatpush2.msra.mxu0 0.0
          %1475 = vmatprep.subr.mxu0 0.0
          %1476 = vmatpush2.msra.mxu0 0.0
          %1477 = vmatprep.subr.mxu0 0.0
          %1478 = vmatpush2.msra.mxu0 0.0
          %1479 = vmatprep.subr.mxu0 0.0
          %1480 = vmatpush2.msra.mxu0 0.0
          %1481 = vmatprep.subr.mxu0 0.0
          %1482 = vmatpush2.msra.mxu0 0.0
          %1483 = vmatprep.subr.mxu0 0.0
          %1484 = vmatpush2.msra.mxu0 0.0
          %1485 = vmatprep.subr.mxu0 0.0
          %1486 = vmatpush2.msra.mxu0 0.0
          %1487 = vmatprep.subr.mxu0 0.0
          %1488 = vmatpush2.msra.mxu0 0.0
          %1489 = vmatprep.subr.mxu0 0.0
          %1490 = vmatpush2.msra.mxu0 0.0
          %1491 = vmatprep.mubr.f32.mxu0 0.0
          %v1492 = vand.u32 %v1420, 4294901760
          %v1493 = vsub.f32 %v1420, %v1492
          %v1494 = vand.u32 %v1493, 4294901760
          %v1495 = vsub.f32 %v1493, %v1494
          %v1496 = vand.u32 %v1495, 4294901760
          %1497 = vmatmul.mubr.f32.gmra.mxu0 %v1496
          %v1498 = vpop.f32.mrf.mxu0
          %v1499 = vadd.f32 0.0, %v1498
          %v1500 = vpop.f32.mrf.mxu0
          %1501 = vmatprep.mubr.f32.mxu0 0.0
          %v1502 = vand.u32 %v1423, 4294901760
          %v1503 = vsub.f32 %v1423, %v1502
          %v1504 = vand.u32 %v1503, 4294901760
          %v1505 = vsub.f32 %v1503, %v1504
          %v1506 = vand.u32 %v1505, 4294901760
          %1507 = vmatmul.mubr.f32.gmra.mxu0 %v1506
          %v1508 = vpop.f32.mrf.mxu0
          %v1509 = vadd.f32 0.0, %v1508
          %v1510 = vpop.f32.mrf.mxu0
          %1511 = vdwg.mxu0
          %1512 = vmatprep.subr.mxu0 0.0
          %1513 = vmatpush1.msra.mxu0 0.0
          %1514 = vmatprep.subr.mxu0 0.0
          %1515 = vmatpush1.msra.mxu0 0.0
          %1516 = vmatprep.subr.mxu0 0.0
          %1517 = vmatpush1.msra.mxu0 0.0
          %1518 = vmatprep.subr.mxu0 0.0
          %1519 = vmatpush1.msra.mxu0 0.0
          %1520 = vmatprep.subr.mxu0 0.0
          %1521 = vmatpush1.msra.mxu0 0.0
          %1522 = vmatprep.subr.mxu0 0.0
          %1523 = vmatpush1.msra.mxu0 0.0
          %1524 = vmatprep.subr.mxu0 0.0
          %1525 = vmatpush1.msra.mxu0 0.0
          %1526 = vmatprep.subr.mxu0 0.0
          %1527 = vmatpush1.msra.mxu0 0.0
          %1528 = vmatprep.subr.mxu0 0.0
          %1529 = vmatpush1.msra.mxu0 0.0
          %1530 = vmatprep.subr.mxu0 0.0
          %1531 = vmatpush1.msra.mxu0 0.0
          %1532 = vmatprep.subr.mxu0 0.0
          %1533 = vmatpush1.msra.mxu0 0.0
          %1534 = vmatprep.subr.mxu0 0.0
          %1535 = vmatpush1.msra.mxu0 0.0
          %1536 = vmatprep.subr.mxu0 0.0
          %1537 = vmatpush1.msra.mxu0 0.0
          %1538 = vmatprep.subr.mxu0 0.0
          %1539 = vmatpush1.msra.mxu0 0.0
          %1540 = vmatprep.subr.mxu0 0.0
          %v1541 = vand.u32 %v1418, 4294901760
          %v1542 = vsub.f32 %v1418, %v1541
          %v1543 = vand.u32 %v1542, 4294901760
          %v1544 = vsub.f32 %v1542, %v1543
          %v1545 = vand.u32 %v1544, 4294901760
          %1546 = vmatpush1.msra.mxu0 %v1545
          %1547 = vmatprep.subr.mxu0 0.0
          %v1548 = vand.u32 %v1417, 4294901760
          %v1549 = vsub.f32 %v1417, %v1548
          %v1550 = vand.u32 %v1549, 4294901760
          %v1551 = vsub.f32 %v1549, %v1550
          %v1552 = vand.u32 %v1551, 4294901760
          %1553 = vmatpush1.msra.mxu0 %v1552
          %1554 = vmatprep.subr.mxu0 0.0
          %1555 = vmatpush2.msra.mxu0 0.0
          %1556 = vmatprep.subr.mxu0 0.0
          %1557 = vmatpush2.msra.mxu0 0.0
          %1558 = vmatprep.subr.mxu0 0.0
          %1559 = vmatpush2.msra.mxu0 0.0
          %1560 = vmatprep.subr.mxu0 0.0
          %1561 = vmatpush2.msra.mxu0 0.0
          %1562 = vmatprep.subr.mxu0 0.0
          %1563 = vmatpush2.msra.mxu0 0.0
          %1564 = vmatprep.subr.mxu0 0.0
          %1565 = vmatpush2.msra.mxu0 0.0
          %1566 = vmatprep.subr.mxu0 0.0
          %1567 = vmatpush2.msra.mxu0 0.0
          %1568 = vmatprep.subr.mxu0 0.0
          %1569 = vmatpush2.msra.mxu0 0.0
          %1570 = vmatprep.subr.mxu0 0.0
          %1571 = vmatpush2.msra.mxu0 0.0
          %1572 = vmatprep.subr.mxu0 0.0
          %1573 = vmatpush2.msra.mxu0 0.0
          %1574 = vmatprep.subr.mxu0 0.0
          %1575 = vmatpush2.msra.mxu0 0.0
          %1576 = vmatprep.subr.mxu0 0.0
          %1577 = vmatpush2.msra.mxu0 0.0
          %1578 = vmatprep.subr.mxu0 0.0
          %1579 = vmatpush2.msra.mxu0 0.0
          %1580 = vmatprep.subr.mxu0 0.0
          %1581 = vmatpush2.msra.mxu0 0.0
          %1582 = vmatprep.subr.mxu0 0.0
          %1583 = vmatpush2.msra.mxu0 0.0
          %1584 = vmatprep.subr.mxu0 0.0
          %1585 = vmatpush2.msra.mxu0 0.0
          %1586 = vmatprep.mubr.f32.mxu0 0.0
          %v1587 = vand.u32 %v1420, 4294901760
          %1588 = vmatmul.mubr.f32.gmra.mxu0 %v1587
          %v1589 = vpop.f32.mrf.mxu0
          %v1590 = vadd.f32 %v1499, %v1589
          %v1591 = vpop.f32.mrf.mxu0
          %1592 = vmatprep.mubr.f32.mxu0 0.0
          %v1593 = vand.u32 %v1423, 4294901760
          %1594 = vmatmul.mubr.f32.gmra.mxu0 %v1593
          %v1595 = vpop.f32.mrf.mxu0
          %v1596 = vadd.f32 %v1509, %v1595
          %v1597 = vpop.f32.mrf.mxu0
          %1598 = vdwg.mxu0
          %1599 = vmatprep.subr.mxu0 0.0
          %1600 = vmatpush1.msra.mxu0 0.0
          %1601 = vmatprep.subr.mxu0 0.0
          %1602 = vmatpush1.msra.mxu0 0.0
          %1603 = vmatprep.subr.mxu0 0.0
          %1604 = vmatpush1.msra.mxu0 0.0
          %1605 = vmatprep.subr.mxu0 0.0
          %1606 = vmatpush1.msra.mxu0 0.0
          %1607 = vmatprep.subr.mxu0 0.0
          %1608 = vmatpush1.msra.mxu0 0.0
          %1609 = vmatprep.subr.mxu0 0.0
          %1610 = vmatpush1.msra.mxu0 0.0
          %1611 = vmatprep.subr.mxu0 0.0
          %1612 = vmatpush1.msra.mxu0 0.0
          %1613 = vmatprep.subr.mxu0 0.0
          %1614 = vmatpush1.msra.mxu0 0.0
          %1615 = vmatprep.subr.mxu0 0.0
          %1616 = vmatpush1.msra.mxu0 0.0
          %1617 = vmatprep.subr.mxu0 0.0
          %1618 = vmatpush1.msra.mxu0 0.0
          %1619 = vmatprep.subr.mxu0 0.0
          %1620 = vmatpush1.msra.mxu0 0.0
          %1621 = vmatprep.subr.mxu0 0.0
          %1622 = vmatpush1.msra.mxu0 0.0
          %1623 = vmatprep.subr.mxu0 0.0
          %1624 = vmatpush1.msra.mxu0 0.0
          %1625 = vmatprep.subr.mxu0 0.0
          %1626 = vmatpush1.msra.mxu0 0.0
          %1627 = vmatprep.subr.mxu0 0.0
          %v1628 = vand.u32 %v1418, 4294901760
          %v1629 = vsub.f32 %v1418, %v1628
          %1630 = vmatpush1.msra.mxu0 %v1629
          %1631 = vmatprep.subr.mxu0 0.0
          %v1632 = vand.u32 %v1417, 4294901760
          %v1633 = vsub.f32 %v1417, %v1632
          %1634 = vmatpush1.msra.mxu0 %v1633
          %1635 = vmatprep.subr.mxu0 0.0
          %1636 = vmatpush2.msra.mxu0 0.0
          %1637 = vmatprep.subr.mxu0 0.0
          %1638 = vmatpush2.msra.mxu0 0.0
          %1639 = vmatprep.subr.mxu0 0.0
          %1640 = vmatpush2.msra.mxu0 0.0
          %1641 = vmatprep.subr.mxu0 0.0
          %1642 = vmatpush2.msra.mxu0 0.0
          %1643 = vmatprep.subr.mxu0 0.0
          %1644 = vmatpush2.msra.mxu0 0.0
          %1645 = vmatprep.subr.mxu0 0.0
          %1646 = vmatpush2.msra.mxu0 0.0
          %1647 = vmatprep.subr.mxu0 0.0
          %1648 = vmatpush2.msra.mxu0 0.0
          %1649 = vmatprep.subr.mxu0 0.0
          %1650 = vmatpush2.msra.mxu0 0.0
          %1651 = vmatprep.subr.mxu0 0.0
          %1652 = vmatpush2.msra.mxu0 0.0
          %1653 = vmatprep.subr.mxu0 0.0
          %1654 = vmatpush2.msra.mxu0 0.0
          %1655 = vmatprep.subr.mxu0 0.0
          %1656 = vmatpush2.msra.mxu0 0.0
          %1657 = vmatprep.subr.mxu0 0.0
          %1658 = vmatpush2.msra.mxu0 0.0
          %1659 = vmatprep.subr.mxu0 0.0
          %1660 = vmatpush2.msra.mxu0 0.0
          %1661 = vmatprep.subr.mxu0 0.0
          %1662 = vmatpush2.msra.mxu0 0.0
          %1663 = vmatprep.subr.mxu0 0.0
          %1664 = vmatpush2.msra.mxu0 0.0
          %1665 = vmatprep.subr.mxu0 0.0
          %1666 = vmatpush2.msra.mxu0 0.0
          %1667 = vmatprep.mubr.f32.mxu0 0.0
          %v1668 = vand.u32 %v1420, 4294901760
          %v1669 = vsub.f32 %v1420, %v1668
          %1670 = vmatmul.mubr.f32.gmra.mxu0 %v1669
          %v1671 = vpop.f32.mrf.mxu0
          %v1672 = vadd.f32 %v1590, %v1671
          %v1673 = vpop.f32.mrf.mxu0
          %1674 = vmatprep.mubr.f32.mxu0 0.0
          %v1675 = vand.u32 %v1423, 4294901760
          %v1676 = vsub.f32 %v1423, %v1675
          %1677 = vmatmul.mubr.f32.gmra.mxu0 %v1676
          %v1678 = vpop.f32.mrf.mxu0
          %v1679 = vadd.f32 %v1596, %v1678
          %v1680 = vpop.f32.mrf.mxu0
          %1681 = vdwg.mxu0
          %1682 = vmatprep.subr.mxu0 0.0
          %1683 = vmatpush1.msra.mxu0 0.0
          %1684 = vmatprep.subr.mxu0 0.0
          %1685 = vmatpush1.msra.mxu0 0.0
          %1686 = vmatprep.subr.mxu0 0.0
          %1687 = vmatpush1.msra.mxu0 0.0
          %1688 = vmatprep.subr.mxu0 0.0
          %1689 = vmatpush1.msra.mxu0 0.0
          %1690 = vmatprep.subr.mxu0 0.0
          %1691 = vmatpush1.msra.mxu0 0.0
          %1692 = vmatprep.subr.mxu0 0.0
          %1693 = vmatpush1.msra.mxu0 0.0
          %1694 = vmatprep.subr.mxu0 0.0
          %1695 = vmatpush1.msra.mxu0 0.0
          %1696 = vmatprep.subr.mxu0 0.0
          %1697 = vmatpush1.msra.mxu0 0.0
          %1698 = vmatprep.subr.mxu0 0.0
          %1699 = vmatpush1.msra.mxu0 0.0
          %1700 = vmatprep.subr.mxu0 0.0
          %1701 = vmatpush1.msra.mxu0 0.0
          %1702 = vmatprep.subr.mxu0 0.0
          %1703 = vmatpush1.msra.mxu0 0.0
          %1704 = vmatprep.subr.mxu0 0.0
          %1705 = vmatpush1.msra.mxu0 0.0
          %1706 = vmatprep.subr.mxu0 0.0
          %1707 = vmatpush1.msra.mxu0 0.0
          %1708 = vmatprep.subr.mxu0 0.0
          %1709 = vmatpush1.msra.mxu0 0.0
          %1710 = vmatprep.subr.mxu0 0.0
          %v1711 = vand.u32 %v1418, 4294901760
          %1712 = vmatpush1.msra.mxu0 %v1711
          %1713 = vmatprep.subr.mxu0 0.0
          %v1714 = vand.u32 %v1417, 4294901760
          %1715 = vmatpush1.msra.mxu0 %v1714
          %1716 = vmatprep.subr.mxu0 0.0
          %1717 = vmatpush2.msra.mxu0 0.0
          %1718 = vmatprep.subr.mxu0 0.0
          %1719 = vmatpush2.msra.mxu0 0.0
          %1720 = vmatprep.subr.mxu0 0.0
          %1721 = vmatpush2.msra.mxu0 0.0
          %1722 = vmatprep.subr.mxu0 0.0
          %1723 = vmatpush2.msra.mxu0 0.0
          %1724 = vmatprep.subr.mxu0 0.0
          %1725 = vmatpush2.msra.mxu0 0.0
          %1726 = vmatprep.subr.mxu0 0.0
          %1727 = vmatpush2.msra.mxu0 0.0
          %1728 = vmatprep.subr.mxu0 0.0
          %1729 = vmatpush2.msra.mxu0 0.0
          %1730 = vmatprep.subr.mxu0 0.0
          %1731 = vmatpush2.msra.mxu0 0.0
          %1732 = vmatprep.subr.mxu0 0.0
          %1733 = vmatpush2.msra.mxu0 0.0
          %1734 = vmatprep.subr.mxu0 0.0
          %1735 = vmatpush2.msra.mxu0 0.0
          %1736 = vmatprep.subr.mxu0 0.0
          %1737 = vmatpush2.msra.mxu0 0.0
          %1738 = vmatprep.subr.mxu0 0.0
          %1739 = vmatpush2.msra.mxu0 0.0
          %1740 = vmatprep.subr.mxu0 0.0
          %1741 = vmatpush2.msra.mxu0 0.0
          %1742 = vmatprep.subr.mxu0 0.0
          %1743 = vmatpush2.msra.mxu0 0.0
          %1744 = vmatprep.subr.mxu0 0.0
          %1745 = vmatpush2.msra.mxu0 0.0
          %1746 = vmatprep.subr.mxu0 0.0
          %1747 = vmatpush2.msra.mxu0 0.0
          %1748 = vmatprep.mubr.f32.mxu0 0.0
          %v1749 = vand.u32 %v1420, 4294901760
          %v1750 = vsub.f32 %v1420, %v1749
          %v1751 = vand.u32 %v1750, 4294901760
          %1752 = vmatmul.mubr.f32.gmra.mxu0 %v1751
          %v1753 = vpop.f32.mrf.mxu0
          %v1754 = vadd.f32 %v1672, %v1753
          %v1755 = vpop.f32.mrf.mxu0
          %1756 = vmatprep.mubr.f32.mxu0 0.0
          %v1757 = vand.u32 %v1423, 4294901760
          %v1758 = vsub.f32 %v1423, %v1757
          %v1759 = vand.u32 %v1758, 4294901760
          %1760 = vmatmul.mubr.f32.gmra.mxu0 %v1759
          %v1761 = vpop.f32.mrf.mxu0
          %v1762 = vadd.f32 %v1679, %v1761
          %v1763 = vpop.f32.mrf.mxu0
          %1764 = vdwg.mxu0
          %1765 = vmatprep.subr.mxu0 0.0
          %1766 = vmatpush1.msra.mxu0 0.0
          %1767 = vmatprep.subr.mxu0 0.0
          %1768 = vmatpush1.msra.mxu0 0.0
          %1769 = vmatprep.subr.mxu0 0.0
          %1770 = vmatpush1.msra.mxu0 0.0
          %1771 = vmatprep.subr.mxu0 0.0
          %1772 = vmatpush1.msra.mxu0 0.0
          %1773 = vmatprep.subr.mxu0 0.0
          %1774 = vmatpush1.msra.mxu0 0.0
          %1775 = vmatprep.subr.mxu0 0.0
          %1776 = vmatpush1.msra.mxu0 0.0
          %1777 = vmatprep.subr.mxu0 0.0
          %1778 = vmatpush1.msra.mxu0 0.0
          %1779 = vmatprep.subr.mxu0 0.0
          %1780 = vmatpush1.msra.mxu0 0.0
          %1781 = vmatprep.subr.mxu0 0.0
          %1782 = vmatpush1.msra.mxu0 0.0
          %1783 = vmatprep.subr.mxu0 0.0
          %1784 = vmatpush1.msra.mxu0 0.0
          %1785 = vmatprep.subr.mxu0 0.0
          %1786 = vmatpush1.msra.mxu0 0.0
          %1787 = vmatprep.subr.mxu0 0.0
          %1788 = vmatpush1.msra.mxu0 0.0
          %1789 = vmatprep.subr.mxu0 0.0
          %1790 = vmatpush1.msra.mxu0 0.0
          %1791 = vmatprep.subr.mxu0 0.0
          %1792 = vmatpush1.msra.mxu0 0.0
          %1793 = vmatprep.subr.mxu0 0.0
          %v1794 = vand.u32 %v1418, 4294901760
          %v1795 = vsub.f32 %v1418, %v1794
          %v1796 = vand.u32 %v1795, 4294901760
          %1797 = vmatpush1.msra.mxu0 %v1796
          %1798 = vmatprep.subr.mxu0 0.0
          %v1799 = vand.u32 %v1417, 4294901760
          %v1800 = vsub.f32 %v1417, %v1799
          %v1801 = vand.u32 %v1800, 4294901760
          %1802 = vmatpush1.msra.mxu0 %v1801
          %1803 = vmatprep.subr.mxu0 0.0
          %1804 = vmatpush2.msra.mxu0 0.0
          %1805 = vmatprep.subr.mxu0 0.0
          %1806 = vmatpush2.msra.mxu0 0.0
          %1807 = vmatprep.subr.mxu0 0.0
          %1808 = vmatpush2.msra.mxu0 0.0
          %1809 = vmatprep.subr.mxu0 0.0
          %1810 = vmatpush2.msra.mxu0 0.0
          %1811 = vmatprep.subr.mxu0 0.0
          %1812 = vmatpush2.msra.mxu0 0.0
          %1813 = vmatprep.subr.mxu0 0.0
          %1814 = vmatpush2.msra.mxu0 0.0
          %1815 = vmatprep.subr.mxu0 0.0
          %1816 = vmatpush2.msra.mxu0 0.0
          %1817 = vmatprep.subr.mxu0 0.0
          %1818 = vmatpush2.msra.mxu0 0.0
          %1819 = vmatprep.subr.mxu0 0.0
          %1820 = vmatpush2.msra.mxu0 0.0
          %1821 = vmatprep.subr.mxu0 0.0
          %1822 = vmatpush2.msra.mxu0 0.0
          %1823 = vmatprep.subr.mxu0 0.0
          %1824 = vmatpush2.msra.mxu0 0.0
          %1825 = vmatprep.subr.mxu0 0.0
          %1826 = vmatpush2.msra.mxu0 0.0
          %1827 = vmatprep.subr.mxu0 0.0
          %1828 = vmatpush2.msra.mxu0 0.0
          %1829 = vmatprep.subr.mxu0 0.0
          %1830 = vmatpush2.msra.mxu0 0.0
          %1831 = vmatprep.subr.mxu0 0.0
          %1832 = vmatpush2.msra.mxu0 0.0
          %1833 = vmatprep.subr.mxu0 0.0
          %1834 = vmatpush2.msra.mxu0 0.0
          %1835 = vmatprep.mubr.f32.mxu0 0.0
          %v1836 = vand.u32 %v1420, 4294901760
          %1837 = vmatmul.mubr.f32.gmra.mxu0 %v1836
          %v1838 = vpop.f32.mrf.mxu0
          %v1839 = vadd.f32 %v1754, %v1838
          %v1840 = vpop.f32.mrf.mxu0
          %1841 = vmatprep.mubr.f32.mxu0 0.0
          %v1842 = vand.u32 %v1423, 4294901760
          %1843 = vmatmul.mubr.f32.gmra.mxu0 %v1842
          %v1844 = vpop.f32.mrf.mxu0
          %v1845 = vadd.f32 %v1762, %v1844
          %v1846 = vpop.f32.mrf.mxu0
          %1847 = vdwg.mxu0
          %1848 = vmatprep.subr.mxu0 0.0
          %1849 = vmatpush1.msra.mxu0 0.0
          %1850 = vmatprep.subr.mxu0 0.0
          %1851 = vmatpush1.msra.mxu0 0.0
          %1852 = vmatprep.subr.mxu0 0.0
          %1853 = vmatpush1.msra.mxu0 0.0
          %1854 = vmatprep.subr.mxu0 0.0
          %1855 = vmatpush1.msra.mxu0 0.0
          %1856 = vmatprep.subr.mxu0 0.0
          %1857 = vmatpush1.msra.mxu0 0.0
          %1858 = vmatprep.subr.mxu0 0.0
          %1859 = vmatpush1.msra.mxu0 0.0
          %1860 = vmatprep.subr.mxu0 0.0
          %1861 = vmatpush1.msra.mxu0 0.0
          %1862 = vmatprep.subr.mxu0 0.0
          %1863 = vmatpush1.msra.mxu0 0.0
          %1864 = vmatprep.subr.mxu0 0.0
          %1865 = vmatpush1.msra.mxu0 0.0
          %1866 = vmatprep.subr.mxu0 0.0
          %1867 = vmatpush1.msra.mxu0 0.0
          %1868 = vmatprep.subr.mxu0 0.0
          %1869 = vmatpush1.msra.mxu0 0.0
          %1870 = vmatprep.subr.mxu0 0.0
          %1871 = vmatpush1.msra.mxu0 0.0
          %1872 = vmatprep.subr.mxu0 0.0
          %1873 = vmatpush1.msra.mxu0 0.0
          %1874 = vmatprep.subr.mxu0 0.0
          %1875 = vmatpush1.msra.mxu0 0.0
          %1876 = vmatprep.subr.mxu0 0.0
          %v1877 = vand.u32 %v1418, 4294901760
          %1878 = vmatpush1.msra.mxu0 %v1877
          %1879 = vmatprep.subr.mxu0 0.0
          %v1880 = vand.u32 %v1417, 4294901760
          %1881 = vmatpush1.msra.mxu0 %v1880
          %1882 = vmatprep.subr.mxu0 0.0
          %1883 = vmatpush2.msra.mxu0 0.0
          %1884 = vmatprep.subr.mxu0 0.0
          %1885 = vmatpush2.msra.mxu0 0.0
          %1886 = vmatprep.subr.mxu0 0.0
          %1887 = vmatpush2.msra.mxu0 0.0
          %1888 = vmatprep.subr.mxu0 0.0
          %1889 = vmatpush2.msra.mxu0 0.0
          %1890 = vmatprep.subr.mxu0 0.0
          %1891 = vmatpush2.msra.mxu0 0.0
          %1892 = vmatprep.subr.mxu0 0.0
          %1893 = vmatpush2.msra.mxu0 0.0
          %1894 = vmatprep.subr.mxu0 0.0
          %1895 = vmatpush2.msra.mxu0 0.0
          %1896 = vmatprep.subr.mxu0 0.0
          %1897 = vmatpush2.msra.mxu0 0.0
          %1898 = vmatprep.subr.mxu0 0.0
          %1899 = vmatpush2.msra.mxu0 0.0
          %1900 = vmatprep.subr.mxu0 0.0
          %1901 = vmatpush2.msra.mxu0 0.0
          %1902 = vmatprep.subr.mxu0 0.0
          %1903 = vmatpush2.msra.mxu0 0.0
          %1904 = vmatprep.subr.mxu0 0.0
          %1905 = vmatpush2.msra.mxu0 0.0
          %1906 = vmatprep.subr.mxu0 0.0
          %1907 = vmatpush2.msra.mxu0 0.0
          %1908 = vmatprep.subr.mxu0 0.0
          %1909 = vmatpush2.msra.mxu0 0.0
          %1910 = vmatprep.subr.mxu0 0.0
          %1911 = vmatpush2.msra.mxu0 0.0
          %1912 = vmatprep.subr.mxu0 0.0
          %1913 = vmatpush2.msra.mxu0 0.0
          %1914 = vmatprep.mubr.f32.mxu0 0.0
          %v1915 = vand.u32 %v1420, 4294901760
          %1916 = vmatmul.mubr.f32.gmra.mxu0 %v1915
          %v1917 = vpop.f32.mrf.mxu0
          %v1918 = vadd.f32 %v1839, %v1917
          %v1919 = vpop.f32.mrf.mxu0
          %1920 = vmatprep.mubr.f32.mxu0 0.0
          %v1921 = vand.u32 %v1423, 4294901760
          %1922 = vmatmul.mubr.f32.gmra.mxu0 %v1921
          %v1923 = vpop.f32.mrf.mxu0
          %v1924 = vadd.f32 %v1845, %v1923
          %v1925 = vpop.f32.mrf.mxu0
          %1926 = vdwg.mxu0
          %v1927 = vld [vmem:[#allocation11] sm:$0xff]
          %v1928 = vld [vmem:[#allocation11 + $0x8] sm:$0xff]
          %v1930 = vsel %vm394, %v1927, 0
          %v1933 = vsel %vm394, %v1928, 0
          %1935 = vmatprep.subr.mxu0 0.0
          %1936 = vmatpush1.msra.mxu0 0.0
          %1937 = vmatprep.subr.mxu0 0.0
          %1938 = vmatpush1.msra.mxu0 0.0
          %1939 = vmatprep.subr.mxu0 0.0
          %1940 = vmatpush1.msra.mxu0 0.0
          %1941 = vmatprep.subr.mxu0 0.0
          %1942 = vmatpush1.msra.mxu0 0.0
          %1943 = vmatprep.subr.mxu0 0.0
          %1944 = vmatpush1.msra.mxu0 0.0
          %1945 = vmatprep.subr.mxu0 0.0
          %1946 = vmatpush1.msra.mxu0 0.0
          %1947 = vmatprep.subr.mxu0 0.0
          %1948 = vmatpush1.msra.mxu0 0.0
          %1949 = vmatprep.subr.mxu0 0.0
          %1950 = vmatpush1.msra.mxu0 0.0
          %1951 = vmatprep.subr.mxu0 0.0
          %1952 = vmatpush1.msra.mxu0 0.0
          %1953 = vmatprep.subr.mxu0 0.0
          %1954 = vmatpush1.msra.mxu0 0.0
          %1955 = vmatprep.subr.mxu0 0.0
          %1956 = vmatpush1.msra.mxu0 0.0
          %1957 = vmatprep.subr.mxu0 0.0
          %1958 = vmatpush1.msra.mxu0 0.0
          %1959 = vmatprep.subr.mxu0 0.0
          %1960 = vmatpush1.msra.mxu0 0.0
          %1961 = vmatprep.subr.mxu0 0.0
          %1962 = vmatpush1.msra.mxu0 0.0
          %1963 = vmatprep.subr.mxu0 0.0
          %v1964 = vand.u32 %v1924, 4294901760
          %1965 = vmatpush1.msra.mxu0 %v1964
          %1966 = vmatprep.subr.mxu0 0.0
          %v1967 = vand.u32 %v1918, 4294901760
          %1968 = vmatpush1.msra.mxu0 %v1967
          %1969 = vmatprep.subr.mxu0 0.0
          %1970 = vmatpush2.msra.mxu0 0.0
          %1971 = vmatprep.subr.mxu0 0.0
          %1972 = vmatpush2.msra.mxu0 0.0
          %1973 = vmatprep.subr.mxu0 0.0
          %1974 = vmatpush2.msra.mxu0 0.0
          %1975 = vmatprep.subr.mxu0 0.0
          %1976 = vmatpush2.msra.mxu0 0.0
          %1977 = vmatprep.subr.mxu0 0.0
          %1978 = vmatpush2.msra.mxu0 0.0
          %1979 = vmatprep.subr.mxu0 0.0
          %1980 = vmatpush2.msra.mxu0 0.0
          %1981 = vmatprep.subr.mxu0 0.0
          %1982 = vmatpush2.msra.mxu0 0.0
          %1983 = vmatprep.subr.mxu0 0.0
          %1984 = vmatpush2.msra.mxu0 0.0
          %1985 = vmatprep.subr.mxu0 0.0
          %1986 = vmatpush2.msra.mxu0 0.0
          %1987 = vmatprep.subr.mxu0 0.0
          %1988 = vmatpush2.msra.mxu0 0.0
          %1989 = vmatprep.subr.mxu0 0.0
          %1990 = vmatpush2.msra.mxu0 0.0
          %1991 = vmatprep.subr.mxu0 0.0
          %1992 = vmatpush2.msra.mxu0 0.0
          %1993 = vmatprep.subr.mxu0 0.0
          %1994 = vmatpush2.msra.mxu0 0.0
          %1995 = vmatprep.subr.mxu0 0.0
          %1996 = vmatpush2.msra.mxu0 0.0
          %1997 = vmatprep.subr.mxu0 0.0
          %1998 = vmatpush2.msra.mxu0 0.0
          %1999 = vmatprep.subr.mxu0 0.0
          %2000 = vmatpush2.msra.mxu0 0.0
          %2001 = vmatprep.mubr.f32.mxu0 0.0
          %v2002 = vand.u32 %v1930, 4294901760
          %v2003 = vsub.f32 %v1930, %v2002
          %v2004 = vand.u32 %v2003, 4294901760
          %v2005 = vsub.f32 %v2003, %v2004
          %v2006 = vand.u32 %v2005, 4294901760
          %2007 = vmatmul.mubr.f32.gmra.mxu0 %v2006
          %v2008 = vpop.f32.mrf.mxu0
          %v2009 = vadd.f32 0.0, %v2008
          %v2010 = vpop.f32.mrf.mxu0
          %2011 = vmatprep.mubr.f32.mxu0 0.0
          %v2012 = vand.u32 %v1933, 4294901760
          %v2013 = vsub.f32 %v1933, %v2012
          %v2014 = vand.u32 %v2013, 4294901760
          %v2015 = vsub.f32 %v2013, %v2014
          %v2016 = vand.u32 %v2015, 4294901760
          %2017 = vmatmul.mubr.f32.gmra.mxu0 %v2016
          %v2018 = vpop.f32.mrf.mxu0
          %v2019 = vadd.f32 0.0, %v2018
          %v2020 = vpop.f32.mrf.mxu0
          %2021 = vdwg.mxu0
          %2022 = vmatprep.subr.mxu0 0.0
          %2023 = vmatpush1.msra.mxu0 0.0
          %2024 = vmatprep.subr.mxu0 0.0
          %2025 = vmatpush1.msra.mxu0 0.0
          %2026 = vmatprep.subr.mxu0 0.0
          %2027 = vmatpush1.msra.mxu0 0.0
          %2028 = vmatprep.subr.mxu0 0.0
          %2029 = vmatpush1.msra.mxu0 0.0
          %2030 = vmatprep.subr.mxu0 0.0
          %2031 = vmatpush1.msra.mxu0 0.0
          %2032 = vmatprep.subr.mxu0 0.0
          %2033 = vmatpush1.msra.mxu0 0.0
          %2034 = vmatprep.subr.mxu0 0.0
          %2035 = vmatpush1.msra.mxu0 0.0
          %2036 = vmatprep.subr.mxu0 0.0
          %2037 = vmatpush1.msra.mxu0 0.0
          %2038 = vmatprep.subr.mxu0 0.0
          %2039 = vmatpush1.msra.mxu0 0.0
          %2040 = vmatprep.subr.mxu0 0.0
          %2041 = vmatpush1.msra.mxu0 0.0
          %2042 = vmatprep.subr.mxu0 0.0
          %2043 = vmatpush1.msra.mxu0 0.0
          %2044 = vmatprep.subr.mxu0 0.0
          %2045 = vmatpush1.msra.mxu0 0.0
          %2046 = vmatprep.subr.mxu0 0.0
          %2047 = vmatpush1.msra.mxu0 0.0
          %2048 = vmatprep.subr.mxu0 0.0
          %2049 = vmatpush1.msra.mxu0 0.0
          %2050 = vmatprep.subr.mxu0 0.0
          %v2051 = vand.u32 %v1924, 4294901760
          %v2052 = vsub.f32 %v1924, %v2051
          %v2053 = vand.u32 %v2052, 4294901760
          %v2054 = vsub.f32 %v2052, %v2053
          %v2055 = vand.u32 %v2054, 4294901760
          %2056 = vmatpush1.msra.mxu0 %v2055
          %2057 = vmatprep.subr.mxu0 0.0
          %v2058 = vand.u32 %v1918, 4294901760
          %v2059 = vsub.f32 %v1918, %v2058
          %v2060 = vand.u32 %v2059, 4294901760
          %v2061 = vsub.f32 %v2059, %v2060
          %v2062 = vand.u32 %v2061, 4294901760
          %2063 = vmatpush1.msra.mxu0 %v2062
          %2064 = vmatprep.subr.mxu0 0.0
          %2065 = vmatpush2.msra.mxu0 0.0
          %2066 = vmatprep.subr.mxu0 0.0
          %2067 = vmatpush2.msra.mxu0 0.0
          %2068 = vmatprep.subr.mxu0 0.0
          %2069 = vmatpush2.msra.mxu0 0.0
          %2070 = vmatprep.subr.mxu0 0.0
          %2071 = vmatpush2.msra.mxu0 0.0
          %2072 = vmatprep.subr.mxu0 0.0
          %2073 = vmatpush2.msra.mxu0 0.0
          %2074 = vmatprep.subr.mxu0 0.0
          %2075 = vmatpush2.msra.mxu0 0.0
          %2076 = vmatprep.subr.mxu0 0.0
          %2077 = vmatpush2.msra.mxu0 0.0
          %2078 = vmatprep.subr.mxu0 0.0
          %2079 = vmatpush2.msra.mxu0 0.0
          %2080 = vmatprep.subr.mxu0 0.0
          %2081 = vmatpush2.msra.mxu0 0.0
          %2082 = vmatprep.subr.mxu0 0.0
          %2083 = vmatpush2.msra.mxu0 0.0
          %2084 = vmatprep.subr.mxu0 0.0
          %2085 = vmatpush2.msra.mxu0 0.0
          %2086 = vmatprep.subr.mxu0 0.0
          %2087 = vmatpush2.msra.mxu0 0.0
          %2088 = vmatprep.subr.mxu0 0.0
          %2089 = vmatpush2.msra.mxu0 0.0
          %2090 = vmatprep.subr.mxu0 0.0
          %2091 = vmatpush2.msra.mxu0 0.0
          %2092 = vmatprep.subr.mxu0 0.0
          %2093 = vmatpush2.msra.mxu0 0.0
          %2094 = vmatprep.subr.mxu0 0.0
          %2095 = vmatpush2.msra.mxu0 0.0
          %2096 = vmatprep.mubr.f32.mxu0 0.0
          %v2097 = vand.u32 %v1930, 4294901760
          %2098 = vmatmul.mubr.f32.gmra.mxu0 %v2097
          %v2099 = vpop.f32.mrf.mxu0
          %v2100 = vadd.f32 %v2009, %v2099
          %v2101 = vpop.f32.mrf.mxu0
          %2102 = vmatprep.mubr.f32.mxu0 0.0
          %v2103 = vand.u32 %v1933, 4294901760
          %2104 = vmatmul.mubr.f32.gmra.mxu0 %v2103
          %v2105 = vpop.f32.mrf.mxu0
          %v2106 = vadd.f32 %v2019, %v2105
          %v2107 = vpop.f32.mrf.mxu0
          %2108 = vdwg.mxu0
          %2109 = vmatprep.subr.mxu0 0.0
          %2110 = vmatpush1.msra.mxu0 0.0
          %2111 = vmatprep.subr.mxu0 0.0
          %2112 = vmatpush1.msra.mxu0 0.0
          %2113 = vmatprep.subr.mxu0 0.0
          %2114 = vmatpush1.msra.mxu0 0.0
          %2115 = vmatprep.subr.mxu0 0.0
          %2116 = vmatpush1.msra.mxu0 0.0
          %2117 = vmatprep.subr.mxu0 0.0
          %2118 = vmatpush1.msra.mxu0 0.0
          %2119 = vmatprep.subr.mxu0 0.0
          %2120 = vmatpush1.msra.mxu0 0.0
          %2121 = vmatprep.subr.mxu0 0.0
          %2122 = vmatpush1.msra.mxu0 0.0
          %2123 = vmatprep.subr.mxu0 0.0
          %2124 = vmatpush1.msra.mxu0 0.0
          %2125 = vmatprep.subr.mxu0 0.0
          %2126 = vmatpush1.msra.mxu0 0.0
          %2127 = vmatprep.subr.mxu0 0.0
          %2128 = vmatpush1.msra.mxu0 0.0
          %2129 = vmatprep.subr.mxu0 0.0
          %2130 = vmatpush1.msra.mxu0 0.0
          %2131 = vmatprep.subr.mxu0 0.0
          %2132 = vmatpush1.msra.mxu0 0.0
          %2133 = vmatprep.subr.mxu0 0.0
          %2134 = vmatpush1.msra.mxu0 0.0
          %2135 = vmatprep.subr.mxu0 0.0
          %2136 = vmatpush1.msra.mxu0 0.0
          %2137 = vmatprep.subr.mxu0 0.0
          %v2138 = vand.u32 %v1924, 4294901760
          %v2139 = vsub.f32 %v1924, %v2138
          %2140 = vmatpush1.msra.mxu0 %v2139
          %2141 = vmatprep.subr.mxu0 0.0
          %v2142 = vand.u32 %v1918, 4294901760
          %v2143 = vsub.f32 %v1918, %v2142
          %2144 = vmatpush1.msra.mxu0 %v2143
          %2145 = vmatprep.subr.mxu0 0.0
          %2146 = vmatpush2.msra.mxu0 0.0
          %2147 = vmatprep.subr.mxu0 0.0
          %2148 = vmatpush2.msra.mxu0 0.0
          %2149 = vmatprep.subr.mxu0 0.0
          %2150 = vmatpush2.msra.mxu0 0.0
          %2151 = vmatprep.subr.mxu0 0.0
          %2152 = vmatpush2.msra.mxu0 0.0
          %2153 = vmatprep.subr.mxu0 0.0
          %2154 = vmatpush2.msra.mxu0 0.0
          %2155 = vmatprep.subr.mxu0 0.0
          %2156 = vmatpush2.msra.mxu0 0.0
          %2157 = vmatprep.subr.mxu0 0.0
          %2158 = vmatpush2.msra.mxu0 0.0
          %2159 = vmatprep.subr.mxu0 0.0
          %2160 = vmatpush2.msra.mxu0 0.0
          %2161 = vmatprep.subr.mxu0 0.0
          %2162 = vmatpush2.msra.mxu0 0.0
          %2163 = vmatprep.subr.mxu0 0.0
          %2164 = vmatpush2.msra.mxu0 0.0
          %2165 = vmatprep.subr.mxu0 0.0
          %2166 = vmatpush2.msra.mxu0 0.0
          %2167 = vmatprep.subr.mxu0 0.0
          %2168 = vmatpush2.msra.mxu0 0.0
          %2169 = vmatprep.subr.mxu0 0.0
          %2170 = vmatpush2.msra.mxu0 0.0
          %2171 = vmatprep.subr.mxu0 0.0
          %2172 = vmatpush2.msra.mxu0 0.0
          %2173 = vmatprep.subr.mxu0 0.0
          %2174 = vmatpush2.msra.mxu0 0.0
          %2175 = vmatprep.subr.mxu0 0.0
          %2176 = vmatpush2.msra.mxu0 0.0
          %2177 = vmatprep.mubr.f32.mxu0 0.0
          %v2178 = vand.u32 %v1930, 4294901760
          %v2179 = vsub.f32 %v1930, %v2178
          %2180 = vmatmul.mubr.f32.gmra.mxu0 %v2179
          %v2181 = vpop.f32.mrf.mxu0
          %v2182 = vadd.f32 %v2100, %v2181
          %v2183 = vpop.f32.mrf.mxu0
          %2184 = vmatprep.mubr.f32.mxu0 0.0
          %v2185 = vand.u32 %v1933, 4294901760
          %v2186 = vsub.f32 %v1933, %v2185
          %2187 = vmatmul.mubr.f32.gmra.mxu0 %v2186
          %v2188 = vpop.f32.mrf.mxu0
          %v2189 = vadd.f32 %v2106, %v2188
          %v2190 = vpop.f32.mrf.mxu0
          %2191 = vdwg.mxu0
          %2192 = vmatprep.subr.mxu0 0.0
          %2193 = vmatpush1.msra.mxu0 0.0
          %2194 = vmatprep.subr.mxu0 0.0
          %2195 = vmatpush1.msra.mxu0 0.0
          %2196 = vmatprep.subr.mxu0 0.0
          %2197 = vmatpush1.msra.mxu0 0.0
          %2198 = vmatprep.subr.mxu0 0.0
          %2199 = vmatpush1.msra.mxu0 0.0
          %2200 = vmatprep.subr.mxu0 0.0
          %2201 = vmatpush1.msra.mxu0 0.0
          %2202 = vmatprep.subr.mxu0 0.0
          %2203 = vmatpush1.msra.mxu0 0.0
          %2204 = vmatprep.subr.mxu0 0.0
          %2205 = vmatpush1.msra.mxu0 0.0
          %2206 = vmatprep.subr.mxu0 0.0
          %2207 = vmatpush1.msra.mxu0 0.0
          %2208 = vmatprep.subr.mxu0 0.0
          %2209 = vmatpush1.msra.mxu0 0.0
          %2210 = vmatprep.subr.mxu0 0.0
          %2211 = vmatpush1.msra.mxu0 0.0
          %2212 = vmatprep.subr.mxu0 0.0
          %2213 = vmatpush1.msra.mxu0 0.0
          %2214 = vmatprep.subr.mxu0 0.0
          %2215 = vmatpush1.msra.mxu0 0.0
          %2216 = vmatprep.subr.mxu0 0.0
          %2217 = vmatpush1.msra.mxu0 0.0
          %2218 = vmatprep.subr.mxu0 0.0
          %2219 = vmatpush1.msra.mxu0 0.0
          %2220 = vmatprep.subr.mxu0 0.0
          %v2221 = vand.u32 %v1924, 4294901760
          %2222 = vmatpush1.msra.mxu0 %v2221
          %2223 = vmatprep.subr.mxu0 0.0
          %v2224 = vand.u32 %v1918, 4294901760
          %2225 = vmatpush1.msra.mxu0 %v2224
          %2226 = vmatprep.subr.mxu0 0.0
          %2227 = vmatpush2.msra.mxu0 0.0
          %2228 = vmatprep.subr.mxu0 0.0
          %2229 = vmatpush2.msra.mxu0 0.0
          %2230 = vmatprep.subr.mxu0 0.0
          %2231 = vmatpush2.msra.mxu0 0.0
          %2232 = vmatprep.subr.mxu0 0.0
          %2233 = vmatpush2.msra.mxu0 0.0
          %2234 = vmatprep.subr.mxu0 0.0
          %2235 = vmatpush2.msra.mxu0 0.0
          %2236 = vmatprep.subr.mxu0 0.0
          %2237 = vmatpush2.msra.mxu0 0.0
          %2238 = vmatprep.subr.mxu0 0.0
          %2239 = vmatpush2.msra.mxu0 0.0
          %2240 = vmatprep.subr.mxu0 0.0
          %2241 = vmatpush2.msra.mxu0 0.0
          %2242 = vmatprep.subr.mxu0 0.0
          %2243 = vmatpush2.msra.mxu0 0.0
          %2244 = vmatprep.subr.mxu0 0.0
          %2245 = vmatpush2.msra.mxu0 0.0
          %2246 = vmatprep.subr.mxu0 0.0
          %2247 = vmatpush2.msra.mxu0 0.0
          %2248 = vmatprep.subr.mxu0 0.0
          %2249 = vmatpush2.msra.mxu0 0.0
          %2250 = vmatprep.subr.mxu0 0.0
          %2251 = vmatpush2.msra.mxu0 0.0
          %2252 = vmatprep.subr.mxu0 0.0
          %2253 = vmatpush2.msra.mxu0 0.0
          %2254 = vmatprep.subr.mxu0 0.0
          %2255 = vmatpush2.msra.mxu0 0.0
          %2256 = vmatprep.subr.mxu0 0.0
          %2257 = vmatpush2.msra.mxu0 0.0
          %2258 = vmatprep.mubr.f32.mxu0 0.0
          %v2259 = vand.u32 %v1930, 4294901760
          %v2260 = vsub.f32 %v1930, %v2259
          %v2261 = vand.u32 %v2260, 4294901760
          %2262 = vmatmul.mubr.f32.gmra.mxu0 %v2261
          %v2263 = vpop.f32.mrf.mxu0
          %v2264 = vadd.f32 %v2182, %v2263
          %v2265 = vpop.f32.mrf.mxu0
          %2266 = vmatprep.mubr.f32.mxu0 0.0
          %v2267 = vand.u32 %v1933, 4294901760
          %v2268 = vsub.f32 %v1933, %v2267
          %v2269 = vand.u32 %v2268, 4294901760
          %2270 = vmatmul.mubr.f32.gmra.mxu0 %v2269
          %v2271 = vpop.f32.mrf.mxu0
          %v2272 = vadd.f32 %v2189, %v2271
          %v2273 = vpop.f32.mrf.mxu0
          %2274 = vdwg.mxu0
          %2275 = vmatprep.subr.mxu0 0.0
          %2276 = vmatpush1.msra.mxu0 0.0
          %2277 = vmatprep.subr.mxu0 0.0
          %2278 = vmatpush1.msra.mxu0 0.0
          %2279 = vmatprep.subr.mxu0 0.0
          %2280 = vmatpush1.msra.mxu0 0.0
          %2281 = vmatprep.subr.mxu0 0.0
          %2282 = vmatpush1.msra.mxu0 0.0
          %2283 = vmatprep.subr.mxu0 0.0
          %2284 = vmatpush1.msra.mxu0 0.0
          %2285 = vmatprep.subr.mxu0 0.0
          %2286 = vmatpush1.msra.mxu0 0.0
          %2287 = vmatprep.subr.mxu0 0.0
          %2288 = vmatpush1.msra.mxu0 0.0
          %2289 = vmatprep.subr.mxu0 0.0
          %2290 = vmatpush1.msra.mxu0 0.0
          %2291 = vmatprep.subr.mxu0 0.0
          %2292 = vmatpush1.msra.mxu0 0.0
          %2293 = vmatprep.subr.mxu0 0.0
          %2294 = vmatpush1.msra.mxu0 0.0
          %2295 = vmatprep.subr.mxu0 0.0
          %2296 = vmatpush1.msra.mxu0 0.0
          %2297 = vmatprep.subr.mxu0 0.0
          %2298 = vmatpush1.msra.mxu0 0.0
          %2299 = vmatprep.subr.mxu0 0.0
          %2300 = vmatpush1.msra.mxu0 0.0
          %2301 = vmatprep.subr.mxu0 0.0
          %2302 = vmatpush1.msra.mxu0 0.0
          %2303 = vmatprep.subr.mxu0 0.0
          %v2304 = vand.u32 %v1924, 4294901760
          %v2305 = vsub.f32 %v1924, %v2304
          %v2306 = vand.u32 %v2305, 4294901760
          %2307 = vmatpush1.msra.mxu0 %v2306
          %2308 = vmatprep.subr.mxu0 0.0
          %v2309 = vand.u32 %v1918, 4294901760
          %v2310 = vsub.f32 %v1918, %v2309
          %v2311 = vand.u32 %v2310, 4294901760
          %2312 = vmatpush1.msra.mxu0 %v2311
          %2313 = vmatprep.subr.mxu0 0.0
          %2314 = vmatpush2.msra.mxu0 0.0
          %2315 = vmatprep.subr.mxu0 0.0
          %2316 = vmatpush2.msra.mxu0 0.0
          %2317 = vmatprep.subr.mxu0 0.0
          %2318 = vmatpush2.msra.mxu0 0.0
          %2319 = vmatprep.subr.mxu0 0.0
          %2320 = vmatpush2.msra.mxu0 0.0
          %2321 = vmatprep.subr.mxu0 0.0
          %2322 = vmatpush2.msra.mxu0 0.0
          %2323 = vmatprep.subr.mxu0 0.0
          %2324 = vmatpush2.msra.mxu0 0.0
          %2325 = vmatprep.subr.mxu0 0.0
          %2326 = vmatpush2.msra.mxu0 0.0
          %2327 = vmatprep.subr.mxu0 0.0
          %2328 = vmatpush2.msra.mxu0 0.0
          %2329 = vmatprep.subr.mxu0 0.0
          %2330 = vmatpush2.msra.mxu0 0.0
          %2331 = vmatprep.subr.mxu0 0.0
          %2332 = vmatpush2.msra.mxu0 0.0
          %2333 = vmatprep.subr.mxu0 0.0
          %2334 = vmatpush2.msra.mxu0 0.0
          %2335 = vmatprep.subr.mxu0 0.0
          %2336 = vmatpush2.msra.mxu0 0.0
          %2337 = vmatprep.subr.mxu0 0.0
          %2338 = vmatpush2.msra.mxu0 0.0
          %2339 = vmatprep.subr.mxu0 0.0
          %2340 = vmatpush2.msra.mxu0 0.0
          %2341 = vmatprep.subr.mxu0 0.0
          %2342 = vmatpush2.msra.mxu0 0.0
          %2343 = vmatprep.subr.mxu0 0.0
          %2344 = vmatpush2.msra.mxu0 0.0
          %2345 = vmatprep.mubr.f32.mxu0 0.0
          %v2346 = vand.u32 %v1930, 4294901760
          %2347 = vmatmul.mubr.f32.gmra.mxu0 %v2346
          %v2348 = vpop.f32.mrf.mxu0
          %v2349 = vadd.f32 %v2264, %v2348
          %v2350 = vpop.f32.mrf.mxu0
          %2351 = vmatprep.mubr.f32.mxu0 0.0
          %v2352 = vand.u32 %v1933, 4294901760
          %2353 = vmatmul.mubr.f32.gmra.mxu0 %v2352
          %v2354 = vpop.f32.mrf.mxu0
          %v2355 = vadd.f32 %v2272, %v2354
          %v2356 = vpop.f32.mrf.mxu0
          %2357 = vdwg.mxu0
          %2358 = vmatprep.subr.mxu0 0.0
          %2359 = vmatpush1.msra.mxu0 0.0
          %2360 = vmatprep.subr.mxu0 0.0
          %2361 = vmatpush1.msra.mxu0 0.0
          %2362 = vmatprep.subr.mxu0 0.0
          %2363 = vmatpush1.msra.mxu0 0.0
          %2364 = vmatprep.subr.mxu0 0.0
          %2365 = vmatpush1.msra.mxu0 0.0
          %2366 = vmatprep.subr.mxu0 0.0
          %2367 = vmatpush1.msra.mxu0 0.0
          %2368 = vmatprep.subr.mxu0 0.0
          %2369 = vmatpush1.msra.mxu0 0.0
          %2370 = vmatprep.subr.mxu0 0.0
          %2371 = vmatpush1.msra.mxu0 0.0
          %2372 = vmatprep.subr.mxu0 0.0
          %2373 = vmatpush1.msra.mxu0 0.0
          %2374 = vmatprep.subr.mxu0 0.0
          %2375 = vmatpush1.msra.mxu0 0.0
          %2376 = vmatprep.subr.mxu0 0.0
          %2377 = vmatpush1.msra.mxu0 0.0
          %2378 = vmatprep.subr.mxu0 0.0
          %2379 = vmatpush1.msra.mxu0 0.0
          %2380 = vmatprep.subr.mxu0 0.0
          %2381 = vmatpush1.msra.mxu0 0.0
          %2382 = vmatprep.subr.mxu0 0.0
          %2383 = vmatpush1.msra.mxu0 0.0
          %2384 = vmatprep.subr.mxu0 0.0
          %2385 = vmatpush1.msra.mxu0 0.0
          %2386 = vmatprep.subr.mxu0 0.0
          %v2387 = vand.u32 %v1924, 4294901760
          %2388 = vmatpush1.msra.mxu0 %v2387
          %2389 = vmatprep.subr.mxu0 0.0
          %v2390 = vand.u32 %v1918, 4294901760
          %2391 = vmatpush1.msra.mxu0 %v2390
          %2392 = vmatprep.subr.mxu0 0.0
          %2393 = vmatpush2.msra.mxu0 0.0
          %2394 = vmatprep.subr.mxu0 0.0
          %2395 = vmatpush2.msra.mxu0 0.0
          %2396 = vmatprep.subr.mxu0 0.0
          %2397 = vmatpush2.msra.mxu0 0.0
          %2398 = vmatprep.subr.mxu0 0.0
          %2399 = vmatpush2.msra.mxu0 0.0
          %2400 = vmatprep.subr.mxu0 0.0
          %2401 = vmatpush2.msra.mxu0 0.0
          %2402 = vmatprep.subr.mxu0 0.0
          %2403 = vmatpush2.msra.mxu0 0.0
          %2404 = vmatprep.subr.mxu0 0.0
          %2405 = vmatpush2.msra.mxu0 0.0
          %2406 = vmatprep.subr.mxu0 0.0
          %2407 = vmatpush2.msra.mxu0 0.0
          %2408 = vmatprep.subr.mxu0 0.0
          %2409 = vmatpush2.msra.mxu0 0.0
          %2410 = vmatprep.subr.mxu0 0.0
          %2411 = vmatpush2.msra.mxu0 0.0
          %2412 = vmatprep.subr.mxu0 0.0
          %2413 = vmatpush2.msra.mxu0 0.0
          %2414 = vmatprep.subr.mxu0 0.0
          %2415 = vmatpush2.msra.mxu0 0.0
          %2416 = vmatprep.subr.mxu0 0.0
          %2417 = vmatpush2.msra.mxu0 0.0
          %2418 = vmatprep.subr.mxu0 0.0
          %2419 = vmatpush2.msra.mxu0 0.0
          %2420 = vmatprep.subr.mxu0 0.0
          %2421 = vmatpush2.msra.mxu0 0.0
          %2422 = vmatprep.subr.mxu0 0.0
          %2423 = vmatpush2.msra.mxu0 0.0
          %2424 = vmatprep.mubr.f32.mxu0 0.0
          %v2425 = vand.u32 %v1930, 4294901760
          %2426 = vmatmul.mubr.f32.gmra.mxu0 %v2425
          %v2427 = vpop.f32.mrf.mxu0
          %v2428 = vadd.f32 %v2349, %v2427
          %v2429 = vpop.f32.mrf.mxu0
          %2430 = vmatprep.mubr.f32.mxu0 0.0
          %v2431 = vand.u32 %v1933, 4294901760
          %2432 = vmatmul.mubr.f32.gmra.mxu0 %v2431
          %v2433 = vpop.f32.mrf.mxu0
          %v2434 = vadd.f32 %v2355, %v2433
          %v2435 = vpop.f32.mrf.mxu0
          %2436 = vdwg.mxu0
          %s2437 = scalar_lea.vmem [#allocation3], %s1413
          %2438 = vst.msk [vmem:[%s2437] sm:$0xff] %vm394, %v2428
          %2439 = vst.msk [vmem:[%s2437 + $0x8] sm:$0xff] %vm394, %v2434
          %v2440 = vld [vmem:[#allocation12] sm:$0xff]
          %v2441 = vld [vmem:[#allocation12 + $0x8] sm:$0xff]
          %v2443 = vsel %vm394, %v373, 0
          %v2446 = vsel %vm394, %v374, 0
          %2448 = vmatprep.subr.mxu0 0.0
          %2449 = vmatpush1.msra.mxu0 0.0
          %2450 = vmatprep.subr.mxu0 0.0
          %2451 = vmatpush1.msra.mxu0 0.0
          %2452 = vmatprep.subr.mxu0 0.0
          %2453 = vmatpush1.msra.mxu0 0.0
          %2454 = vmatprep.subr.mxu0 0.0
          %2455 = vmatpush1.msra.mxu0 0.0
          %2456 = vmatprep.subr.mxu0 0.0
          %2457 = vmatpush1.msra.mxu0 0.0
          %2458 = vmatprep.subr.mxu0 0.0
          %2459 = vmatpush1.msra.mxu0 0.0
          %2460 = vmatprep.subr.mxu0 0.0
          %2461 = vmatpush1.msra.mxu0 0.0
          %2462 = vmatprep.subr.mxu0 0.0
          %2463 = vmatpush1.msra.mxu0 0.0
          %2464 = vmatprep.subr.mxu0 0.0
          %2465 = vmatpush1.msra.mxu0 0.0
          %2466 = vmatprep.subr.mxu0 0.0
          %2467 = vmatpush1.msra.mxu0 0.0
          %2468 = vmatprep.subr.mxu0 0.0
          %2469 = vmatpush1.msra.mxu0 0.0
          %2470 = vmatprep.subr.mxu0 0.0
          %2471 = vmatpush1.msra.mxu0 0.0
          %2472 = vmatprep.subr.mxu0 0.0
          %2473 = vmatpush1.msra.mxu0 0.0
          %2474 = vmatprep.subr.mxu0 0.0
          %2475 = vmatpush1.msra.mxu0 0.0
          %2476 = vmatprep.subr.mxu0 0.0
          %v2477 = vand.u32 %v2441, 4294901760
          %2478 = vmatpush1.msra.mxu0 %v2477
          %2479 = vmatprep.subr.mxu0 0.0
          %v2480 = vand.u32 %v2440, 4294901760
          %2481 = vmatpush1.msra.mxu0 %v2480
          %2482 = vmatprep.subr.mxu0 0.0
          %2483 = vmatpush2.msra.mxu0 0.0
          %2484 = vmatprep.subr.mxu0 0.0
          %2485 = vmatpush2.msra.mxu0 0.0
          %2486 = vmatprep.subr.mxu0 0.0
          %2487 = vmatpush2.msra.mxu0 0.0
          %2488 = vmatprep.subr.mxu0 0.0
          %2489 = vmatpush2.msra.mxu0 0.0
          %2490 = vmatprep.subr.mxu0 0.0
          %2491 = vmatpush2.msra.mxu0 0.0
          %2492 = vmatprep.subr.mxu0 0.0
          %2493 = vmatpush2.msra.mxu0 0.0
          %2494 = vmatprep.subr.mxu0 0.0
          %2495 = vmatpush2.msra.mxu0 0.0
          %2496 = vmatprep.subr.mxu0 0.0
          %2497 = vmatpush2.msra.mxu0 0.0
          %2498 = vmatprep.subr.mxu0 0.0
          %2499 = vmatpush2.msra.mxu0 0.0
          %2500 = vmatprep.subr.mxu0 0.0
          %2501 = vmatpush2.msra.mxu0 0.0
          %2502 = vmatprep.subr.mxu0 0.0
          %2503 = vmatpush2.msra.mxu0 0.0
          %2504 = vmatprep.subr.mxu0 0.0
          %2505 = vmatpush2.msra.mxu0 0.0
          %2506 = vmatprep.subr.mxu0 0.0
          %2507 = vmatpush2.msra.mxu0 0.0
          %2508 = vmatprep.subr.mxu0 0.0
          %2509 = vmatpush2.msra.mxu0 0.0
          %2510 = vmatprep.subr.mxu0 0.0
          %2511 = vmatpush2.msra.mxu0 0.0
          %2512 = vmatprep.subr.mxu0 0.0
          %2513 = vmatpush2.msra.mxu0 0.0
          %2514 = vmatprep.mubr.f32.mxu0 0.0
          %v2515 = vand.u32 %v2443, 4294901760
          %v2516 = vsub.f32 %v2443, %v2515
          %v2517 = vand.u32 %v2516, 4294901760
          %v2518 = vsub.f32 %v2516, %v2517
          %v2519 = vand.u32 %v2518, 4294901760
          %2520 = vmatmul.mubr.f32.gmra.mxu0 %v2519
          %v2521 = vpop.f32.mrf.mxu0
          %v2522 = vadd.f32 0.0, %v2521
          %v2523 = vpop.f32.mrf.mxu0
          %2524 = vmatprep.mubr.f32.mxu0 0.0
          %v2525 = vand.u32 %v2446, 4294901760
          %v2526 = vsub.f32 %v2446, %v2525
          %v2527 = vand.u32 %v2526, 4294901760
          %v2528 = vsub.f32 %v2526, %v2527
          %v2529 = vand.u32 %v2528, 4294901760
          %2530 = vmatmul.mubr.f32.gmra.mxu0 %v2529
          %v2531 = vpop.f32.mrf.mxu0
          %v2532 = vadd.f32 0.0, %v2531
          %v2533 = vpop.f32.mrf.mxu0
          %2534 = vdwg.mxu0
          %2535 = vmatprep.subr.mxu0 0.0
          %2536 = vmatpush1.msra.mxu0 0.0
          %2537 = vmatprep.subr.mxu0 0.0
          %2538 = vmatpush1.msra.mxu0 0.0
          %2539 = vmatprep.subr.mxu0 0.0
          %2540 = vmatpush1.msra.mxu0 0.0
          %2541 = vmatprep.subr.mxu0 0.0
          %2542 = vmatpush1.msra.mxu0 0.0
          %2543 = vmatprep.subr.mxu0 0.0
          %2544 = vmatpush1.msra.mxu0 0.0
          %2545 = vmatprep.subr.mxu0 0.0
          %2546 = vmatpush1.msra.mxu0 0.0
          %2547 = vmatprep.subr.mxu0 0.0
          %2548 = vmatpush1.msra.mxu0 0.0
          %2549 = vmatprep.subr.mxu0 0.0
          %2550 = vmatpush1.msra.mxu0 0.0
          %2551 = vmatprep.subr.mxu0 0.0
          %2552 = vmatpush1.msra.mxu0 0.0
          %2553 = vmatprep.subr.mxu0 0.0
          %2554 = vmatpush1.msra.mxu0 0.0
          %2555 = vmatprep.subr.mxu0 0.0
          %2556 = vmatpush1.msra.mxu0 0.0
          %2557 = vmatprep.subr.mxu0 0.0
          %2558 = vmatpush1.msra.mxu0 0.0
          %2559 = vmatprep.subr.mxu0 0.0
          %2560 = vmatpush1.msra.mxu0 0.0
          %2561 = vmatprep.subr.mxu0 0.0
          %2562 = vmatpush1.msra.mxu0 0.0
          %2563 = vmatprep.subr.mxu0 0.0
          %v2564 = vand.u32 %v2441, 4294901760
          %v2565 = vsub.f32 %v2441, %v2564
          %v2566 = vand.u32 %v2565, 4294901760
          %v2567 = vsub.f32 %v2565, %v2566
          %v2568 = vand.u32 %v2567, 4294901760
          %2569 = vmatpush1.msra.mxu0 %v2568
          %2570 = vmatprep.subr.mxu0 0.0
          %v2571 = vand.u32 %v2440, 4294901760
          %v2572 = vsub.f32 %v2440, %v2571
          %v2573 = vand.u32 %v2572, 4294901760
          %v2574 = vsub.f32 %v2572, %v2573
          %v2575 = vand.u32 %v2574, 4294901760
          %2576 = vmatpush1.msra.mxu0 %v2575
          %2577 = vmatprep.subr.mxu0 0.0
          %2578 = vmatpush2.msra.mxu0 0.0
          %2579 = vmatprep.subr.mxu0 0.0
          %2580 = vmatpush2.msra.mxu0 0.0
          %2581 = vmatprep.subr.mxu0 0.0
          %2582 = vmatpush2.msra.mxu0 0.0
          %2583 = vmatprep.subr.mxu0 0.0
          %2584 = vmatpush2.msra.mxu0 0.0
          %2585 = vmatprep.subr.mxu0 0.0
          %2586 = vmatpush2.msra.mxu0 0.0
          %2587 = vmatprep.subr.mxu0 0.0
          %2588 = vmatpush2.msra.mxu0 0.0
          %2589 = vmatprep.subr.mxu0 0.0
          %2590 = vmatpush2.msra.mxu0 0.0
          %2591 = vmatprep.subr.mxu0 0.0
          %2592 = vmatpush2.msra.mxu0 0.0
          %2593 = vmatprep.subr.mxu0 0.0
          %2594 = vmatpush2.msra.mxu0 0.0
          %2595 = vmatprep.subr.mxu0 0.0
          %2596 = vmatpush2.msra.mxu0 0.0
          %2597 = vmatprep.subr.mxu0 0.0
          %2598 = vmatpush2.msra.mxu0 0.0
          %2599 = vmatprep.subr.mxu0 0.0
          %2600 = vmatpush2.msra.mxu0 0.0
          %2601 = vmatprep.subr.mxu0 0.0
          %2602 = vmatpush2.msra.mxu0 0.0
          %2603 = vmatprep.subr.mxu0 0.0
          %2604 = vmatpush2.msra.mxu0 0.0
          %2605 = vmatprep.subr.mxu0 0.0
          %2606 = vmatpush2.msra.mxu0 0.0
          %2607 = vmatprep.subr.mxu0 0.0
          %2608 = vmatpush2.msra.mxu0 0.0
          %2609 = vmatprep.mubr.f32.mxu0 0.0
          %v2610 = vand.u32 %v2443, 4294901760
          %2611 = vmatmul.mubr.f32.gmra.mxu0 %v2610
          %v2612 = vpop.f32.mrf.mxu0
          %v2613 = vadd.f32 %v2522, %v2612
          %v2614 = vpop.f32.mrf.mxu0
          %2615 = vmatprep.mubr.f32.mxu0 0.0
          %v2616 = vand.u32 %v2446, 4294901760
          %2617 = vmatmul.mubr.f32.gmra.mxu0 %v2616
          %v2618 = vpop.f32.mrf.mxu0
          %v2619 = vadd.f32 %v2532, %v2618
          %v2620 = vpop.f32.mrf.mxu0
          %2621 = vdwg.mxu0
          %2622 = vmatprep.subr.mxu0 0.0
          %2623 = vmatpush1.msra.mxu0 0.0
          %2624 = vmatprep.subr.mxu0 0.0
          %2625 = vmatpush1.msra.mxu0 0.0
          %2626 = vmatprep.subr.mxu0 0.0
          %2627 = vmatpush1.msra.mxu0 0.0
          %2628 = vmatprep.subr.mxu0 0.0
          %2629 = vmatpush1.msra.mxu0 0.0
          %2630 = vmatprep.subr.mxu0 0.0
          %2631 = vmatpush1.msra.mxu0 0.0
          %2632 = vmatprep.subr.mxu0 0.0
          %2633 = vmatpush1.msra.mxu0 0.0
          %2634 = vmatprep.subr.mxu0 0.0
          %2635 = vmatpush1.msra.mxu0 0.0
          %2636 = vmatprep.subr.mxu0 0.0
          %2637 = vmatpush1.msra.mxu0 0.0
          %2638 = vmatprep.subr.mxu0 0.0
          %2639 = vmatpush1.msra.mxu0 0.0
          %2640 = vmatprep.subr.mxu0 0.0
          %2641 = vmatpush1.msra.mxu0 0.0
          %2642 = vmatprep.subr.mxu0 0.0
          %2643 = vmatpush1.msra.mxu0 0.0
          %2644 = vmatprep.subr.mxu0 0.0
          %2645 = vmatpush1.msra.mxu0 0.0
          %2646 = vmatprep.subr.mxu0 0.0
          %2647 = vmatpush1.msra.mxu0 0.0
          %2648 = vmatprep.subr.mxu0 0.0
          %2649 = vmatpush1.msra.mxu0 0.0
          %2650 = vmatprep.subr.mxu0 0.0
          %v2651 = vand.u32 %v2441, 4294901760
          %v2652 = vsub.f32 %v2441, %v2651
          %2653 = vmatpush1.msra.mxu0 %v2652
          %2654 = vmatprep.subr.mxu0 0.0
          %v2655 = vand.u32 %v2440, 4294901760
          %v2656 = vsub.f32 %v2440, %v2655
          %2657 = vmatpush1.msra.mxu0 %v2656
          %2658 = vmatprep.subr.mxu0 0.0
          %2659 = vmatpush2.msra.mxu0 0.0
          %2660 = vmatprep.subr.mxu0 0.0
          %2661 = vmatpush2.msra.mxu0 0.0
          %2662 = vmatprep.subr.mxu0 0.0
          %2663 = vmatpush2.msra.mxu0 0.0
          %2664 = vmatprep.subr.mxu0 0.0
          %2665 = vmatpush2.msra.mxu0 0.0
          %2666 = vmatprep.subr.mxu0 0.0
          %2667 = vmatpush2.msra.mxu0 0.0
          %2668 = vmatprep.subr.mxu0 0.0
          %2669 = vmatpush2.msra.mxu0 0.0
          %2670 = vmatprep.subr.mxu0 0.0
          %2671 = vmatpush2.msra.mxu0 0.0
          %2672 = vmatprep.subr.mxu0 0.0
          %2673 = vmatpush2.msra.mxu0 0.0
          %2674 = vmatprep.subr.mxu0 0.0
          %2675 = vmatpush2.msra.mxu0 0.0
          %2676 = vmatprep.subr.mxu0 0.0
          %2677 = vmatpush2.msra.mxu0 0.0
          %2678 = vmatprep.subr.mxu0 0.0
          %2679 = vmatpush2.msra.mxu0 0.0
          %2680 = vmatprep.subr.mxu0 0.0
          %2681 = vmatpush2.msra.mxu0 0.0
          %2682 = vmatprep.subr.mxu0 0.0
          %2683 = vmatpush2.msra.mxu0 0.0
          %2684 = vmatprep.subr.mxu0 0.0
          %2685 = vmatpush2.msra.mxu0 0.0
          %2686 = vmatprep.subr.mxu0 0.0
          %2687 = vmatpush2.msra.mxu0 0.0
          %2688 = vmatprep.subr.mxu0 0.0
          %2689 = vmatpush2.msra.mxu0 0.0
          %2690 = vmatprep.mubr.f32.mxu0 0.0
          %v2691 = vand.u32 %v2443, 4294901760
          %v2692 = vsub.f32 %v2443, %v2691
          %2693 = vmatmul.mubr.f32.gmra.mxu0 %v2692
          %v2694 = vpop.f32.mrf.mxu0
          %v2695 = vadd.f32 %v2613, %v2694
          %v2696 = vpop.f32.mrf.mxu0
          %2697 = vmatprep.mubr.f32.mxu0 0.0
          %v2698 = vand.u32 %v2446, 4294901760
          %v2699 = vsub.f32 %v2446, %v2698
          %2700 = vmatmul.mubr.f32.gmra.mxu0 %v2699
          %v2701 = vpop.f32.mrf.mxu0
          %v2702 = vadd.f32 %v2619, %v2701
          %v2703 = vpop.f32.mrf.mxu0
          %2704 = vdwg.mxu0
          %2705 = vmatprep.subr.mxu0 0.0
          %2706 = vmatpush1.msra.mxu0 0.0
          %2707 = vmatprep.subr.mxu0 0.0
          %2708 = vmatpush1.msra.mxu0 0.0
          %2709 = vmatprep.subr.mxu0 0.0
          %2710 = vmatpush1.msra.mxu0 0.0
          %2711 = vmatprep.subr.mxu0 0.0
          %2712 = vmatpush1.msra.mxu0 0.0
          %2713 = vmatprep.subr.mxu0 0.0
          %2714 = vmatpush1.msra.mxu0 0.0
          %2715 = vmatprep.subr.mxu0 0.0
          %2716 = vmatpush1.msra.mxu0 0.0
          %2717 = vmatprep.subr.mxu0 0.0
          %2718 = vmatpush1.msra.mxu0 0.0
          %2719 = vmatprep.subr.mxu0 0.0
          %2720 = vmatpush1.msra.mxu0 0.0
          %2721 = vmatprep.subr.mxu0 0.0
          %2722 = vmatpush1.msra.mxu0 0.0
          %2723 = vmatprep.subr.mxu0 0.0
          %2724 = vmatpush1.msra.mxu0 0.0
          %2725 = vmatprep.subr.mxu0 0.0
          %2726 = vmatpush1.msra.mxu0 0.0
          %2727 = vmatprep.subr.mxu0 0.0
          %2728 = vmatpush1.msra.mxu0 0.0
          %2729 = vmatprep.subr.mxu0 0.0
          %2730 = vmatpush1.msra.mxu0 0.0
          %2731 = vmatprep.subr.mxu0 0.0
          %2732 = vmatpush1.msra.mxu0 0.0
          %2733 = vmatprep.subr.mxu0 0.0
          %v2734 = vand.u32 %v2441, 4294901760
          %2735 = vmatpush1.msra.mxu0 %v2734
          %2736 = vmatprep.subr.mxu0 0.0
          %v2737 = vand.u32 %v2440, 4294901760
          %2738 = vmatpush1.msra.mxu0 %v2737
          %2739 = vmatprep.subr.mxu0 0.0
          %2740 = vmatpush2.msra.mxu0 0.0
          %2741 = vmatprep.subr.mxu0 0.0
          %2742 = vmatpush2.msra.mxu0 0.0
          %2743 = vmatprep.subr.mxu0 0.0
          %2744 = vmatpush2.msra.mxu0 0.0
          %2745 = vmatprep.subr.mxu0 0.0
          %2746 = vmatpush2.msra.mxu0 0.0
          %2747 = vmatprep.subr.mxu0 0.0
          %2748 = vmatpush2.msra.mxu0 0.0
          %2749 = vmatprep.subr.mxu0 0.0
          %2750 = vmatpush2.msra.mxu0 0.0
          %2751 = vmatprep.subr.mxu0 0.0
          %2752 = vmatpush2.msra.mxu0 0.0
          %2753 = vmatprep.subr.mxu0 0.0
          %2754 = vmatpush2.msra.mxu0 0.0
          %2755 = vmatprep.subr.mxu0 0.0
          %2756 = vmatpush2.msra.mxu0 0.0
          %2757 = vmatprep.subr.mxu0 0.0
          %2758 = vmatpush2.msra.mxu0 0.0
          %2759 = vmatprep.subr.mxu0 0.0
          %2760 = vmatpush2.msra.mxu0 0.0
          %2761 = vmatprep.subr.mxu0 0.0
          %2762 = vmatpush2.msra.mxu0 0.0
          %2763 = vmatprep.subr.mxu0 0.0
          %2764 = vmatpush2.msra.mxu0 0.0
          %2765 = vmatprep.subr.mxu0 0.0
          %2766 = vmatpush2.msra.mxu0 0.0
          %2767 = vmatprep.subr.mxu0 0.0
          %2768 = vmatpush2.msra.mxu0 0.0
          %2769 = vmatprep.subr.mxu0 0.0
          %2770 = vmatpush2.msra.mxu0 0.0
          %2771 = vmatprep.mubr.f32.mxu0 0.0
          %v2772 = vand.u32 %v2443, 4294901760
          %v2773 = vsub.f32 %v2443, %v2772
          %v2774 = vand.u32 %v2773, 4294901760
          %2775 = vmatmul.mubr.f32.gmra.mxu0 %v2774
          %v2776 = vpop.f32.mrf.mxu0
          %v2777 = vadd.f32 %v2695, %v2776
          %v2778 = vpop.f32.mrf.mxu0
          %2779 = vmatprep.mubr.f32.mxu0 0.0
          %v2780 = vand.u32 %v2446, 4294901760
          %v2781 = vsub.f32 %v2446, %v2780
          %v2782 = vand.u32 %v2781, 4294901760
          %2783 = vmatmul.mubr.f32.gmra.mxu0 %v2782
          %v2784 = vpop.f32.mrf.mxu0
          %v2785 = vadd.f32 %v2702, %v2784
          %v2786 = vpop.f32.mrf.mxu0
          %2787 = vdwg.mxu0
          %2788 = vmatprep.subr.mxu0 0.0
          %2789 = vmatpush1.msra.mxu0 0.0
          %2790 = vmatprep.subr.mxu0 0.0
          %2791 = vmatpush1.msra.mxu0 0.0
          %2792 = vmatprep.subr.mxu0 0.0
          %2793 = vmatpush1.msra.mxu0 0.0
          %2794 = vmatprep.subr.mxu0 0.0
          %2795 = vmatpush1.msra.mxu0 0.0
          %2796 = vmatprep.subr.mxu0 0.0
          %2797 = vmatpush1.msra.mxu0 0.0
          %2798 = vmatprep.subr.mxu0 0.0
          %2799 = vmatpush1.msra.mxu0 0.0
          %2800 = vmatprep.subr.mxu0 0.0
          %2801 = vmatpush1.msra.mxu0 0.0
          %2802 = vmatprep.subr.mxu0 0.0
          %2803 = vmatpush1.msra.mxu0 0.0
          %2804 = vmatprep.subr.mxu0 0.0
          %2805 = vmatpush1.msra.mxu0 0.0
          %2806 = vmatprep.subr.mxu0 0.0
          %2807 = vmatpush1.msra.mxu0 0.0
          %2808 = vmatprep.subr.mxu0 0.0
          %2809 = vmatpush1.msra.mxu0 0.0
          %2810 = vmatprep.subr.mxu0 0.0
          %2811 = vmatpush1.msra.mxu0 0.0
          %2812 = vmatprep.subr.mxu0 0.0
          %2813 = vmatpush1.msra.mxu0 0.0
          %2814 = vmatprep.subr.mxu0 0.0
          %2815 = vmatpush1.msra.mxu0 0.0
          %2816 = vmatprep.subr.mxu0 0.0
          %v2817 = vand.u32 %v2441, 4294901760
          %v2818 = vsub.f32 %v2441, %v2817
          %v2819 = vand.u32 %v2818, 4294901760
          %2820 = vmatpush1.msra.mxu0 %v2819
          %2821 = vmatprep.subr.mxu0 0.0
          %v2822 = vand.u32 %v2440, 4294901760
          %v2823 = vsub.f32 %v2440, %v2822
          %v2824 = vand.u32 %v2823, 4294901760
          %2825 = vmatpush1.msra.mxu0 %v2824
          %2826 = vmatprep.subr.mxu0 0.0
          %2827 = vmatpush2.msra.mxu0 0.0
          %2828 = vmatprep.subr.mxu0 0.0
          %2829 = vmatpush2.msra.mxu0 0.0
          %2830 = vmatprep.subr.mxu0 0.0
          %2831 = vmatpush2.msra.mxu0 0.0
          %2832 = vmatprep.subr.mxu0 0.0
          %2833 = vmatpush2.msra.mxu0 0.0
          %2834 = vmatprep.subr.mxu0 0.0
          %2835 = vmatpush2.msra.mxu0 0.0
          %2836 = vmatprep.subr.mxu0 0.0
          %2837 = vmatpush2.msra.mxu0 0.0
          %2838 = vmatprep.subr.mxu0 0.0
          %2839 = vmatpush2.msra.mxu0 0.0
          %2840 = vmatprep.subr.mxu0 0.0
          %2841 = vmatpush2.msra.mxu0 0.0
          %2842 = vmatprep.subr.mxu0 0.0
          %2843 = vmatpush2.msra.mxu0 0.0
          %2844 = vmatprep.subr.mxu0 0.0
          %2845 = vmatpush2.msra.mxu0 0.0
          %2846 = vmatprep.subr.mxu0 0.0
          %2847 = vmatpush2.msra.mxu0 0.0
          %2848 = vmatprep.subr.mxu0 0.0
          %2849 = vmatpush2.msra.mxu0 0.0
          %2850 = vmatprep.subr.mxu0 0.0
          %2851 = vmatpush2.msra.mxu0 0.0
          %2852 = vmatprep.subr.mxu0 0.0
          %2853 = vmatpush2.msra.mxu0 0.0
          %2854 = vmatprep.subr.mxu0 0.0
          %2855 = vmatpush2.msra.mxu0 0.0
          %2856 = vmatprep.subr.mxu0 0.0
          %2857 = vmatpush2.msra.mxu0 0.0
          %2858 = vmatprep.mubr.f32.mxu0 0.0
          %v2859 = vand.u32 %v2443, 4294901760
          %2860 = vmatmul.mubr.f32.gmra.mxu0 %v2859
          %v2861 = vpop.f32.mrf.mxu0
          %v2862 = vadd.f32 %v2777, %v2861
          %v2863 = vpop.f32.mrf.mxu0
          %2864 = vmatprep.mubr.f32.mxu0 0.0
          %v2865 = vand.u32 %v2446, 4294901760
          %2866 = vmatmul.mubr.f32.gmra.mxu0 %v2865
          %v2867 = vpop.f32.mrf.mxu0
          %v2868 = vadd.f32 %v2785, %v2867
          %v2869 = vpop.f32.mrf.mxu0
          %2870 = vdwg.mxu0
          %2871 = vmatprep.subr.mxu0 0.0
          %2872 = vmatpush1.msra.mxu0 0.0
          %2873 = vmatprep.subr.mxu0 0.0
          %2874 = vmatpush1.msra.mxu0 0.0
          %2875 = vmatprep.subr.mxu0 0.0
          %2876 = vmatpush1.msra.mxu0 0.0
          %2877 = vmatprep.subr.mxu0 0.0
          %2878 = vmatpush1.msra.mxu0 0.0
          %2879 = vmatprep.subr.mxu0 0.0
          %2880 = vmatpush1.msra.mxu0 0.0
          %2881 = vmatprep.subr.mxu0 0.0
          %2882 = vmatpush1.msra.mxu0 0.0
          %2883 = vmatprep.subr.mxu0 0.0
          %2884 = vmatpush1.msra.mxu0 0.0
          %2885 = vmatprep.subr.mxu0 0.0
          %2886 = vmatpush1.msra.mxu0 0.0
          %2887 = vmatprep.subr.mxu0 0.0
          %2888 = vmatpush1.msra.mxu0 0.0
          %2889 = vmatprep.subr.mxu0 0.0
          %2890 = vmatpush1.msra.mxu0 0.0
          %2891 = vmatprep.subr.mxu0 0.0
          %2892 = vmatpush1.msra.mxu0 0.0
          %2893 = vmatprep.subr.mxu0 0.0
          %2894 = vmatpush1.msra.mxu0 0.0
          %2895 = vmatprep.subr.mxu0 0.0
          %2896 = vmatpush1.msra.mxu0 0.0
          %2897 = vmatprep.subr.mxu0 0.0
          %2898 = vmatpush1.msra.mxu0 0.0
          %2899 = vmatprep.subr.mxu0 0.0
          %v2900 = vand.u32 %v2441, 4294901760
          %2901 = vmatpush1.msra.mxu0 %v2900
          %2902 = vmatprep.subr.mxu0 0.0
          %v2903 = vand.u32 %v2440, 4294901760
          %2904 = vmatpush1.msra.mxu0 %v2903
          %2905 = vmatprep.subr.mxu0 0.0
          %2906 = vmatpush2.msra.mxu0 0.0
          %2907 = vmatprep.subr.mxu0 0.0
          %2908 = vmatpush2.msra.mxu0 0.0
          %2909 = vmatprep.subr.mxu0 0.0
          %2910 = vmatpush2.msra.mxu0 0.0
          %2911 = vmatprep.subr.mxu0 0.0
          %2912 = vmatpush2.msra.mxu0 0.0
          %2913 = vmatprep.subr.mxu0 0.0
          %2914 = vmatpush2.msra.mxu0 0.0
          %2915 = vmatprep.subr.mxu0 0.0
          %2916 = vmatpush2.msra.mxu0 0.0
          %2917 = vmatprep.subr.mxu0 0.0
          %2918 = vmatpush2.msra.mxu0 0.0
          %2919 = vmatprep.subr.mxu0 0.0
          %2920 = vmatpush2.msra.mxu0 0.0
          %2921 = vmatprep.subr.mxu0 0.0
          %2922 = vmatpush2.msra.mxu0 0.0
          %2923 = vmatprep.subr.mxu0 0.0
          %2924 = vmatpush2.msra.mxu0 0.0
          %2925 = vmatprep.subr.mxu0 0.0
          %2926 = vmatpush2.msra.mxu0 0.0
          %2927 = vmatprep.subr.mxu0 0.0
          %2928 = vmatpush2.msra.mxu0 0.0
          %2929 = vmatprep.subr.mxu0 0.0
          %2930 = vmatpush2.msra.mxu0 0.0
          %2931 = vmatprep.subr.mxu0 0.0
          %2932 = vmatpush2.msra.mxu0 0.0
          %2933 = vmatprep.subr.mxu0 0.0
          %2934 = vmatpush2.msra.mxu0 0.0
          %2935 = vmatprep.subr.mxu0 0.0
          %2936 = vmatpush2.msra.mxu0 0.0
          %2937 = vmatprep.mubr.f32.mxu0 0.0
          %v2938 = vand.u32 %v2443, 4294901760
          %2939 = vmatmul.mubr.f32.gmra.mxu0 %v2938
          %v2940 = vpop.f32.mrf.mxu0
          %v2941 = vadd.f32 %v2862, %v2940
          %v2942 = vpop.f32.mrf.mxu0
          %2943 = vmatprep.mubr.f32.mxu0 0.0
          %v2944 = vand.u32 %v2446, 4294901760
          %2945 = vmatmul.mubr.f32.gmra.mxu0 %v2944
          %v2946 = vpop.f32.mrf.mxu0
          %v2947 = vadd.f32 %v2868, %v2946
          %v2948 = vpop.f32.mrf.mxu0
          %2949 = vdwg.mxu0
          %v2950 = vld [vmem:[#allocation11] sm:$0xff]
          %v2951 = vld [vmem:[#allocation11 + $0x8] sm:$0xff]
          %v2953 = vsel %vm394, %v2950, 0
          %v2956 = vsel %vm394, %v2951, 0
          %2958 = vmatprep.subr.mxu0 0.0
          %2959 = vmatpush1.msra.mxu0 0.0
          %2960 = vmatprep.subr.mxu0 0.0
          %2961 = vmatpush1.msra.mxu0 0.0
          %2962 = vmatprep.subr.mxu0 0.0
          %2963 = vmatpush1.msra.mxu0 0.0
          %2964 = vmatprep.subr.mxu0 0.0
          %2965 = vmatpush1.msra.mxu0 0.0
          %2966 = vmatprep.subr.mxu0 0.0
          %2967 = vmatpush1.msra.mxu0 0.0
          %2968 = vmatprep.subr.mxu0 0.0
          %2969 = vmatpush1.msra.mxu0 0.0
          %2970 = vmatprep.subr.mxu0 0.0
          %2971 = vmatpush1.msra.mxu0 0.0
          %2972 = vmatprep.subr.mxu0 0.0
          %2973 = vmatpush1.msra.mxu0 0.0
          %2974 = vmatprep.subr.mxu0 0.0
          %2975 = vmatpush1.msra.mxu0 0.0
          %2976 = vmatprep.subr.mxu0 0.0
          %2977 = vmatpush1.msra.mxu0 0.0
          %2978 = vmatprep.subr.mxu0 0.0
          %2979 = vmatpush1.msra.mxu0 0.0
          %2980 = vmatprep.subr.mxu0 0.0
          %2981 = vmatpush1.msra.mxu0 0.0
          %2982 = vmatprep.subr.mxu0 0.0
          %2983 = vmatpush1.msra.mxu0 0.0
          %2984 = vmatprep.subr.mxu0 0.0
          %2985 = vmatpush1.msra.mxu0 0.0
          %2986 = vmatprep.subr.mxu0 0.0
          %v2987 = vand.u32 %v2947, 4294901760
          %2988 = vmatpush1.msra.mxu0 %v2987
          %2989 = vmatprep.subr.mxu0 0.0
          %v2990 = vand.u32 %v2941, 4294901760
          %2991 = vmatpush1.msra.mxu0 %v2990
          %2992 = vmatprep.subr.mxu0 0.0
          %2993 = vmatpush2.msra.mxu0 0.0
          %2994 = vmatprep.subr.mxu0 0.0
          %2995 = vmatpush2.msra.mxu0 0.0
          %2996 = vmatprep.subr.mxu0 0.0
          %2997 = vmatpush2.msra.mxu0 0.0
          %2998 = vmatprep.subr.mxu0 0.0
          %2999 = vmatpush2.msra.mxu0 0.0
          %3000 = vmatprep.subr.mxu0 0.0
          %3001 = vmatpush2.msra.mxu0 0.0
          %3002 = vmatprep.subr.mxu0 0.0
          %3003 = vmatpush2.msra.mxu0 0.0
          %3004 = vmatprep.subr.mxu0 0.0
          %3005 = vmatpush2.msra.mxu0 0.0
          %3006 = vmatprep.subr.mxu0 0.0
          %3007 = vmatpush2.msra.mxu0 0.0
          %3008 = vmatprep.subr.mxu0 0.0
          %3009 = vmatpush2.msra.mxu0 0.0
          %3010 = vmatprep.subr.mxu0 0.0
          %3011 = vmatpush2.msra.mxu0 0.0
          %3012 = vmatprep.subr.mxu0 0.0
          %3013 = vmatpush2.msra.mxu0 0.0
          %3014 = vmatprep.subr.mxu0 0.0
          %3015 = vmatpush2.msra.mxu0 0.0
          %3016 = vmatprep.subr.mxu0 0.0
          %3017 = vmatpush2.msra.mxu0 0.0
          %3018 = vmatprep.subr.mxu0 0.0
          %3019 = vmatpush2.msra.mxu0 0.0
          %3020 = vmatprep.subr.mxu0 0.0
          %3021 = vmatpush2.msra.mxu0 0.0
          %3022 = vmatprep.subr.mxu0 0.0
          %3023 = vmatpush2.msra.mxu0 0.0
          %3024 = vmatprep.mubr.f32.mxu0 0.0
          %v3025 = vand.u32 %v2953, 4294901760
          %v3026 = vsub.f32 %v2953, %v3025
          %v3027 = vand.u32 %v3026, 4294901760
          %v3028 = vsub.f32 %v3026, %v3027
          %v3029 = vand.u32 %v3028, 4294901760
          %3030 = vmatmul.mubr.f32.gmra.mxu0 %v3029
          %v3031 = vpop.f32.mrf.mxu0
          %v3032 = vadd.f32 0.0, %v3031
          %v3033 = vpop.f32.mrf.mxu0
          %3034 = vmatprep.mubr.f32.mxu0 0.0
          %v3035 = vand.u32 %v2956, 4294901760
          %v3036 = vsub.f32 %v2956, %v3035
          %v3037 = vand.u32 %v3036, 4294901760
          %v3038 = vsub.f32 %v3036, %v3037
          %v3039 = vand.u32 %v3038, 4294901760
          %3040 = vmatmul.mubr.f32.gmra.mxu0 %v3039
          %v3041 = vpop.f32.mrf.mxu0
          %v3042 = vadd.f32 0.0, %v3041
          %v3043 = vpop.f32.mrf.mxu0
          %3044 = vdwg.mxu0
          %3045 = vmatprep.subr.mxu0 0.0
          %3046 = vmatpush1.msra.mxu0 0.0
          %3047 = vmatprep.subr.mxu0 0.0
          %3048 = vmatpush1.msra.mxu0 0.0
          %3049 = vmatprep.subr.mxu0 0.0
          %3050 = vmatpush1.msra.mxu0 0.0
          %3051 = vmatprep.subr.mxu0 0.0
          %3052 = vmatpush1.msra.mxu0 0.0
          %3053 = vmatprep.subr.mxu0 0.0
          %3054 = vmatpush1.msra.mxu0 0.0
          %3055 = vmatprep.subr.mxu0 0.0
          %3056 = vmatpush1.msra.mxu0 0.0
          %3057 = vmatprep.subr.mxu0 0.0
          %3058 = vmatpush1.msra.mxu0 0.0
          %3059 = vmatprep.subr.mxu0 0.0
          %3060 = vmatpush1.msra.mxu0 0.0
          %3061 = vmatprep.subr.mxu0 0.0
          %3062 = vmatpush1.msra.mxu0 0.0
          %3063 = vmatprep.subr.mxu0 0.0
          %3064 = vmatpush1.msra.mxu0 0.0
          %3065 = vmatprep.subr.mxu0 0.0
          %3066 = vmatpush1.msra.mxu0 0.0
          %3067 = vmatprep.subr.mxu0 0.0
          %3068 = vmatpush1.msra.mxu0 0.0
          %3069 = vmatprep.subr.mxu0 0.0
          %3070 = vmatpush1.msra.mxu0 0.0
          %3071 = vmatprep.subr.mxu0 0.0
          %3072 = vmatpush1.msra.mxu0 0.0
          %3073 = vmatprep.subr.mxu0 0.0
          %v3074 = vand.u32 %v2947, 4294901760
          %v3075 = vsub.f32 %v2947, %v3074
          %v3076 = vand.u32 %v3075, 4294901760
          %v3077 = vsub.f32 %v3075, %v3076
          %v3078 = vand.u32 %v3077, 4294901760
          %3079 = vmatpush1.msra.mxu0 %v3078
          %3080 = vmatprep.subr.mxu0 0.0
          %v3081 = vand.u32 %v2941, 4294901760
          %v3082 = vsub.f32 %v2941, %v3081
          %v3083 = vand.u32 %v3082, 4294901760
          %v3084 = vsub.f32 %v3082, %v3083
          %v3085 = vand.u32 %v3084, 4294901760
          %3086 = vmatpush1.msra.mxu0 %v3085
          %3087 = vmatprep.subr.mxu0 0.0
          %3088 = vmatpush2.msra.mxu0 0.0
          %3089 = vmatprep.subr.mxu0 0.0
          %3090 = vmatpush2.msra.mxu0 0.0
          %3091 = vmatprep.subr.mxu0 0.0
          %3092 = vmatpush2.msra.mxu0 0.0
          %3093 = vmatprep.subr.mxu0 0.0
          %3094 = vmatpush2.msra.mxu0 0.0
          %3095 = vmatprep.subr.mxu0 0.0
          %3096 = vmatpush2.msra.mxu0 0.0
          %3097 = vmatprep.subr.mxu0 0.0
          %3098 = vmatpush2.msra.mxu0 0.0
          %3099 = vmatprep.subr.mxu0 0.0
          %3100 = vmatpush2.msra.mxu0 0.0
          %3101 = vmatprep.subr.mxu0 0.0
          %3102 = vmatpush2.msra.mxu0 0.0
          %3103 = vmatprep.subr.mxu0 0.0
          %3104 = vmatpush2.msra.mxu0 0.0
          %3105 = vmatprep.subr.mxu0 0.0
          %3106 = vmatpush2.msra.mxu0 0.0
          %3107 = vmatprep.subr.mxu0 0.0
          %3108 = vmatpush2.msra.mxu0 0.0
          %3109 = vmatprep.subr.mxu0 0.0
          %3110 = vmatpush2.msra.mxu0 0.0
          %3111 = vmatprep.subr.mxu0 0.0
          %3112 = vmatpush2.msra.mxu0 0.0
          %3113 = vmatprep.subr.mxu0 0.0
          %3114 = vmatpush2.msra.mxu0 0.0
          %3115 = vmatprep.subr.mxu0 0.0
          %3116 = vmatpush2.msra.mxu0 0.0
          %3117 = vmatprep.subr.mxu0 0.0
          %3118 = vmatpush2.msra.mxu0 0.0
          %3119 = vmatprep.mubr.f32.mxu0 0.0
          %v3120 = vand.u32 %v2953, 4294901760
          %3121 = vmatmul.mubr.f32.gmra.mxu0 %v3120
          %v3122 = vpop.f32.mrf.mxu0
          %v3123 = vadd.f32 %v3032, %v3122
          %v3124 = vpop.f32.mrf.mxu0
          %3125 = vmatprep.mubr.f32.mxu0 0.0
          %v3126 = vand.u32 %v2956, 4294901760
          %3127 = vmatmul.mubr.f32.gmra.mxu0 %v3126
          %v3128 = vpop.f32.mrf.mxu0
          %v3129 = vadd.f32 %v3042, %v3128
          %v3130 = vpop.f32.mrf.mxu0
          %3131 = vdwg.mxu0
          %3132 = vmatprep.subr.mxu0 0.0
          %3133 = vmatpush1.msra.mxu0 0.0
          %3134 = vmatprep.subr.mxu0 0.0
          %3135 = vmatpush1.msra.mxu0 0.0
          %3136 = vmatprep.subr.mxu0 0.0
          %3137 = vmatpush1.msra.mxu0 0.0
          %3138 = vmatprep.subr.mxu0 0.0
          %3139 = vmatpush1.msra.mxu0 0.0
          %3140 = vmatprep.subr.mxu0 0.0
          %3141 = vmatpush1.msra.mxu0 0.0
          %3142 = vmatprep.subr.mxu0 0.0
          %3143 = vmatpush1.msra.mxu0 0.0
          %3144 = vmatprep.subr.mxu0 0.0
          %3145 = vmatpush1.msra.mxu0 0.0
          %3146 = vmatprep.subr.mxu0 0.0
          %3147 = vmatpush1.msra.mxu0 0.0
          %3148 = vmatprep.subr.mxu0 0.0
          %3149 = vmatpush1.msra.mxu0 0.0
          %3150 = vmatprep.subr.mxu0 0.0
          %3151 = vmatpush1.msra.mxu0 0.0
          %3152 = vmatprep.subr.mxu0 0.0
          %3153 = vmatpush1.msra.mxu0 0.0
          %3154 = vmatprep.subr.mxu0 0.0
          %3155 = vmatpush1.msra.mxu0 0.0
          %3156 = vmatprep.subr.mxu0 0.0
          %3157 = vmatpush1.msra.mxu0 0.0
          %3158 = vmatprep.subr.mxu0 0.0
          %3159 = vmatpush1.msra.mxu0 0.0
          %3160 = vmatprep.subr.mxu0 0.0
          %v3161 = vand.u32 %v2947, 4294901760
          %v3162 = vsub.f32 %v2947, %v3161
          %3163 = vmatpush1.msra.mxu0 %v3162
          %3164 = vmatprep.subr.mxu0 0.0
          %v3165 = vand.u32 %v2941, 4294901760
          %v3166 = vsub.f32 %v2941, %v3165
          %3167 = vmatpush1.msra.mxu0 %v3166
          %3168 = vmatprep.subr.mxu0 0.0
          %3169 = vmatpush2.msra.mxu0 0.0
          %3170 = vmatprep.subr.mxu0 0.0
          %3171 = vmatpush2.msra.mxu0 0.0
          %3172 = vmatprep.subr.mxu0 0.0
          %3173 = vmatpush2.msra.mxu0 0.0
          %3174 = vmatprep.subr.mxu0 0.0
          %3175 = vmatpush2.msra.mxu0 0.0
          %3176 = vmatprep.subr.mxu0 0.0
          %3177 = vmatpush2.msra.mxu0 0.0
          %3178 = vmatprep.subr.mxu0 0.0
          %3179 = vmatpush2.msra.mxu0 0.0
          %3180 = vmatprep.subr.mxu0 0.0
          %3181 = vmatpush2.msra.mxu0 0.0
          %3182 = vmatprep.subr.mxu0 0.0
          %3183 = vmatpush2.msra.mxu0 0.0
          %3184 = vmatprep.subr.mxu0 0.0
          %3185 = vmatpush2.msra.mxu0 0.0
          %3186 = vmatprep.subr.mxu0 0.0
          %3187 = vmatpush2.msra.mxu0 0.0
          %3188 = vmatprep.subr.mxu0 0.0
          %3189 = vmatpush2.msra.mxu0 0.0
          %3190 = vmatprep.subr.mxu0 0.0
          %3191 = vmatpush2.msra.mxu0 0.0
          %3192 = vmatprep.subr.mxu0 0.0
          %3193 = vmatpush2.msra.mxu0 0.0
          %3194 = vmatprep.subr.mxu0 0.0
          %3195 = vmatpush2.msra.mxu0 0.0
          %3196 = vmatprep.subr.mxu0 0.0
          %3197 = vmatpush2.msra.mxu0 0.0
          %3198 = vmatprep.subr.mxu0 0.0
          %3199 = vmatpush2.msra.mxu0 0.0
          %3200 = vmatprep.mubr.f32.mxu0 0.0
          %v3201 = vand.u32 %v2953, 4294901760
          %v3202 = vsub.f32 %v2953, %v3201
          %3203 = vmatmul.mubr.f32.gmra.mxu0 %v3202
          %v3204 = vpop.f32.mrf.mxu0
          %v3205 = vadd.f32 %v3123, %v3204
          %v3206 = vpop.f32.mrf.mxu0
          %3207 = vmatprep.mubr.f32.mxu0 0.0
          %v3208 = vand.u32 %v2956, 4294901760
          %v3209 = vsub.f32 %v2956, %v3208
          %3210 = vmatmul.mubr.f32.gmra.mxu0 %v3209
          %v3211 = vpop.f32.mrf.mxu0
          %v3212 = vadd.f32 %v3129, %v3211
          %v3213 = vpop.f32.mrf.mxu0
          %3214 = vdwg.mxu0
          %3215 = vmatprep.subr.mxu0 0.0
          %3216 = vmatpush1.msra.mxu0 0.0
          %3217 = vmatprep.subr.mxu0 0.0
          %3218 = vmatpush1.msra.mxu0 0.0
          %3219 = vmatprep.subr.mxu0 0.0
          %3220 = vmatpush1.msra.mxu0 0.0
          %3221 = vmatprep.subr.mxu0 0.0
          %3222 = vmatpush1.msra.mxu0 0.0
          %3223 = vmatprep.subr.mxu0 0.0
          %3224 = vmatpush1.msra.mxu0 0.0
          %3225 = vmatprep.subr.mxu0 0.0
          %3226 = vmatpush1.msra.mxu0 0.0
          %3227 = vmatprep.subr.mxu0 0.0
          %3228 = vmatpush1.msra.mxu0 0.0
          %3229 = vmatprep.subr.mxu0 0.0
          %3230 = vmatpush1.msra.mxu0 0.0
          %3231 = vmatprep.subr.mxu0 0.0
          %3232 = vmatpush1.msra.mxu0 0.0
          %3233 = vmatprep.subr.mxu0 0.0
          %3234 = vmatpush1.msra.mxu0 0.0
          %3235 = vmatprep.subr.mxu0 0.0
          %3236 = vmatpush1.msra.mxu0 0.0
          %3237 = vmatprep.subr.mxu0 0.0
          %3238 = vmatpush1.msra.mxu0 0.0
          %3239 = vmatprep.subr.mxu0 0.0
          %3240 = vmatpush1.msra.mxu0 0.0
          %3241 = vmatprep.subr.mxu0 0.0
          %3242 = vmatpush1.msra.mxu0 0.0
          %3243 = vmatprep.subr.mxu0 0.0
          %v3244 = vand.u32 %v2947, 4294901760
          %3245 = vmatpush1.msra.mxu0 %v3244
          %3246 = vmatprep.subr.mxu0 0.0
          %v3247 = vand.u32 %v2941, 4294901760
          %3248 = vmatpush1.msra.mxu0 %v3247
          %3249 = vmatprep.subr.mxu0 0.0
          %3250 = vmatpush2.msra.mxu0 0.0
          %3251 = vmatprep.subr.mxu0 0.0
          %3252 = vmatpush2.msra.mxu0 0.0
          %3253 = vmatprep.subr.mxu0 0.0
          %3254 = vmatpush2.msra.mxu0 0.0
          %3255 = vmatprep.subr.mxu0 0.0
          %3256 = vmatpush2.msra.mxu0 0.0
          %3257 = vmatprep.subr.mxu0 0.0
          %3258 = vmatpush2.msra.mxu0 0.0
          %3259 = vmatprep.subr.mxu0 0.0
          %3260 = vmatpush2.msra.mxu0 0.0
          %3261 = vmatprep.subr.mxu0 0.0
          %3262 = vmatpush2.msra.mxu0 0.0
          %3263 = vmatprep.subr.mxu0 0.0
          %3264 = vmatpush2.msra.mxu0 0.0
          %3265 = vmatprep.subr.mxu0 0.0
          %3266 = vmatpush2.msra.mxu0 0.0
          %3267 = vmatprep.subr.mxu0 0.0
          %3268 = vmatpush2.msra.mxu0 0.0
          %3269 = vmatprep.subr.mxu0 0.0
          %3270 = vmatpush2.msra.mxu0 0.0
          %3271 = vmatprep.subr.mxu0 0.0
          %3272 = vmatpush2.msra.mxu0 0.0
          %3273 = vmatprep.subr.mxu0 0.0
          %3274 = vmatpush2.msra.mxu0 0.0
          %3275 = vmatprep.subr.mxu0 0.0
          %3276 = vmatpush2.msra.mxu0 0.0
          %3277 = vmatprep.subr.mxu0 0.0
          %3278 = vmatpush2.msra.mxu0 0.0
          %3279 = vmatprep.subr.mxu0 0.0
          %3280 = vmatpush2.msra.mxu0 0.0
          %3281 = vmatprep.mubr.f32.mxu0 0.0
          %v3282 = vand.u32 %v2953, 4294901760
          %v3283 = vsub.f32 %v2953, %v3282
          %v3284 = vand.u32 %v3283, 4294901760
          %3285 = vmatmul.mubr.f32.gmra.mxu0 %v3284
          %v3286 = vpop.f32.mrf.mxu0
          %v3287 = vadd.f32 %v3205, %v3286
          %v3288 = vpop.f32.mrf.mxu0
          %3289 = vmatprep.mubr.f32.mxu0 0.0
          %v3290 = vand.u32 %v2956, 4294901760
          %v3291 = vsub.f32 %v2956, %v3290
          %v3292 = vand.u32 %v3291, 4294901760
          %3293 = vmatmul.mubr.f32.gmra.mxu0 %v3292
          %v3294 = vpop.f32.mrf.mxu0
          %v3295 = vadd.f32 %v3212, %v3294
          %v3296 = vpop.f32.mrf.mxu0
          %3297 = vdwg.mxu0
          %3298 = vmatprep.subr.mxu0 0.0
          %3299 = vmatpush1.msra.mxu0 0.0
          %3300 = vmatprep.subr.mxu0 0.0
          %3301 = vmatpush1.msra.mxu0 0.0
          %3302 = vmatprep.subr.mxu0 0.0
          %3303 = vmatpush1.msra.mxu0 0.0
          %3304 = vmatprep.subr.mxu0 0.0
          %3305 = vmatpush1.msra.mxu0 0.0
          %3306 = vmatprep.subr.mxu0 0.0
          %3307 = vmatpush1.msra.mxu0 0.0
          %3308 = vmatprep.subr.mxu0 0.0
          %3309 = vmatpush1.msra.mxu0 0.0
          %3310 = vmatprep.subr.mxu0 0.0
          %3311 = vmatpush1.msra.mxu0 0.0
          %3312 = vmatprep.subr.mxu0 0.0
          %3313 = vmatpush1.msra.mxu0 0.0
          %3314 = vmatprep.subr.mxu0 0.0
          %3315 = vmatpush1.msra.mxu0 0.0
          %3316 = vmatprep.subr.mxu0 0.0
          %3317 = vmatpush1.msra.mxu0 0.0
          %3318 = vmatprep.subr.mxu0 0.0
          %3319 = vmatpush1.msra.mxu0 0.0
          %3320 = vmatprep.subr.mxu0 0.0
          %3321 = vmatpush1.msra.mxu0 0.0
          %3322 = vmatprep.subr.mxu0 0.0
          %3323 = vmatpush1.msra.mxu0 0.0
          %3324 = vmatprep.subr.mxu0 0.0
          %3325 = vmatpush1.msra.mxu0 0.0
          %3326 = vmatprep.subr.mxu0 0.0
          %v3327 = vand.u32 %v2947, 4294901760
          %v3328 = vsub.f32 %v2947, %v3327
          %v3329 = vand.u32 %v3328, 4294901760
          %3330 = vmatpush1.msra.mxu0 %v3329
          %3331 = vmatprep.subr.mxu0 0.0
          %v3332 = vand.u32 %v2941, 4294901760
          %v3333 = vsub.f32 %v2941, %v3332
          %v3334 = vand.u32 %v3333, 4294901760
          %3335 = vmatpush1.msra.mxu0 %v3334
          %3336 = vmatprep.subr.mxu0 0.0
          %3337 = vmatpush2.msra.mxu0 0.0
          %3338 = vmatprep.subr.mxu0 0.0
          %3339 = vmatpush2.msra.mxu0 0.0
          %3340 = vmatprep.subr.mxu0 0.0
          %3341 = vmatpush2.msra.mxu0 0.0
          %3342 = vmatprep.subr.mxu0 0.0
          %3343 = vmatpush2.msra.mxu0 0.0
          %3344 = vmatprep.subr.mxu0 0.0
          %3345 = vmatpush2.msra.mxu0 0.0
          %3346 = vmatprep.subr.mxu0 0.0
          %3347 = vmatpush2.msra.mxu0 0.0
          %3348 = vmatprep.subr.mxu0 0.0
          %3349 = vmatpush2.msra.mxu0 0.0
          %3350 = vmatprep.subr.mxu0 0.0
          %3351 = vmatpush2.msra.mxu0 0.0
          %3352 = vmatprep.subr.mxu0 0.0
          %3353 = vmatpush2.msra.mxu0 0.0
          %3354 = vmatprep.subr.mxu0 0.0
          %3355 = vmatpush2.msra.mxu0 0.0
          %3356 = vmatprep.subr.mxu0 0.0
          %3357 = vmatpush2.msra.mxu0 0.0
          %3358 = vmatprep.subr.mxu0 0.0
          %3359 = vmatpush2.msra.mxu0 0.0
          %3360 = vmatprep.subr.mxu0 0.0
          %3361 = vmatpush2.msra.mxu0 0.0
          %3362 = vmatprep.subr.mxu0 0.0
          %3363 = vmatpush2.msra.mxu0 0.0
          %3364 = vmatprep.subr.mxu0 0.0
          %3365 = vmatpush2.msra.mxu0 0.0
          %3366 = vmatprep.subr.mxu0 0.0
          %3367 = vmatpush2.msra.mxu0 0.0
          %3368 = vmatprep.mubr.f32.mxu0 0.0
          %v3369 = vand.u32 %v2953, 4294901760
          %3370 = vmatmul.mubr.f32.gmra.mxu0 %v3369
          %v3371 = vpop.f32.mrf.mxu0
          %v3372 = vadd.f32 %v3287, %v3371
          %v3373 = vpop.f32.mrf.mxu0
          %3374 = vmatprep.mubr.f32.mxu0 0.0
          %v3375 = vand.u32 %v2956, 4294901760
          %3376 = vmatmul.mubr.f32.gmra.mxu0 %v3375
          %v3377 = vpop.f32.mrf.mxu0
          %v3378 = vadd.f32 %v3295, %v3377
          %v3379 = vpop.f32.mrf.mxu0
          %3380 = vdwg.mxu0
          %3381 = vmatprep.subr.mxu0 0.0
          %3382 = vmatpush1.msra.mxu0 0.0
          %3383 = vmatprep.subr.mxu0 0.0
          %3384 = vmatpush1.msra.mxu0 0.0
          %3385 = vmatprep.subr.mxu0 0.0
          %3386 = vmatpush1.msra.mxu0 0.0
          %3387 = vmatprep.subr.mxu0 0.0
          %3388 = vmatpush1.msra.mxu0 0.0
          %3389 = vmatprep.subr.mxu0 0.0
          %3390 = vmatpush1.msra.mxu0 0.0
          %3391 = vmatprep.subr.mxu0 0.0
          %3392 = vmatpush1.msra.mxu0 0.0
          %3393 = vmatprep.subr.mxu0 0.0
          %3394 = vmatpush1.msra.mxu0 0.0
          %3395 = vmatprep.subr.mxu0 0.0
          %3396 = vmatpush1.msra.mxu0 0.0
          %3397 = vmatprep.subr.mxu0 0.0
          %3398 = vmatpush1.msra.mxu0 0.0
          %3399 = vmatprep.subr.mxu0 0.0
          %3400 = vmatpush1.msra.mxu0 0.0
          %3401 = vmatprep.subr.mxu0 0.0
          %3402 = vmatpush1.msra.mxu0 0.0
          %3403 = vmatprep.subr.mxu0 0.0
          %3404 = vmatpush1.msra.mxu0 0.0
          %3405 = vmatprep.subr.mxu0 0.0
          %3406 = vmatpush1.msra.mxu0 0.0
          %3407 = vmatprep.subr.mxu0 0.0
          %3408 = vmatpush1.msra.mxu0 0.0
          %3409 = vmatprep.subr.mxu0 0.0
          %v3410 = vand.u32 %v2947, 4294901760
          %3411 = vmatpush1.msra.mxu0 %v3410
          %3412 = vmatprep.subr.mxu0 0.0
          %v3413 = vand.u32 %v2941, 4294901760
          %3414 = vmatpush1.msra.mxu0 %v3413
          %3415 = vmatprep.subr.mxu0 0.0
          %3416 = vmatpush2.msra.mxu0 0.0
          %3417 = vmatprep.subr.mxu0 0.0
          %3418 = vmatpush2.msra.mxu0 0.0
          %3419 = vmatprep.subr.mxu0 0.0
          %3420 = vmatpush2.msra.mxu0 0.0
          %3421 = vmatprep.subr.mxu0 0.0
          %3422 = vmatpush2.msra.mxu0 0.0
          %3423 = vmatprep.subr.mxu0 0.0
          %3424 = vmatpush2.msra.mxu0 0.0
          %3425 = vmatprep.subr.mxu0 0.0
          %3426 = vmatpush2.msra.mxu0 0.0
          %3427 = vmatprep.subr.mxu0 0.0
          %3428 = vmatpush2.msra.mxu0 0.0
          %3429 = vmatprep.subr.mxu0 0.0
          %3430 = vmatpush2.msra.mxu0 0.0
          %3431 = vmatprep.subr.mxu0 0.0
          %3432 = vmatpush2.msra.mxu0 0.0
          %3433 = vmatprep.subr.mxu0 0.0
          %3434 = vmatpush2.msra.mxu0 0.0
          %3435 = vmatprep.subr.mxu0 0.0
          %3436 = vmatpush2.msra.mxu0 0.0
          %3437 = vmatprep.subr.mxu0 0.0
          %3438 = vmatpush2.msra.mxu0 0.0
          %3439 = vmatprep.subr.mxu0 0.0
          %3440 = vmatpush2.msra.mxu0 0.0
          %3441 = vmatprep.subr.mxu0 0.0
          %3442 = vmatpush2.msra.mxu0 0.0
          %3443 = vmatprep.subr.mxu0 0.0
          %3444 = vmatpush2.msra.mxu0 0.0
          %3445 = vmatprep.subr.mxu0 0.0
          %3446 = vmatpush2.msra.mxu0 0.0
          %3447 = vmatprep.mubr.f32.mxu0 0.0
          %v3448 = vand.u32 %v2953, 4294901760
          %3449 = vmatmul.mubr.f32.gmra.mxu0 %v3448
          %v3450 = vpop.f32.mrf.mxu0
          %v3451 = vadd.f32 %v3372, %v3450
          %v3452 = vpop.f32.mrf.mxu0
          %3453 = vmatprep.mubr.f32.mxu0 0.0
          %v3454 = vand.u32 %v2956, 4294901760
          %3455 = vmatmul.mubr.f32.gmra.mxu0 %v3454
          %v3456 = vpop.f32.mrf.mxu0
          %v3457 = vadd.f32 %v3378, %v3456
          %v3458 = vpop.f32.mrf.mxu0
          %3459 = vdwg.mxu0
          %s3460 = scalar_lea.vmem [#allocation4], %s1413
          %3461 = vst.msk [vmem:[%s3460] sm:$0xff] %vm394, %v3451
          %3462 = vst.msk [vmem:[%s3460 + $0x8] sm:$0xff] %vm394, %v3457
          %v3463 = vld [vmem:[#allocation12] sm:$0xff]
          %v3464 = vld [vmem:[#allocation12 + $0x8] sm:$0xff]
          %v3466 = vsel %vm394, %v375, 0
          %v3469 = vsel %vm394, %v376, 0
          %3471 = vmatprep.subr.mxu0 0.0
          %3472 = vmatpush1.msra.mxu0 0.0
          %3473 = vmatprep.subr.mxu0 0.0
          %3474 = vmatpush1.msra.mxu0 0.0
          %3475 = vmatprep.subr.mxu0 0.0
          %3476 = vmatpush1.msra.mxu0 0.0
          %3477 = vmatprep.subr.mxu0 0.0
          %3478 = vmatpush1.msra.mxu0 0.0
          %3479 = vmatprep.subr.mxu0 0.0
          %3480 = vmatpush1.msra.mxu0 0.0
          %3481 = vmatprep.subr.mxu0 0.0
          %3482 = vmatpush1.msra.mxu0 0.0
          %3483 = vmatprep.subr.mxu0 0.0
          %3484 = vmatpush1.msra.mxu0 0.0
          %3485 = vmatprep.subr.mxu0 0.0
          %3486 = vmatpush1.msra.mxu0 0.0
          %3487 = vmatprep.subr.mxu0 0.0
          %3488 = vmatpush1.msra.mxu0 0.0
          %3489 = vmatprep.subr.mxu0 0.0
          %3490 = vmatpush1.msra.mxu0 0.0
          %3491 = vmatprep.subr.mxu0 0.0
          %3492 = vmatpush1.msra.mxu0 0.0
          %3493 = vmatprep.subr.mxu0 0.0
          %3494 = vmatpush1.msra.mxu0 0.0
          %3495 = vmatprep.subr.mxu0 0.0
          %3496 = vmatpush1.msra.mxu0 0.0
          %3497 = vmatprep.subr.mxu0 0.0
          %3498 = vmatpush1.msra.mxu0 0.0
          %3499 = vmatprep.subr.mxu0 0.0
          %v3500 = vand.u32 %v3464, 4294901760
          %3501 = vmatpush1.msra.mxu0 %v3500
          %3502 = vmatprep.subr.mxu0 0.0
          %v3503 = vand.u32 %v3463, 4294901760
          %3504 = vmatpush1.msra.mxu0 %v3503
          %3505 = vmatprep.subr.mxu0 0.0
          %3506 = vmatpush2.msra.mxu0 0.0
          %3507 = vmatprep.subr.mxu0 0.0
          %3508 = vmatpush2.msra.mxu0 0.0
          %3509 = vmatprep.subr.mxu0 0.0
          %3510 = vmatpush2.msra.mxu0 0.0
          %3511 = vmatprep.subr.mxu0 0.0
          %3512 = vmatpush2.msra.mxu0 0.0
          %3513 = vmatprep.subr.mxu0 0.0
          %3514 = vmatpush2.msra.mxu0 0.0
          %3515 = vmatprep.subr.mxu0 0.0
          %3516 = vmatpush2.msra.mxu0 0.0
          %3517 = vmatprep.subr.mxu0 0.0
          %3518 = vmatpush2.msra.mxu0 0.0
          %3519 = vmatprep.subr.mxu0 0.0
          %3520 = vmatpush2.msra.mxu0 0.0
          %3521 = vmatprep.subr.mxu0 0.0
          %3522 = vmatpush2.msra.mxu0 0.0
          %3523 = vmatprep.subr.mxu0 0.0
          %3524 = vmatpush2.msra.mxu0 0.0
          %3525 = vmatprep.subr.mxu0 0.0
          %3526 = vmatpush2.msra.mxu0 0.0
          %3527 = vmatprep.subr.mxu0 0.0
          %3528 = vmatpush2.msra.mxu0 0.0
          %3529 = vmatprep.subr.mxu0 0.0
          %3530 = vmatpush2.msra.mxu0 0.0
          %3531 = vmatprep.subr.mxu0 0.0
          %3532 = vmatpush2.msra.mxu0 0.0
          %3533 = vmatprep.subr.mxu0 0.0
          %3534 = vmatpush2.msra.mxu0 0.0
          %3535 = vmatprep.subr.mxu0 0.0
          %3536 = vmatpush2.msra.mxu0 0.0
          %3537 = vmatprep.mubr.f32.mxu0 0.0
          %v3538 = vand.u32 %v3466, 4294901760
          %v3539 = vsub.f32 %v3466, %v3538
          %v3540 = vand.u32 %v3539, 4294901760
          %v3541 = vsub.f32 %v3539, %v3540
          %v3542 = vand.u32 %v3541, 4294901760
          %3543 = vmatmul.mubr.f32.gmra.mxu0 %v3542
          %v3544 = vpop.f32.mrf.mxu0
          %v3545 = vadd.f32 0.0, %v3544
          %v3546 = vpop.f32.mrf.mxu0
          %3547 = vmatprep.mubr.f32.mxu0 0.0
          %v3548 = vand.u32 %v3469, 4294901760
          %v3549 = vsub.f32 %v3469, %v3548
          %v3550 = vand.u32 %v3549, 4294901760
          %v3551 = vsub.f32 %v3549, %v3550
          %v3552 = vand.u32 %v3551, 4294901760
          %3553 = vmatmul.mubr.f32.gmra.mxu0 %v3552
          %v3554 = vpop.f32.mrf.mxu0
          %v3555 = vadd.f32 0.0, %v3554
          %v3556 = vpop.f32.mrf.mxu0
          %3557 = vdwg.mxu0
          %3558 = vmatprep.subr.mxu0 0.0
          %3559 = vmatpush1.msra.mxu0 0.0
          %3560 = vmatprep.subr.mxu0 0.0
          %3561 = vmatpush1.msra.mxu0 0.0
          %3562 = vmatprep.subr.mxu0 0.0
          %3563 = vmatpush1.msra.mxu0 0.0
          %3564 = vmatprep.subr.mxu0 0.0
          %3565 = vmatpush1.msra.mxu0 0.0
          %3566 = vmatprep.subr.mxu0 0.0
          %3567 = vmatpush1.msra.mxu0 0.0
          %3568 = vmatprep.subr.mxu0 0.0
          %3569 = vmatpush1.msra.mxu0 0.0
          %3570 = vmatprep.subr.mxu0 0.0
          %3571 = vmatpush1.msra.mxu0 0.0
          %3572 = vmatprep.subr.mxu0 0.0
          %3573 = vmatpush1.msra.mxu0 0.0
          %3574 = vmatprep.subr.mxu0 0.0
          %3575 = vmatpush1.msra.mxu0 0.0
          %3576 = vmatprep.subr.mxu0 0.0
          %3577 = vmatpush1.msra.mxu0 0.0
          %3578 = vmatprep.subr.mxu0 0.0
          %3579 = vmatpush1.msra.mxu0 0.0
          %3580 = vmatprep.subr.mxu0 0.0
          %3581 = vmatpush1.msra.mxu0 0.0
          %3582 = vmatprep.subr.mxu0 0.0
          %3583 = vmatpush1.msra.mxu0 0.0
          %3584 = vmatprep.subr.mxu0 0.0
          %3585 = vmatpush1.msra.mxu0 0.0
          %3586 = vmatprep.subr.mxu0 0.0
          %v3587 = vand.u32 %v3464, 4294901760
          %v3588 = vsub.f32 %v3464, %v3587
          %v3589 = vand.u32 %v3588, 4294901760
          %v3590 = vsub.f32 %v3588, %v3589
          %v3591 = vand.u32 %v3590, 4294901760
          %3592 = vmatpush1.msra.mxu0 %v3591
          %3593 = vmatprep.subr.mxu0 0.0
          %v3594 = vand.u32 %v3463, 4294901760
          %v3595 = vsub.f32 %v3463, %v3594
          %v3596 = vand.u32 %v3595, 4294901760
          %v3597 = vsub.f32 %v3595, %v3596
          %v3598 = vand.u32 %v3597, 4294901760
          %3599 = vmatpush1.msra.mxu0 %v3598
          %3600 = vmatprep.subr.mxu0 0.0
          %3601 = vmatpush2.msra.mxu0 0.0
          %3602 = vmatprep.subr.mxu0 0.0
          %3603 = vmatpush2.msra.mxu0 0.0
          %3604 = vmatprep.subr.mxu0 0.0
          %3605 = vmatpush2.msra.mxu0 0.0
          %3606 = vmatprep.subr.mxu0 0.0
          %3607 = vmatpush2.msra.mxu0 0.0
          %3608 = vmatprep.subr.mxu0 0.0
          %3609 = vmatpush2.msra.mxu0 0.0
          %3610 = vmatprep.subr.mxu0 0.0
          %3611 = vmatpush2.msra.mxu0 0.0
          %3612 = vmatprep.subr.mxu0 0.0
          %3613 = vmatpush2.msra.mxu0 0.0
          %3614 = vmatprep.subr.mxu0 0.0
          %3615 = vmatpush2.msra.mxu0 0.0
          %3616 = vmatprep.subr.mxu0 0.0
          %3617 = vmatpush2.msra.mxu0 0.0
          %3618 = vmatprep.subr.mxu0 0.0
          %3619 = vmatpush2.msra.mxu0 0.0
          %3620 = vmatprep.subr.mxu0 0.0
          %3621 = vmatpush2.msra.mxu0 0.0
          %3622 = vmatprep.subr.mxu0 0.0
          %3623 = vmatpush2.msra.mxu0 0.0
          %3624 = vmatprep.subr.mxu0 0.0
          %3625 = vmatpush2.msra.mxu0 0.0
          %3626 = vmatprep.subr.mxu0 0.0
          %3627 = vmatpush2.msra.mxu0 0.0
          %3628 = vmatprep.subr.mxu0 0.0
          %3629 = vmatpush2.msra.mxu0 0.0
          %3630 = vmatprep.subr.mxu0 0.0
          %3631 = vmatpush2.msra.mxu0 0.0
          %3632 = vmatprep.mubr.f32.mxu0 0.0
          %v3633 = vand.u32 %v3466, 4294901760
          %3634 = vmatmul.mubr.f32.gmra.mxu0 %v3633
          %v3635 = vpop.f32.mrf.mxu0
          %v3636 = vadd.f32 %v3545, %v3635
          %v3637 = vpop.f32.mrf.mxu0
          %3638 = vmatprep.mubr.f32.mxu0 0.0
          %v3639 = vand.u32 %v3469, 4294901760
          %3640 = vmatmul.mubr.f32.gmra.mxu0 %v3639
          %v3641 = vpop.f32.mrf.mxu0
          %v3642 = vadd.f32 %v3555, %v3641
          %v3643 = vpop.f32.mrf.mxu0
          %3644 = vdwg.mxu0
          %3645 = vmatprep.subr.mxu0 0.0
          %3646 = vmatpush1.msra.mxu0 0.0
          %3647 = vmatprep.subr.mxu0 0.0
          %3648 = vmatpush1.msra.mxu0 0.0
          %3649 = vmatprep.subr.mxu0 0.0
          %3650 = vmatpush1.msra.mxu0 0.0
          %3651 = vmatprep.subr.mxu0 0.0
          %3652 = vmatpush1.msra.mxu0 0.0
          %3653 = vmatprep.subr.mxu0 0.0
          %3654 = vmatpush1.msra.mxu0 0.0
          %3655 = vmatprep.subr.mxu0 0.0
          %3656 = vmatpush1.msra.mxu0 0.0
          %3657 = vmatprep.subr.mxu0 0.0
          %3658 = vmatpush1.msra.mxu0 0.0
          %3659 = vmatprep.subr.mxu0 0.0
          %3660 = vmatpush1.msra.mxu0 0.0
          %3661 = vmatprep.subr.mxu0 0.0
          %3662 = vmatpush1.msra.mxu0 0.0
          %3663 = vmatprep.subr.mxu0 0.0
          %3664 = vmatpush1.msra.mxu0 0.0
          %3665 = vmatprep.subr.mxu0 0.0
          %3666 = vmatpush1.msra.mxu0 0.0
          %3667 = vmatprep.subr.mxu0 0.0
          %3668 = vmatpush1.msra.mxu0 0.0
          %3669 = vmatprep.subr.mxu0 0.0
          %3670 = vmatpush1.msra.mxu0 0.0
          %3671 = vmatprep.subr.mxu0 0.0
          %3672 = vmatpush1.msra.mxu0 0.0
          %3673 = vmatprep.subr.mxu0 0.0
          %v3674 = vand.u32 %v3464, 4294901760
          %v3675 = vsub.f32 %v3464, %v3674
          %3676 = vmatpush1.msra.mxu0 %v3675
          %3677 = vmatprep.subr.mxu0 0.0
          %v3678 = vand.u32 %v3463, 4294901760
          %v3679 = vsub.f32 %v3463, %v3678
          %3680 = vmatpush1.msra.mxu0 %v3679
          %3681 = vmatprep.subr.mxu0 0.0
          %3682 = vmatpush2.msra.mxu0 0.0
          %3683 = vmatprep.subr.mxu0 0.0
          %3684 = vmatpush2.msra.mxu0 0.0
          %3685 = vmatprep.subr.mxu0 0.0
          %3686 = vmatpush2.msra.mxu0 0.0
          %3687 = vmatprep.subr.mxu0 0.0
          %3688 = vmatpush2.msra.mxu0 0.0
          %3689 = vmatprep.subr.mxu0 0.0
          %3690 = vmatpush2.msra.mxu0 0.0
          %3691 = vmatprep.subr.mxu0 0.0
          %3692 = vmatpush2.msra.mxu0 0.0
          %3693 = vmatprep.subr.mxu0 0.0
          %3694 = vmatpush2.msra.mxu0 0.0
          %3695 = vmatprep.subr.mxu0 0.0
          %3696 = vmatpush2.msra.mxu0 0.0
          %3697 = vmatprep.subr.mxu0 0.0
          %3698 = vmatpush2.msra.mxu0 0.0
          %3699 = vmatprep.subr.mxu0 0.0
          %3700 = vmatpush2.msra.mxu0 0.0
          %3701 = vmatprep.subr.mxu0 0.0
          %3702 = vmatpush2.msra.mxu0 0.0
          %3703 = vmatprep.subr.mxu0 0.0
          %3704 = vmatpush2.msra.mxu0 0.0
          %3705 = vmatprep.subr.mxu0 0.0
          %3706 = vmatpush2.msra.mxu0 0.0
          %3707 = vmatprep.subr.mxu0 0.0
          %3708 = vmatpush2.msra.mxu0 0.0
          %3709 = vmatprep.subr.mxu0 0.0
          %3710 = vmatpush2.msra.mxu0 0.0
          %3711 = vmatprep.subr.mxu0 0.0
          %3712 = vmatpush2.msra.mxu0 0.0
          %3713 = vmatprep.mubr.f32.mxu0 0.0
          %v3714 = vand.u32 %v3466, 4294901760
          %v3715 = vsub.f32 %v3466, %v3714
          %3716 = vmatmul.mubr.f32.gmra.mxu0 %v3715
          %v3717 = vpop.f32.mrf.mxu0
          %v3718 = vadd.f32 %v3636, %v3717
          %v3719 = vpop.f32.mrf.mxu0
          %3720 = vmatprep.mubr.f32.mxu0 0.0
          %v3721 = vand.u32 %v3469, 4294901760
          %v3722 = vsub.f32 %v3469, %v3721
          %3723 = vmatmul.mubr.f32.gmra.mxu0 %v3722
          %v3724 = vpop.f32.mrf.mxu0
          %v3725 = vadd.f32 %v3642, %v3724
          %v3726 = vpop.f32.mrf.mxu0
          %3727 = vdwg.mxu0
          %3728 = vmatprep.subr.mxu0 0.0
          %3729 = vmatpush1.msra.mxu0 0.0
          %3730 = vmatprep.subr.mxu0 0.0
          %3731 = vmatpush1.msra.mxu0 0.0
          %3732 = vmatprep.subr.mxu0 0.0
          %3733 = vmatpush1.msra.mxu0 0.0
          %3734 = vmatprep.subr.mxu0 0.0
          %3735 = vmatpush1.msra.mxu0 0.0
          %3736 = vmatprep.subr.mxu0 0.0
          %3737 = vmatpush1.msra.mxu0 0.0
          %3738 = vmatprep.subr.mxu0 0.0
          %3739 = vmatpush1.msra.mxu0 0.0
          %3740 = vmatprep.subr.mxu0 0.0
          %3741 = vmatpush1.msra.mxu0 0.0
          %3742 = vmatprep.subr.mxu0 0.0
          %3743 = vmatpush1.msra.mxu0 0.0
          %3744 = vmatprep.subr.mxu0 0.0
          %3745 = vmatpush1.msra.mxu0 0.0
          %3746 = vmatprep.subr.mxu0 0.0
          %3747 = vmatpush1.msra.mxu0 0.0
          %3748 = vmatprep.subr.mxu0 0.0
          %3749 = vmatpush1.msra.mxu0 0.0
          %3750 = vmatprep.subr.mxu0 0.0
          %3751 = vmatpush1.msra.mxu0 0.0
          %3752 = vmatprep.subr.mxu0 0.0
          %3753 = vmatpush1.msra.mxu0 0.0
          %3754 = vmatprep.subr.mxu0 0.0
          %3755 = vmatpush1.msra.mxu0 0.0
          %3756 = vmatprep.subr.mxu0 0.0
          %v3757 = vand.u32 %v3464, 4294901760
          %3758 = vmatpush1.msra.mxu0 %v3757
          %3759 = vmatprep.subr.mxu0 0.0
          %v3760 = vand.u32 %v3463, 4294901760
          %3761 = vmatpush1.msra.mxu0 %v3760
          %3762 = vmatprep.subr.mxu0 0.0
          %3763 = vmatpush2.msra.mxu0 0.0
          %3764 = vmatprep.subr.mxu0 0.0
          %3765 = vmatpush2.msra.mxu0 0.0
          %3766 = vmatprep.subr.mxu0 0.0
          %3767 = vmatpush2.msra.mxu0 0.0
          %3768 = vmatprep.subr.mxu0 0.0
          %3769 = vmatpush2.msra.mxu0 0.0
          %3770 = vmatprep.subr.mxu0 0.0
          %3771 = vmatpush2.msra.mxu0 0.0
          %3772 = vmatprep.subr.mxu0 0.0
          %3773 = vmatpush2.msra.mxu0 0.0
          %3774 = vmatprep.subr.mxu0 0.0
          %3775 = vmatpush2.msra.mxu0 0.0
          %3776 = vmatprep.subr.mxu0 0.0
          %3777 = vmatpush2.msra.mxu0 0.0
          %3778 = vmatprep.subr.mxu0 0.0
          %3779 = vmatpush2.msra.mxu0 0.0
          %3780 = vmatprep.subr.mxu0 0.0
          %3781 = vmatpush2.msra.mxu0 0.0
          %3782 = vmatprep.subr.mxu0 0.0
          %3783 = vmatpush2.msra.mxu0 0.0
          %3784 = vmatprep.subr.mxu0 0.0
          %3785 = vmatpush2.msra.mxu0 0.0
          %3786 = vmatprep.subr.mxu0 0.0
          %3787 = vmatpush2.msra.mxu0 0.0
          %3788 = vmatprep.subr.mxu0 0.0
          %3789 = vmatpush2.msra.mxu0 0.0
          %3790 = vmatprep.subr.mxu0 0.0
          %3791 = vmatpush2.msra.mxu0 0.0
          %3792 = vmatprep.subr.mxu0 0.0
          %3793 = vmatpush2.msra.mxu0 0.0
          %3794 = vmatprep.mubr.f32.mxu0 0.0
          %v3795 = vand.u32 %v3466, 4294901760
          %v3796 = vsub.f32 %v3466, %v3795
          %v3797 = vand.u32 %v3796, 4294901760
          %3798 = vmatmul.mubr.f32.gmra.mxu0 %v3797
          %v3799 = vpop.f32.mrf.mxu0
          %v3800 = vadd.f32 %v3718, %v3799
          %v3801 = vpop.f32.mrf.mxu0
          %3802 = vmatprep.mubr.f32.mxu0 0.0
          %v3803 = vand.u32 %v3469, 4294901760
          %v3804 = vsub.f32 %v3469, %v3803
          %v3805 = vand.u32 %v3804, 4294901760
          %3806 = vmatmul.mubr.f32.gmra.mxu0 %v3805
          %v3807 = vpop.f32.mrf.mxu0
          %v3808 = vadd.f32 %v3725, %v3807
          %v3809 = vpop.f32.mrf.mxu0
          %3810 = vdwg.mxu0
          %3811 = vmatprep.subr.mxu0 0.0
          %3812 = vmatpush1.msra.mxu0 0.0
          %3813 = vmatprep.subr.mxu0 0.0
          %3814 = vmatpush1.msra.mxu0 0.0
          %3815 = vmatprep.subr.mxu0 0.0
          %3816 = vmatpush1.msra.mxu0 0.0
          %3817 = vmatprep.subr.mxu0 0.0
          %3818 = vmatpush1.msra.mxu0 0.0
          %3819 = vmatprep.subr.mxu0 0.0
          %3820 = vmatpush1.msra.mxu0 0.0
          %3821 = vmatprep.subr.mxu0 0.0
          %3822 = vmatpush1.msra.mxu0 0.0
          %3823 = vmatprep.subr.mxu0 0.0
          %3824 = vmatpush1.msra.mxu0 0.0
          %3825 = vmatprep.subr.mxu0 0.0
          %3826 = vmatpush1.msra.mxu0 0.0
          %3827 = vmatprep.subr.mxu0 0.0
          %3828 = vmatpush1.msra.mxu0 0.0
          %3829 = vmatprep.subr.mxu0 0.0
          %3830 = vmatpush1.msra.mxu0 0.0
          %3831 = vmatprep.subr.mxu0 0.0
          %3832 = vmatpush1.msra.mxu0 0.0
          %3833 = vmatprep.subr.mxu0 0.0
          %3834 = vmatpush1.msra.mxu0 0.0
          %3835 = vmatprep.subr.mxu0 0.0
          %3836 = vmatpush1.msra.mxu0 0.0
          %3837 = vmatprep.subr.mxu0 0.0
          %3838 = vmatpush1.msra.mxu0 0.0
          %3839 = vmatprep.subr.mxu0 0.0
          %v3840 = vand.u32 %v3464, 4294901760
          %v3841 = vsub.f32 %v3464, %v3840
          %v3842 = vand.u32 %v3841, 4294901760
          %3843 = vmatpush1.msra.mxu0 %v3842
          %3844 = vmatprep.subr.mxu0 0.0
          %v3845 = vand.u32 %v3463, 4294901760
          %v3846 = vsub.f32 %v3463, %v3845
          %v3847 = vand.u32 %v3846, 4294901760
          %3848 = vmatpush1.msra.mxu0 %v3847
          %3849 = vmatprep.subr.mxu0 0.0
          %3850 = vmatpush2.msra.mxu0 0.0
          %3851 = vmatprep.subr.mxu0 0.0
          %3852 = vmatpush2.msra.mxu0 0.0
          %3853 = vmatprep.subr.mxu0 0.0
          %3854 = vmatpush2.msra.mxu0 0.0
          %3855 = vmatprep.subr.mxu0 0.0
          %3856 = vmatpush2.msra.mxu0 0.0
          %3857 = vmatprep.subr.mxu0 0.0
          %3858 = vmatpush2.msra.mxu0 0.0
          %3859 = vmatprep.subr.mxu0 0.0
          %3860 = vmatpush2.msra.mxu0 0.0
          %3861 = vmatprep.subr.mxu0 0.0
          %3862 = vmatpush2.msra.mxu0 0.0
          %3863 = vmatprep.subr.mxu0 0.0
          %3864 = vmatpush2.msra.mxu0 0.0
          %3865 = vmatprep.subr.mxu0 0.0
          %3866 = vmatpush2.msra.mxu0 0.0
          %3867 = vmatprep.subr.mxu0 0.0
          %3868 = vmatpush2.msra.mxu0 0.0
          %3869 = vmatprep.subr.mxu0 0.0
          %3870 = vmatpush2.msra.mxu0 0.0
          %3871 = vmatprep.subr.mxu0 0.0
          %3872 = vmatpush2.msra.mxu0 0.0
          %3873 = vmatprep.subr.mxu0 0.0
          %3874 = vmatpush2.msra.mxu0 0.0
          %3875 = vmatprep.subr.mxu0 0.0
          %3876 = vmatpush2.msra.mxu0 0.0
          %3877 = vmatprep.subr.mxu0 0.0
          %3878 = vmatpush2.msra.mxu0 0.0
          %3879 = vmatprep.subr.mxu0 0.0
          %3880 = vmatpush2.msra.mxu0 0.0
          %3881 = vmatprep.mubr.f32.mxu0 0.0
          %v3882 = vand.u32 %v3466, 4294901760
          %3883 = vmatmul.mubr.f32.gmra.mxu0 %v3882
          %v3884 = vpop.f32.mrf.mxu0
          %v3885 = vadd.f32 %v3800, %v3884
          %v3886 = vpop.f32.mrf.mxu0
          %3887 = vmatprep.mubr.f32.mxu0 0.0
          %v3888 = vand.u32 %v3469, 4294901760
          %3889 = vmatmul.mubr.f32.gmra.mxu0 %v3888
          %v3890 = vpop.f32.mrf.mxu0
          %v3891 = vadd.f32 %v3808, %v3890
          %v3892 = vpop.f32.mrf.mxu0
          %3893 = vdwg.mxu0
          %3894 = vmatprep.subr.mxu0 0.0
          %3895 = vmatpush1.msra.mxu0 0.0
          %3896 = vmatprep.subr.mxu0 0.0
          %3897 = vmatpush1.msra.mxu0 0.0
          %3898 = vmatprep.subr.mxu0 0.0
          %3899 = vmatpush1.msra.mxu0 0.0
          %3900 = vmatprep.subr.mxu0 0.0
          %3901 = vmatpush1.msra.mxu0 0.0
          %3902 = vmatprep.subr.mxu0 0.0
          %3903 = vmatpush1.msra.mxu0 0.0
          %3904 = vmatprep.subr.mxu0 0.0
          %3905 = vmatpush1.msra.mxu0 0.0
          %3906 = vmatprep.subr.mxu0 0.0
          %3907 = vmatpush1.msra.mxu0 0.0
          %3908 = vmatprep.subr.mxu0 0.0
          %3909 = vmatpush1.msra.mxu0 0.0
          %3910 = vmatprep.subr.mxu0 0.0
          %3911 = vmatpush1.msra.mxu0 0.0
          %3912 = vmatprep.subr.mxu0 0.0
          %3913 = vmatpush1.msra.mxu0 0.0
          %3914 = vmatprep.subr.mxu0 0.0
          %3915 = vmatpush1.msra.mxu0 0.0
          %3916 = vmatprep.subr.mxu0 0.0
          %3917 = vmatpush1.msra.mxu0 0.0
          %3918 = vmatprep.subr.mxu0 0.0
          %3919 = vmatpush1.msra.mxu0 0.0
          %3920 = vmatprep.subr.mxu0 0.0
          %3921 = vmatpush1.msra.mxu0 0.0
          %3922 = vmatprep.subr.mxu0 0.0
          %v3923 = vand.u32 %v3464, 4294901760
          %3924 = vmatpush1.msra.mxu0 %v3923
          %3925 = vmatprep.subr.mxu0 0.0
          %v3926 = vand.u32 %v3463, 4294901760
          %3927 = vmatpush1.msra.mxu0 %v3926
          %3928 = vmatprep.subr.mxu0 0.0
          %3929 = vmatpush2.msra.mxu0 0.0
          %3930 = vmatprep.subr.mxu0 0.0
          %3931 = vmatpush2.msra.mxu0 0.0
          %3932 = vmatprep.subr.mxu0 0.0
          %3933 = vmatpush2.msra.mxu0 0.0
          %3934 = vmatprep.subr.mxu0 0.0
          %3935 = vmatpush2.msra.mxu0 0.0
          %3936 = vmatprep.subr.mxu0 0.0
          %3937 = vmatpush2.msra.mxu0 0.0
          %3938 = vmatprep.subr.mxu0 0.0
          %3939 = vmatpush2.msra.mxu0 0.0
          %3940 = vmatprep.subr.mxu0 0.0
          %3941 = vmatpush2.msra.mxu0 0.0
          %3942 = vmatprep.subr.mxu0 0.0
          %3943 = vmatpush2.msra.mxu0 0.0
          %3944 = vmatprep.subr.mxu0 0.0
          %3945 = vmatpush2.msra.mxu0 0.0
          %3946 = vmatprep.subr.mxu0 0.0
          %3947 = vmatpush2.msra.mxu0 0.0
          %3948 = vmatprep.subr.mxu0 0.0
          %3949 = vmatpush2.msra.mxu0 0.0
          %3950 = vmatprep.subr.mxu0 0.0
          %3951 = vmatpush2.msra.mxu0 0.0
          %3952 = vmatprep.subr.mxu0 0.0
          %3953 = vmatpush2.msra.mxu0 0.0
          %3954 = vmatprep.subr.mxu0 0.0
          %3955 = vmatpush2.msra.mxu0 0.0
          %3956 = vmatprep.subr.mxu0 0.0
          %3957 = vmatpush2.msra.mxu0 0.0
          %3958 = vmatprep.subr.mxu0 0.0
          %3959 = vmatpush2.msra.mxu0 0.0
          %3960 = vmatprep.mubr.f32.mxu0 0.0
          %v3961 = vand.u32 %v3466, 4294901760
          %3962 = vmatmul.mubr.f32.gmra.mxu0 %v3961
          %v3963 = vpop.f32.mrf.mxu0
          %v3964 = vadd.f32 %v3885, %v3963
          %v3965 = vpop.f32.mrf.mxu0
          %3966 = vmatprep.mubr.f32.mxu0 0.0
          %v3967 = vand.u32 %v3469, 4294901760
          %3968 = vmatmul.mubr.f32.gmra.mxu0 %v3967
          %v3969 = vpop.f32.mrf.mxu0
          %v3970 = vadd.f32 %v3891, %v3969
          %v3971 = vpop.f32.mrf.mxu0
          %3972 = vdwg.mxu0
          %v3973 = vld [vmem:[#allocation11] sm:$0xff]
          %v3974 = vld [vmem:[#allocation11 + $0x8] sm:$0xff]
          %v3976 = vsel %vm394, %v3973, 0
          %v3979 = vsel %vm394, %v3974, 0
          %3981 = vmatprep.subr.mxu0 0.0
          %3982 = vmatpush1.msra.mxu0 0.0
          %3983 = vmatprep.subr.mxu0 0.0
          %3984 = vmatpush1.msra.mxu0 0.0
          %3985 = vmatprep.subr.mxu0 0.0
          %3986 = vmatpush1.msra.mxu0 0.0
          %3987 = vmatprep.subr.mxu0 0.0
          %3988 = vmatpush1.msra.mxu0 0.0
          %3989 = vmatprep.subr.mxu0 0.0
          %3990 = vmatpush1.msra.mxu0 0.0
          %3991 = vmatprep.subr.mxu0 0.0
          %3992 = vmatpush1.msra.mxu0 0.0
          %3993 = vmatprep.subr.mxu0 0.0
          %3994 = vmatpush1.msra.mxu0 0.0
          %3995 = vmatprep.subr.mxu0 0.0
          %3996 = vmatpush1.msra.mxu0 0.0
          %3997 = vmatprep.subr.mxu0 0.0
          %3998 = vmatpush1.msra.mxu0 0.0
          %3999 = vmatprep.subr.mxu0 0.0
          %4000 = vmatpush1.msra.mxu0 0.0
          %4001 = vmatprep.subr.mxu0 0.0
          %4002 = vmatpush1.msra.mxu0 0.0
          %4003 = vmatprep.subr.mxu0 0.0
          %4004 = vmatpush1.msra.mxu0 0.0
          %4005 = vmatprep.subr.mxu0 0.0
          %4006 = vmatpush1.msra.mxu0 0.0
          %4007 = vmatprep.subr.mxu0 0.0
          %4008 = vmatpush1.msra.mxu0 0.0
          %4009 = vmatprep.subr.mxu0 0.0
          %v4010 = vand.u32 %v3970, 4294901760
          %4011 = vmatpush1.msra.mxu0 %v4010
          %4012 = vmatprep.subr.mxu0 0.0
          %v4013 = vand.u32 %v3964, 4294901760
          %4014 = vmatpush1.msra.mxu0 %v4013
          %4015 = vmatprep.subr.mxu0 0.0
          %4016 = vmatpush2.msra.mxu0 0.0
          %4017 = vmatprep.subr.mxu0 0.0
          %4018 = vmatpush2.msra.mxu0 0.0
          %4019 = vmatprep.subr.mxu0 0.0
          %4020 = vmatpush2.msra.mxu0 0.0
          %4021 = vmatprep.subr.mxu0 0.0
          %4022 = vmatpush2.msra.mxu0 0.0
          %4023 = vmatprep.subr.mxu0 0.0
          %4024 = vmatpush2.msra.mxu0 0.0
          %4025 = vmatprep.subr.mxu0 0.0
          %4026 = vmatpush2.msra.mxu0 0.0
          %4027 = vmatprep.subr.mxu0 0.0
          %4028 = vmatpush2.msra.mxu0 0.0
          %4029 = vmatprep.subr.mxu0 0.0
          %4030 = vmatpush2.msra.mxu0 0.0
          %4031 = vmatprep.subr.mxu0 0.0
          %4032 = vmatpush2.msra.mxu0 0.0
          %4033 = vmatprep.subr.mxu0 0.0
          %4034 = vmatpush2.msra.mxu0 0.0
          %4035 = vmatprep.subr.mxu0 0.0
          %4036 = vmatpush2.msra.mxu0 0.0
          %4037 = vmatprep.subr.mxu0 0.0
          %4038 = vmatpush2.msra.mxu0 0.0
          %4039 = vmatprep.subr.mxu0 0.0
          %4040 = vmatpush2.msra.mxu0 0.0
          %4041 = vmatprep.subr.mxu0 0.0
          %4042 = vmatpush2.msra.mxu0 0.0
          %4043 = vmatprep.subr.mxu0 0.0
          %4044 = vmatpush2.msra.mxu0 0.0
          %4045 = vmatprep.subr.mxu0 0.0
          %4046 = vmatpush2.msra.mxu0 0.0
          %4047 = vmatprep.mubr.f32.mxu0 0.0
          %v4048 = vand.u32 %v3976, 4294901760
          %v4049 = vsub.f32 %v3976, %v4048
          %v4050 = vand.u32 %v4049, 4294901760
          %v4051 = vsub.f32 %v4049, %v4050
          %v4052 = vand.u32 %v4051, 4294901760
          %4053 = vmatmul.mubr.f32.gmra.mxu0 %v4052
          %v4054 = vpop.f32.mrf.mxu0
          %v4055 = vadd.f32 0.0, %v4054
          %v4056 = vpop.f32.mrf.mxu0
          %4057 = vmatprep.mubr.f32.mxu0 0.0
          %v4058 = vand.u32 %v3979, 4294901760
          %v4059 = vsub.f32 %v3979, %v4058
          %v4060 = vand.u32 %v4059, 4294901760
          %v4061 = vsub.f32 %v4059, %v4060
          %v4062 = vand.u32 %v4061, 4294901760
          %4063 = vmatmul.mubr.f32.gmra.mxu0 %v4062
          %v4064 = vpop.f32.mrf.mxu0
          %v4065 = vadd.f32 0.0, %v4064
          %v4066 = vpop.f32.mrf.mxu0
          %4067 = vdwg.mxu0
          %4068 = vmatprep.subr.mxu0 0.0
          %4069 = vmatpush1.msra.mxu0 0.0
          %4070 = vmatprep.subr.mxu0 0.0
          %4071 = vmatpush1.msra.mxu0 0.0
          %4072 = vmatprep.subr.mxu0 0.0
          %4073 = vmatpush1.msra.mxu0 0.0
          %4074 = vmatprep.subr.mxu0 0.0
          %4075 = vmatpush1.msra.mxu0 0.0
          %4076 = vmatprep.subr.mxu0 0.0
          %4077 = vmatpush1.msra.mxu0 0.0
          %4078 = vmatprep.subr.mxu0 0.0
          %4079 = vmatpush1.msra.mxu0 0.0
          %4080 = vmatprep.subr.mxu0 0.0
          %4081 = vmatpush1.msra.mxu0 0.0
          %4082 = vmatprep.subr.mxu0 0.0
          %4083 = vmatpush1.msra.mxu0 0.0
          %4084 = vmatprep.subr.mxu0 0.0
          %4085 = vmatpush1.msra.mxu0 0.0
          %4086 = vmatprep.subr.mxu0 0.0
          %4087 = vmatpush1.msra.mxu0 0.0
          %4088 = vmatprep.subr.mxu0 0.0
          %4089 = vmatpush1.msra.mxu0 0.0
          %4090 = vmatprep.subr.mxu0 0.0
          %4091 = vmatpush1.msra.mxu0 0.0
          %4092 = vmatprep.subr.mxu0 0.0
          %4093 = vmatpush1.msra.mxu0 0.0
          %4094 = vmatprep.subr.mxu0 0.0
          %4095 = vmatpush1.msra.mxu0 0.0
          %4096 = vmatprep.subr.mxu0 0.0
          %v4097 = vand.u32 %v3970, 4294901760
          %v4098 = vsub.f32 %v3970, %v4097
          %v4099 = vand.u32 %v4098, 4294901760
          %v4100 = vsub.f32 %v4098, %v4099
          %v4101 = vand.u32 %v4100, 4294901760
          %4102 = vmatpush1.msra.mxu0 %v4101
          %4103 = vmatprep.subr.mxu0 0.0
          %v4104 = vand.u32 %v3964, 4294901760
          %v4105 = vsub.f32 %v3964, %v4104
          %v4106 = vand.u32 %v4105, 4294901760
          %v4107 = vsub.f32 %v4105, %v4106
          %v4108 = vand.u32 %v4107, 4294901760
          %4109 = vmatpush1.msra.mxu0 %v4108
          %4110 = vmatprep.subr.mxu0 0.0
          %4111 = vmatpush2.msra.mxu0 0.0
          %4112 = vmatprep.subr.mxu0 0.0
          %4113 = vmatpush2.msra.mxu0 0.0
          %4114 = vmatprep.subr.mxu0 0.0
          %4115 = vmatpush2.msra.mxu0 0.0
          %4116 = vmatprep.subr.mxu0 0.0
          %4117 = vmatpush2.msra.mxu0 0.0
          %4118 = vmatprep.subr.mxu0 0.0
          %4119 = vmatpush2.msra.mxu0 0.0
          %4120 = vmatprep.subr.mxu0 0.0
          %4121 = vmatpush2.msra.mxu0 0.0
          %4122 = vmatprep.subr.mxu0 0.0
          %4123 = vmatpush2.msra.mxu0 0.0
          %4124 = vmatprep.subr.mxu0 0.0
          %4125 = vmatpush2.msra.mxu0 0.0
          %4126 = vmatprep.subr.mxu0 0.0
          %4127 = vmatpush2.msra.mxu0 0.0
          %4128 = vmatprep.subr.mxu0 0.0
          %4129 = vmatpush2.msra.mxu0 0.0
          %4130 = vmatprep.subr.mxu0 0.0
          %4131 = vmatpush2.msra.mxu0 0.0
          %4132 = vmatprep.subr.mxu0 0.0
          %4133 = vmatpush2.msra.mxu0 0.0
          %4134 = vmatprep.subr.mxu0 0.0
          %4135 = vmatpush2.msra.mxu0 0.0
          %4136 = vmatprep.subr.mxu0 0.0
          %4137 = vmatpush2.msra.mxu0 0.0
          %4138 = vmatprep.subr.mxu0 0.0
          %4139 = vmatpush2.msra.mxu0 0.0
          %4140 = vmatprep.subr.mxu0 0.0
          %4141 = vmatpush2.msra.mxu0 0.0
          %4142 = vmatprep.mubr.f32.mxu0 0.0
          %v4143 = vand.u32 %v3976, 4294901760
          %4144 = vmatmul.mubr.f32.gmra.mxu0 %v4143
          %v4145 = vpop.f32.mrf.mxu0
          %v4146 = vadd.f32 %v4055, %v4145
          %v4147 = vpop.f32.mrf.mxu0
          %4148 = vmatprep.mubr.f32.mxu0 0.0
          %v4149 = vand.u32 %v3979, 4294901760
          %4150 = vmatmul.mubr.f32.gmra.mxu0 %v4149
          %v4151 = vpop.f32.mrf.mxu0
          %v4152 = vadd.f32 %v4065, %v4151
          %v4153 = vpop.f32.mrf.mxu0
          %4154 = vdwg.mxu0
          %4155 = vmatprep.subr.mxu0 0.0
          %4156 = vmatpush1.msra.mxu0 0.0
          %4157 = vmatprep.subr.mxu0 0.0
          %4158 = vmatpush1.msra.mxu0 0.0
          %4159 = vmatprep.subr.mxu0 0.0
          %4160 = vmatpush1.msra.mxu0 0.0
          %4161 = vmatprep.subr.mxu0 0.0
          %4162 = vmatpush1.msra.mxu0 0.0
          %4163 = vmatprep.subr.mxu0 0.0
          %4164 = vmatpush1.msra.mxu0 0.0
          %4165 = vmatprep.subr.mxu0 0.0
          %4166 = vmatpush1.msra.mxu0 0.0
          %4167 = vmatprep.subr.mxu0 0.0
          %4168 = vmatpush1.msra.mxu0 0.0
          %4169 = vmatprep.subr.mxu0 0.0
          %4170 = vmatpush1.msra.mxu0 0.0
          %4171 = vmatprep.subr.mxu0 0.0
          %4172 = vmatpush1.msra.mxu0 0.0
          %4173 = vmatprep.subr.mxu0 0.0
          %4174 = vmatpush1.msra.mxu0 0.0
          %4175 = vmatprep.subr.mxu0 0.0
          %4176 = vmatpush1.msra.mxu0 0.0
          %4177 = vmatprep.subr.mxu0 0.0
          %4178 = vmatpush1.msra.mxu0 0.0
          %4179 = vmatprep.subr.mxu0 0.0
          %4180 = vmatpush1.msra.mxu0 0.0
          %4181 = vmatprep.subr.mxu0 0.0
          %4182 = vmatpush1.msra.mxu0 0.0
          %4183 = vmatprep.subr.mxu0 0.0
          %v4184 = vand.u32 %v3970, 4294901760
          %v4185 = vsub.f32 %v3970, %v4184
          %4186 = vmatpush1.msra.mxu0 %v4185
          %4187 = vmatprep.subr.mxu0 0.0
          %v4188 = vand.u32 %v3964, 4294901760
          %v4189 = vsub.f32 %v3964, %v4188
          %4190 = vmatpush1.msra.mxu0 %v4189
          %4191 = vmatprep.subr.mxu0 0.0
          %4192 = vmatpush2.msra.mxu0 0.0
          %4193 = vmatprep.subr.mxu0 0.0
          %4194 = vmatpush2.msra.mxu0 0.0
          %4195 = vmatprep.subr.mxu0 0.0
          %4196 = vmatpush2.msra.mxu0 0.0
          %4197 = vmatprep.subr.mxu0 0.0
          %4198 = vmatpush2.msra.mxu0 0.0
          %4199 = vmatprep.subr.mxu0 0.0
          %4200 = vmatpush2.msra.mxu0 0.0
          %4201 = vmatprep.subr.mxu0 0.0
          %4202 = vmatpush2.msra.mxu0 0.0
          %4203 = vmatprep.subr.mxu0 0.0
          %4204 = vmatpush2.msra.mxu0 0.0
          %4205 = vmatprep.subr.mxu0 0.0
          %4206 = vmatpush2.msra.mxu0 0.0
          %4207 = vmatprep.subr.mxu0 0.0
          %4208 = vmatpush2.msra.mxu0 0.0
          %4209 = vmatprep.subr.mxu0 0.0
          %4210 = vmatpush2.msra.mxu0 0.0
          %4211 = vmatprep.subr.mxu0 0.0
          %4212 = vmatpush2.msra.mxu0 0.0
          %4213 = vmatprep.subr.mxu0 0.0
          %4214 = vmatpush2.msra.mxu0 0.0
          %4215 = vmatprep.subr.mxu0 0.0
          %4216 = vmatpush2.msra.mxu0 0.0
          %4217 = vmatprep.subr.mxu0 0.0
          %4218 = vmatpush2.msra.mxu0 0.0
          %4219 = vmatprep.subr.mxu0 0.0
          %4220 = vmatpush2.msra.mxu0 0.0
          %4221 = vmatprep.subr.mxu0 0.0
          %4222 = vmatpush2.msra.mxu0 0.0
          %4223 = vmatprep.mubr.f32.mxu0 0.0
          %v4224 = vand.u32 %v3976, 4294901760
          %v4225 = vsub.f32 %v3976, %v4224
          %4226 = vmatmul.mubr.f32.gmra.mxu0 %v4225
          %v4227 = vpop.f32.mrf.mxu0
          %v4228 = vadd.f32 %v4146, %v4227
          %v4229 = vpop.f32.mrf.mxu0
          %4230 = vmatprep.mubr.f32.mxu0 0.0
          %v4231 = vand.u32 %v3979, 4294901760
          %v4232 = vsub.f32 %v3979, %v4231
          %4233 = vmatmul.mubr.f32.gmra.mxu0 %v4232
          %v4234 = vpop.f32.mrf.mxu0
          %v4235 = vadd.f32 %v4152, %v4234
          %v4236 = vpop.f32.mrf.mxu0
          %4237 = vdwg.mxu0
          %4238 = vmatprep.subr.mxu0 0.0
          %4239 = vmatpush1.msra.mxu0 0.0
          %4240 = vmatprep.subr.mxu0 0.0
          %4241 = vmatpush1.msra.mxu0 0.0
          %4242 = vmatprep.subr.mxu0 0.0
          %4243 = vmatpush1.msra.mxu0 0.0
          %4244 = vmatprep.subr.mxu0 0.0
          %4245 = vmatpush1.msra.mxu0 0.0
          %4246 = vmatprep.subr.mxu0 0.0
          %4247 = vmatpush1.msra.mxu0 0.0
          %4248 = vmatprep.subr.mxu0 0.0
          %4249 = vmatpush1.msra.mxu0 0.0
          %4250 = vmatprep.subr.mxu0 0.0
          %4251 = vmatpush1.msra.mxu0 0.0
          %4252 = vmatprep.subr.mxu0 0.0
          %4253 = vmatpush1.msra.mxu0 0.0
          %4254 = vmatprep.subr.mxu0 0.0
          %4255 = vmatpush1.msra.mxu0 0.0
          %4256 = vmatprep.subr.mxu0 0.0
          %4257 = vmatpush1.msra.mxu0 0.0
          %4258 = vmatprep.subr.mxu0 0.0
          %4259 = vmatpush1.msra.mxu0 0.0
          %4260 = vmatprep.subr.mxu0 0.0
          %4261 = vmatpush1.msra.mxu0 0.0
          %4262 = vmatprep.subr.mxu0 0.0
          %4263 = vmatpush1.msra.mxu0 0.0
          %4264 = vmatprep.subr.mxu0 0.0
          %4265 = vmatpush1.msra.mxu0 0.0
          %4266 = vmatprep.subr.mxu0 0.0
          %v4267 = vand.u32 %v3970, 4294901760
          %4268 = vmatpush1.msra.mxu0 %v4267
          %4269 = vmatprep.subr.mxu0 0.0
          %v4270 = vand.u32 %v3964, 4294901760
          %4271 = vmatpush1.msra.mxu0 %v4270
          %4272 = vmatprep.subr.mxu0 0.0
          %4273 = vmatpush2.msra.mxu0 0.0
          %4274 = vmatprep.subr.mxu0 0.0
          %4275 = vmatpush2.msra.mxu0 0.0
          %4276 = vmatprep.subr.mxu0 0.0
          %4277 = vmatpush2.msra.mxu0 0.0
          %4278 = vmatprep.subr.mxu0 0.0
          %4279 = vmatpush2.msra.mxu0 0.0
          %4280 = vmatprep.subr.mxu0 0.0
          %4281 = vmatpush2.msra.mxu0 0.0
          %4282 = vmatprep.subr.mxu0 0.0
          %4283 = vmatpush2.msra.mxu0 0.0
          %4284 = vmatprep.subr.mxu0 0.0
          %4285 = vmatpush2.msra.mxu0 0.0
          %4286 = vmatprep.subr.mxu0 0.0
          %4287 = vmatpush2.msra.mxu0 0.0
          %4288 = vmatprep.subr.mxu0 0.0
          %4289 = vmatpush2.msra.mxu0 0.0
          %4290 = vmatprep.subr.mxu0 0.0
          %4291 = vmatpush2.msra.mxu0 0.0
          %4292 = vmatprep.subr.mxu0 0.0
          %4293 = vmatpush2.msra.mxu0 0.0
          %4294 = vmatprep.subr.mxu0 0.0
          %4295 = vmatpush2.msra.mxu0 0.0
          %4296 = vmatprep.subr.mxu0 0.0
          %4297 = vmatpush2.msra.mxu0 0.0
          %4298 = vmatprep.subr.mxu0 0.0
          %4299 = vmatpush2.msra.mxu0 0.0
          %4300 = vmatprep.subr.mxu0 0.0
          %4301 = vmatpush2.msra.mxu0 0.0
          %4302 = vmatprep.subr.mxu0 0.0
          %4303 = vmatpush2.msra.mxu0 0.0
          %4304 = vmatprep.mubr.f32.mxu0 0.0
          %v4305 = vand.u32 %v3976, 4294901760
          %v4306 = vsub.f32 %v3976, %v4305
          %v4307 = vand.u32 %v4306, 4294901760
          %4308 = vmatmul.mubr.f32.gmra.mxu0 %v4307
          %v4309 = vpop.f32.mrf.mxu0
          %v4310 = vadd.f32 %v4228, %v4309
          %v4311 = vpop.f32.mrf.mxu0
          %4312 = vmatprep.mubr.f32.mxu0 0.0
          %v4313 = vand.u32 %v3979, 4294901760
          %v4314 = vsub.f32 %v3979, %v4313
          %v4315 = vand.u32 %v4314, 4294901760
          %4316 = vmatmul.mubr.f32.gmra.mxu0 %v4315
          %v4317 = vpop.f32.mrf.mxu0
          %v4318 = vadd.f32 %v4235, %v4317
          %v4319 = vpop.f32.mrf.mxu0
          %4320 = vdwg.mxu0
          %4321 = vmatprep.subr.mxu0 0.0
          %4322 = vmatpush1.msra.mxu0 0.0
          %4323 = vmatprep.subr.mxu0 0.0
          %4324 = vmatpush1.msra.mxu0 0.0
          %4325 = vmatprep.subr.mxu0 0.0
          %4326 = vmatpush1.msra.mxu0 0.0
          %4327 = vmatprep.subr.mxu0 0.0
          %4328 = vmatpush1.msra.mxu0 0.0
          %4329 = vmatprep.subr.mxu0 0.0
          %4330 = vmatpush1.msra.mxu0 0.0
          %4331 = vmatprep.subr.mxu0 0.0
          %4332 = vmatpush1.msra.mxu0 0.0
          %4333 = vmatprep.subr.mxu0 0.0
          %4334 = vmatpush1.msra.mxu0 0.0
          %4335 = vmatprep.subr.mxu0 0.0
          %4336 = vmatpush1.msra.mxu0 0.0
          %4337 = vmatprep.subr.mxu0 0.0
          %4338 = vmatpush1.msra.mxu0 0.0
          %4339 = vmatprep.subr.mxu0 0.0
          %4340 = vmatpush1.msra.mxu0 0.0
          %4341 = vmatprep.subr.mxu0 0.0
          %4342 = vmatpush1.msra.mxu0 0.0
          %4343 = vmatprep.subr.mxu0 0.0
          %4344 = vmatpush1.msra.mxu0 0.0
          %4345 = vmatprep.subr.mxu0 0.0
          %4346 = vmatpush1.msra.mxu0 0.0
          %4347 = vmatprep.subr.mxu0 0.0
          %4348 = vmatpush1.msra.mxu0 0.0
          %4349 = vmatprep.subr.mxu0 0.0
          %v4350 = vand.u32 %v3970, 4294901760
          %v4351 = vsub.f32 %v3970, %v4350
          %v4352 = vand.u32 %v4351, 4294901760
          %4353 = vmatpush1.msra.mxu0 %v4352
          %4354 = vmatprep.subr.mxu0 0.0
          %v4355 = vand.u32 %v3964, 4294901760
          %v4356 = vsub.f32 %v3964, %v4355
          %v4357 = vand.u32 %v4356, 4294901760
          %4358 = vmatpush1.msra.mxu0 %v4357
          %4359 = vmatprep.subr.mxu0 0.0
          %4360 = vmatpush2.msra.mxu0 0.0
          %4361 = vmatprep.subr.mxu0 0.0
          %4362 = vmatpush2.msra.mxu0 0.0
          %4363 = vmatprep.subr.mxu0 0.0
          %4364 = vmatpush2.msra.mxu0 0.0
          %4365 = vmatprep.subr.mxu0 0.0
          %4366 = vmatpush2.msra.mxu0 0.0
          %4367 = vmatprep.subr.mxu0 0.0
          %4368 = vmatpush2.msra.mxu0 0.0
          %4369 = vmatprep.subr.mxu0 0.0
          %4370 = vmatpush2.msra.mxu0 0.0
          %4371 = vmatprep.subr.mxu0 0.0
          %4372 = vmatpush2.msra.mxu0 0.0
          %4373 = vmatprep.subr.mxu0 0.0
          %4374 = vmatpush2.msra.mxu0 0.0
          %4375 = vmatprep.subr.mxu0 0.0
          %4376 = vmatpush2.msra.mxu0 0.0
          %4377 = vmatprep.subr.mxu0 0.0
          %4378 = vmatpush2.msra.mxu0 0.0
          %4379 = vmatprep.subr.mxu0 0.0
          %4380 = vmatpush2.msra.mxu0 0.0
          %4381 = vmatprep.subr.mxu0 0.0
          %4382 = vmatpush2.msra.mxu0 0.0
          %4383 = vmatprep.subr.mxu0 0.0
          %4384 = vmatpush2.msra.mxu0 0.0
          %4385 = vmatprep.subr.mxu0 0.0
          %4386 = vmatpush2.msra.mxu0 0.0
          %4387 = vmatprep.subr.mxu0 0.0
          %4388 = vmatpush2.msra.mxu0 0.0
          %4389 = vmatprep.subr.mxu0 0.0
          %4390 = vmatpush2.msra.mxu0 0.0
          %4391 = vmatprep.mubr.f32.mxu0 0.0
          %v4392 = vand.u32 %v3976, 4294901760
          %4393 = vmatmul.mubr.f32.gmra.mxu0 %v4392
          %v4394 = vpop.f32.mrf.mxu0
          %v4395 = vadd.f32 %v4310, %v4394
          %v4396 = vpop.f32.mrf.mxu0
          %4397 = vmatprep.mubr.f32.mxu0 0.0
          %v4398 = vand.u32 %v3979, 4294901760
          %4399 = vmatmul.mubr.f32.gmra.mxu0 %v4398
          %v4400 = vpop.f32.mrf.mxu0
          %v4401 = vadd.f32 %v4318, %v4400
          %v4402 = vpop.f32.mrf.mxu0
          %4403 = vdwg.mxu0
          %4404 = vmatprep.subr.mxu0 0.0
          %4405 = vmatpush1.msra.mxu0 0.0
          %4406 = vmatprep.subr.mxu0 0.0
          %4407 = vmatpush1.msra.mxu0 0.0
          %4408 = vmatprep.subr.mxu0 0.0
          %4409 = vmatpush1.msra.mxu0 0.0
          %4410 = vmatprep.subr.mxu0 0.0
          %4411 = vmatpush1.msra.mxu0 0.0
          %4412 = vmatprep.subr.mxu0 0.0
          %4413 = vmatpush1.msra.mxu0 0.0
          %4414 = vmatprep.subr.mxu0 0.0
          %4415 = vmatpush1.msra.mxu0 0.0
          %4416 = vmatprep.subr.mxu0 0.0
          %4417 = vmatpush1.msra.mxu0 0.0
          %4418 = vmatprep.subr.mxu0 0.0
          %4419 = vmatpush1.msra.mxu0 0.0
          %4420 = vmatprep.subr.mxu0 0.0
          %4421 = vmatpush1.msra.mxu0 0.0
          %4422 = vmatprep.subr.mxu0 0.0
          %4423 = vmatpush1.msra.mxu0 0.0
          %4424 = vmatprep.subr.mxu0 0.0
          %4425 = vmatpush1.msra.mxu0 0.0
          %4426 = vmatprep.subr.mxu0 0.0
          %4427 = vmatpush1.msra.mxu0 0.0
          %4428 = vmatprep.subr.mxu0 0.0
          %4429 = vmatpush1.msra.mxu0 0.0
          %4430 = vmatprep.subr.mxu0 0.0
          %4431 = vmatpush1.msra.mxu0 0.0
          %4432 = vmatprep.subr.mxu0 0.0
          %v4433 = vand.u32 %v3970, 4294901760
          %4434 = vmatpush1.msra.mxu0 %v4433
          %4435 = vmatprep.subr.mxu0 0.0
          %v4436 = vand.u32 %v3964, 4294901760
          %4437 = vmatpush1.msra.mxu0 %v4436
          %4438 = vmatprep.subr.mxu0 0.0
          %4439 = vmatpush2.msra.mxu0 0.0
          %4440 = vmatprep.subr.mxu0 0.0
          %4441 = vmatpush2.msra.mxu0 0.0
          %4442 = vmatprep.subr.mxu0 0.0
          %4443 = vmatpush2.msra.mxu0 0.0
          %4444 = vmatprep.subr.mxu0 0.0
          %4445 = vmatpush2.msra.mxu0 0.0
          %4446 = vmatprep.subr.mxu0 0.0
          %4447 = vmatpush2.msra.mxu0 0.0
          %4448 = vmatprep.subr.mxu0 0.0
          %4449 = vmatpush2.msra.mxu0 0.0
          %4450 = vmatprep.subr.mxu0 0.0
          %4451 = vmatpush2.msra.mxu0 0.0
          %4452 = vmatprep.subr.mxu0 0.0
          %4453 = vmatpush2.msra.mxu0 0.0
          %4454 = vmatprep.subr.mxu0 0.0
          %4455 = vmatpush2.msra.mxu0 0.0
          %4456 = vmatprep.subr.mxu0 0.0
          %4457 = vmatpush2.msra.mxu0 0.0
          %4458 = vmatprep.subr.mxu0 0.0
          %4459 = vmatpush2.msra.mxu0 0.0
          %4460 = vmatprep.subr.mxu0 0.0
          %4461 = vmatpush2.msra.mxu0 0.0
          %4462 = vmatprep.subr.mxu0 0.0
          %4463 = vmatpush2.msra.mxu0 0.0
          %4464 = vmatprep.subr.mxu0 0.0
          %4465 = vmatpush2.msra.mxu0 0.0
          %4466 = vmatprep.subr.mxu0 0.0
          %4467 = vmatpush2.msra.mxu0 0.0
          %4468 = vmatprep.subr.mxu0 0.0
          %4469 = vmatpush2.msra.mxu0 0.0
          %4470 = vmatprep.mubr.f32.mxu0 0.0
          %v4471 = vand.u32 %v3976, 4294901760
          %4472 = vmatmul.mubr.f32.gmra.mxu0 %v4471
          %v4473 = vpop.f32.mrf.mxu0
          %v4474 = vadd.f32 %v4395, %v4473
          %v4475 = vpop.f32.mrf.mxu0
          %4476 = vmatprep.mubr.f32.mxu0 0.0
          %v4477 = vand.u32 %v3979, 4294901760
          %4478 = vmatmul.mubr.f32.gmra.mxu0 %v4477
          %v4479 = vpop.f32.mrf.mxu0
          %v4480 = vadd.f32 %v4401, %v4479
          %v4481 = vpop.f32.mrf.mxu0
          %4482 = vdwg.mxu0
          %s4483 = scalar_lea.vmem [#allocation5], %s1413
          %4484 = vst.msk [vmem:[%s4483] sm:$0xff] %vm394, %v4474
          %4485 = vst.msk [vmem:[%s4483 + $0x8] sm:$0xff] %vm394, %v4480
          %v4486 = vld [vmem:[#allocation12] sm:$0xff]
          %v4487 = vld [vmem:[#allocation12 + $0x8] sm:$0xff]
          %v4489 = vsel %vm394, %v377, 0
          %v4492 = vsel %vm394, %v378, 0
          %4494 = vmatprep.subr.mxu0 0.0
          %4495 = vmatpush1.msra.mxu0 0.0
          %4496 = vmatprep.subr.mxu0 0.0
          %4497 = vmatpush1.msra.mxu0 0.0
          %4498 = vmatprep.subr.mxu0 0.0
          %4499 = vmatpush1.msra.mxu0 0.0
          %4500 = vmatprep.subr.mxu0 0.0
          %4501 = vmatpush1.msra.mxu0 0.0
          %4502 = vmatprep.subr.mxu0 0.0
          %4503 = vmatpush1.msra.mxu0 0.0
          %4504 = vmatprep.subr.mxu0 0.0
          %4505 = vmatpush1.msra.mxu0 0.0
          %4506 = vmatprep.subr.mxu0 0.0
          %4507 = vmatpush1.msra.mxu0 0.0
          %4508 = vmatprep.subr.mxu0 0.0
          %4509 = vmatpush1.msra.mxu0 0.0
          %4510 = vmatprep.subr.mxu0 0.0
          %4511 = vmatpush1.msra.mxu0 0.0
          %4512 = vmatprep.subr.mxu0 0.0
          %4513 = vmatpush1.msra.mxu0 0.0
          %4514 = vmatprep.subr.mxu0 0.0
          %4515 = vmatpush1.msra.mxu0 0.0
          %4516 = vmatprep.subr.mxu0 0.0
          %4517 = vmatpush1.msra.mxu0 0.0
          %4518 = vmatprep.subr.mxu0 0.0
          %4519 = vmatpush1.msra.mxu0 0.0
          %4520 = vmatprep.subr.mxu0 0.0
          %4521 = vmatpush1.msra.mxu0 0.0
          %4522 = vmatprep.subr.mxu0 0.0
          %v4523 = vand.u32 %v4487, 4294901760
          %4524 = vmatpush1.msra.mxu0 %v4523
          %4525 = vmatprep.subr.mxu0 0.0
          %v4526 = vand.u32 %v4486, 4294901760
          %4527 = vmatpush1.msra.mxu0 %v4526
          %4528 = vmatprep.subr.mxu0 0.0
          %4529 = vmatpush2.msra.mxu0 0.0
          %4530 = vmatprep.subr.mxu0 0.0
          %4531 = vmatpush2.msra.mxu0 0.0
          %4532 = vmatprep.subr.mxu0 0.0
          %4533 = vmatpush2.msra.mxu0 0.0
          %4534 = vmatprep.subr.mxu0 0.0
          %4535 = vmatpush2.msra.mxu0 0.0
          %4536 = vmatprep.subr.mxu0 0.0
          %4537 = vmatpush2.msra.mxu0 0.0
          %4538 = vmatprep.subr.mxu0 0.0
          %4539 = vmatpush2.msra.mxu0 0.0
          %4540 = vmatprep.subr.mxu0 0.0
          %4541 = vmatpush2.msra.mxu0 0.0
          %4542 = vmatprep.subr.mxu0 0.0
          %4543 = vmatpush2.msra.mxu0 0.0
          %4544 = vmatprep.subr.mxu0 0.0
          %4545 = vmatpush2.msra.mxu0 0.0
          %4546 = vmatprep.subr.mxu0 0.0
          %4547 = vmatpush2.msra.mxu0 0.0
          %4548 = vmatprep.subr.mxu0 0.0
          %4549 = vmatpush2.msra.mxu0 0.0
          %4550 = vmatprep.subr.mxu0 0.0
          %4551 = vmatpush2.msra.mxu0 0.0
          %4552 = vmatprep.subr.mxu0 0.0
          %4553 = vmatpush2.msra.mxu0 0.0
          %4554 = vmatprep.subr.mxu0 0.0
          %4555 = vmatpush2.msra.mxu0 0.0
          %4556 = vmatprep.subr.mxu0 0.0
          %4557 = vmatpush2.msra.mxu0 0.0
          %4558 = vmatprep.subr.mxu0 0.0
          %4559 = vmatpush2.msra.mxu0 0.0
          %4560 = vmatprep.mubr.f32.mxu0 0.0
          %v4561 = vand.u32 %v4489, 4294901760
          %v4562 = vsub.f32 %v4489, %v4561
          %v4563 = vand.u32 %v4562, 4294901760
          %v4564 = vsub.f32 %v4562, %v4563
          %v4565 = vand.u32 %v4564, 4294901760
          %4566 = vmatmul.mubr.f32.gmra.mxu0 %v4565
          %v4567 = vpop.f32.mrf.mxu0
          %v4568 = vadd.f32 0.0, %v4567
          %v4569 = vpop.f32.mrf.mxu0
          %4570 = vmatprep.mubr.f32.mxu0 0.0
          %v4571 = vand.u32 %v4492, 4294901760
          %v4572 = vsub.f32 %v4492, %v4571
          %v4573 = vand.u32 %v4572, 4294901760
          %v4574 = vsub.f32 %v4572, %v4573
          %v4575 = vand.u32 %v4574, 4294901760
          %4576 = vmatmul.mubr.f32.gmra.mxu0 %v4575
          %v4577 = vpop.f32.mrf.mxu0
          %v4578 = vadd.f32 0.0, %v4577
          %v4579 = vpop.f32.mrf.mxu0
          %4580 = vdwg.mxu0
          %4581 = vmatprep.subr.mxu0 0.0
          %4582 = vmatpush1.msra.mxu0 0.0
          %4583 = vmatprep.subr.mxu0 0.0
          %4584 = vmatpush1.msra.mxu0 0.0
          %4585 = vmatprep.subr.mxu0 0.0
          %4586 = vmatpush1.msra.mxu0 0.0
          %4587 = vmatprep.subr.mxu0 0.0
          %4588 = vmatpush1.msra.mxu0 0.0
          %4589 = vmatprep.subr.mxu0 0.0
          %4590 = vmatpush1.msra.mxu0 0.0
          %4591 = vmatprep.subr.mxu0 0.0
          %4592 = vmatpush1.msra.mxu0 0.0
          %4593 = vmatprep.subr.mxu0 0.0
          %4594 = vmatpush1.msra.mxu0 0.0
          %4595 = vmatprep.subr.mxu0 0.0
          %4596 = vmatpush1.msra.mxu0 0.0
          %4597 = vmatprep.subr.mxu0 0.0
          %4598 = vmatpush1.msra.mxu0 0.0
          %4599 = vmatprep.subr.mxu0 0.0
          %4600 = vmatpush1.msra.mxu0 0.0
          %4601 = vmatprep.subr.mxu0 0.0
          %4602 = vmatpush1.msra.mxu0 0.0
          %4603 = vmatprep.subr.mxu0 0.0
          %4604 = vmatpush1.msra.mxu0 0.0
          %4605 = vmatprep.subr.mxu0 0.0
          %4606 = vmatpush1.msra.mxu0 0.0
          %4607 = vmatprep.subr.mxu0 0.0
          %4608 = vmatpush1.msra.mxu0 0.0
          %4609 = vmatprep.subr.mxu0 0.0
          %v4610 = vand.u32 %v4487, 4294901760
          %v4611 = vsub.f32 %v4487, %v4610
          %v4612 = vand.u32 %v4611, 4294901760
          %v4613 = vsub.f32 %v4611, %v4612
          %v4614 = vand.u32 %v4613, 4294901760
          %4615 = vmatpush1.msra.mxu0 %v4614
          %4616 = vmatprep.subr.mxu0 0.0
          %v4617 = vand.u32 %v4486, 4294901760
          %v4618 = vsub.f32 %v4486, %v4617
          %v4619 = vand.u32 %v4618, 4294901760
          %v4620 = vsub.f32 %v4618, %v4619
          %v4621 = vand.u32 %v4620, 4294901760
          %4622 = vmatpush1.msra.mxu0 %v4621
          %4623 = vmatprep.subr.mxu0 0.0
          %4624 = vmatpush2.msra.mxu0 0.0
          %4625 = vmatprep.subr.mxu0 0.0
          %4626 = vmatpush2.msra.mxu0 0.0
          %4627 = vmatprep.subr.mxu0 0.0
          %4628 = vmatpush2.msra.mxu0 0.0
          %4629 = vmatprep.subr.mxu0 0.0
          %4630 = vmatpush2.msra.mxu0 0.0
          %4631 = vmatprep.subr.mxu0 0.0
          %4632 = vmatpush2.msra.mxu0 0.0
          %4633 = vmatprep.subr.mxu0 0.0
          %4634 = vmatpush2.msra.mxu0 0.0
          %4635 = vmatprep.subr.mxu0 0.0
          %4636 = vmatpush2.msra.mxu0 0.0
          %4637 = vmatprep.subr.mxu0 0.0
          %4638 = vmatpush2.msra.mxu0 0.0
          %4639 = vmatprep.subr.mxu0 0.0
          %4640 = vmatpush2.msra.mxu0 0.0
          %4641 = vmatprep.subr.mxu0 0.0
          %4642 = vmatpush2.msra.mxu0 0.0
          %4643 = vmatprep.subr.mxu0 0.0
          %4644 = vmatpush2.msra.mxu0 0.0
          %4645 = vmatprep.subr.mxu0 0.0
          %4646 = vmatpush2.msra.mxu0 0.0
          %4647 = vmatprep.subr.mxu0 0.0
          %4648 = vmatpush2.msra.mxu0 0.0
          %4649 = vmatprep.subr.mxu0 0.0
          %4650 = vmatpush2.msra.mxu0 0.0
          %4651 = vmatprep.subr.mxu0 0.0
          %4652 = vmatpush2.msra.mxu0 0.0
          %4653 = vmatprep.subr.mxu0 0.0
          %4654 = vmatpush2.msra.mxu0 0.0
          %4655 = vmatprep.mubr.f32.mxu0 0.0
          %v4656 = vand.u32 %v4489, 4294901760
          %4657 = vmatmul.mubr.f32.gmra.mxu0 %v4656
          %v4658 = vpop.f32.mrf.mxu0
          %v4659 = vadd.f32 %v4568, %v4658
          %v4660 = vpop.f32.mrf.mxu0
          %4661 = vmatprep.mubr.f32.mxu0 0.0
          %v4662 = vand.u32 %v4492, 4294901760
          %4663 = vmatmul.mubr.f32.gmra.mxu0 %v4662
          %v4664 = vpop.f32.mrf.mxu0
          %v4665 = vadd.f32 %v4578, %v4664
          %v4666 = vpop.f32.mrf.mxu0
          %4667 = vdwg.mxu0
          %4668 = vmatprep.subr.mxu0 0.0
          %4669 = vmatpush1.msra.mxu0 0.0
          %4670 = vmatprep.subr.mxu0 0.0
          %4671 = vmatpush1.msra.mxu0 0.0
          %4672 = vmatprep.subr.mxu0 0.0
          %4673 = vmatpush1.msra.mxu0 0.0
          %4674 = vmatprep.subr.mxu0 0.0
          %4675 = vmatpush1.msra.mxu0 0.0
          %4676 = vmatprep.subr.mxu0 0.0
          %4677 = vmatpush1.msra.mxu0 0.0
          %4678 = vmatprep.subr.mxu0 0.0
          %4679 = vmatpush1.msra.mxu0 0.0
          %4680 = vmatprep.subr.mxu0 0.0
          %4681 = vmatpush1.msra.mxu0 0.0
          %4682 = vmatprep.subr.mxu0 0.0
          %4683 = vmatpush1.msra.mxu0 0.0
          %4684 = vmatprep.subr.mxu0 0.0
          %4685 = vmatpush1.msra.mxu0 0.0
          %4686 = vmatprep.subr.mxu0 0.0
          %4687 = vmatpush1.msra.mxu0 0.0
          %4688 = vmatprep.subr.mxu0 0.0
          %4689 = vmatpush1.msra.mxu0 0.0
          %4690 = vmatprep.subr.mxu0 0.0
          %4691 = vmatpush1.msra.mxu0 0.0
          %4692 = vmatprep.subr.mxu0 0.0
          %4693 = vmatpush1.msra.mxu0 0.0
          %4694 = vmatprep.subr.mxu0 0.0
          %4695 = vmatpush1.msra.mxu0 0.0
          %4696 = vmatprep.subr.mxu0 0.0
          %v4697 = vand.u32 %v4487, 4294901760
          %v4698 = vsub.f32 %v4487, %v4697
          %4699 = vmatpush1.msra.mxu0 %v4698
          %4700 = vmatprep.subr.mxu0 0.0
          %v4701 = vand.u32 %v4486, 4294901760
          %v4702 = vsub.f32 %v4486, %v4701
          %4703 = vmatpush1.msra.mxu0 %v4702
          %4704 = vmatprep.subr.mxu0 0.0
          %4705 = vmatpush2.msra.mxu0 0.0
          %4706 = vmatprep.subr.mxu0 0.0
          %4707 = vmatpush2.msra.mxu0 0.0
          %4708 = vmatprep.subr.mxu0 0.0
          %4709 = vmatpush2.msra.mxu0 0.0
          %4710 = vmatprep.subr.mxu0 0.0
          %4711 = vmatpush2.msra.mxu0 0.0
          %4712 = vmatprep.subr.mxu0 0.0
          %4713 = vmatpush2.msra.mxu0 0.0
          %4714 = vmatprep.subr.mxu0 0.0
          %4715 = vmatpush2.msra.mxu0 0.0
          %4716 = vmatprep.subr.mxu0 0.0
          %4717 = vmatpush2.msra.mxu0 0.0
          %4718 = vmatprep.subr.mxu0 0.0
          %4719 = vmatpush2.msra.mxu0 0.0
          %4720 = vmatprep.subr.mxu0 0.0
          %4721 = vmatpush2.msra.mxu0 0.0
          %4722 = vmatprep.subr.mxu0 0.0
          %4723 = vmatpush2.msra.mxu0 0.0
          %4724 = vmatprep.subr.mxu0 0.0
          %4725 = vmatpush2.msra.mxu0 0.0
          %4726 = vmatprep.subr.mxu0 0.0
          %4727 = vmatpush2.msra.mxu0 0.0
          %4728 = vmatprep.subr.mxu0 0.0
          %4729 = vmatpush2.msra.mxu0 0.0
          %4730 = vmatprep.subr.mxu0 0.0
          %4731 = vmatpush2.msra.mxu0 0.0
          %4732 = vmatprep.subr.mxu0 0.0
          %4733 = vmatpush2.msra.mxu0 0.0
          %4734 = vmatprep.subr.mxu0 0.0
          %4735 = vmatpush2.msra.mxu0 0.0
          %4736 = vmatprep.mubr.f32.mxu0 0.0
          %v4737 = vand.u32 %v4489, 4294901760
          %v4738 = vsub.f32 %v4489, %v4737
          %4739 = vmatmul.mubr.f32.gmra.mxu0 %v4738
          %v4740 = vpop.f32.mrf.mxu0
          %v4741 = vadd.f32 %v4659, %v4740
          %v4742 = vpop.f32.mrf.mxu0
          %4743 = vmatprep.mubr.f32.mxu0 0.0
          %v4744 = vand.u32 %v4492, 4294901760
          %v4745 = vsub.f32 %v4492, %v4744
          %4746 = vmatmul.mubr.f32.gmra.mxu0 %v4745
          %v4747 = vpop.f32.mrf.mxu0
          %v4748 = vadd.f32 %v4665, %v4747
          %v4749 = vpop.f32.mrf.mxu0
          %4750 = vdwg.mxu0
          %4751 = vmatprep.subr.mxu0 0.0
          %4752 = vmatpush1.msra.mxu0 0.0
          %4753 = vmatprep.subr.mxu0 0.0
          %4754 = vmatpush1.msra.mxu0 0.0
          %4755 = vmatprep.subr.mxu0 0.0
          %4756 = vmatpush1.msra.mxu0 0.0
          %4757 = vmatprep.subr.mxu0 0.0
          %4758 = vmatpush1.msra.mxu0 0.0
          %4759 = vmatprep.subr.mxu0 0.0
          %4760 = vmatpush1.msra.mxu0 0.0
          %4761 = vmatprep.subr.mxu0 0.0
          %4762 = vmatpush1.msra.mxu0 0.0
          %4763 = vmatprep.subr.mxu0 0.0
          %4764 = vmatpush1.msra.mxu0 0.0
          %4765 = vmatprep.subr.mxu0 0.0
          %4766 = vmatpush1.msra.mxu0 0.0
          %4767 = vmatprep.subr.mxu0 0.0
          %4768 = vmatpush1.msra.mxu0 0.0
          %4769 = vmatprep.subr.mxu0 0.0
          %4770 = vmatpush1.msra.mxu0 0.0
          %4771 = vmatprep.subr.mxu0 0.0
          %4772 = vmatpush1.msra.mxu0 0.0
          %4773 = vmatprep.subr.mxu0 0.0
          %4774 = vmatpush1.msra.mxu0 0.0
          %4775 = vmatprep.subr.mxu0 0.0
          %4776 = vmatpush1.msra.mxu0 0.0
          %4777 = vmatprep.subr.mxu0 0.0
          %4778 = vmatpush1.msra.mxu0 0.0
          %4779 = vmatprep.subr.mxu0 0.0
          %v4780 = vand.u32 %v4487, 4294901760
          %4781 = vmatpush1.msra.mxu0 %v4780
          %4782 = vmatprep.subr.mxu0 0.0
          %v4783 = vand.u32 %v4486, 4294901760
          %4784 = vmatpush1.msra.mxu0 %v4783
          %4785 = vmatprep.subr.mxu0 0.0
          %4786 = vmatpush2.msra.mxu0 0.0
          %4787 = vmatprep.subr.mxu0 0.0
          %4788 = vmatpush2.msra.mxu0 0.0
          %4789 = vmatprep.subr.mxu0 0.0
          %4790 = vmatpush2.msra.mxu0 0.0
          %4791 = vmatprep.subr.mxu0 0.0
          %4792 = vmatpush2.msra.mxu0 0.0
          %4793 = vmatprep.subr.mxu0 0.0
          %4794 = vmatpush2.msra.mxu0 0.0
          %4795 = vmatprep.subr.mxu0 0.0
          %4796 = vmatpush2.msra.mxu0 0.0
          %4797 = vmatprep.subr.mxu0 0.0
          %4798 = vmatpush2.msra.mxu0 0.0
          %4799 = vmatprep.subr.mxu0 0.0
          %4800 = vmatpush2.msra.mxu0 0.0
          %4801 = vmatprep.subr.mxu0 0.0
          %4802 = vmatpush2.msra.mxu0 0.0
          %4803 = vmatprep.subr.mxu0 0.0
          %4804 = vmatpush2.msra.mxu0 0.0
          %4805 = vmatprep.subr.mxu0 0.0
          %4806 = vmatpush2.msra.mxu0 0.0
          %4807 = vmatprep.subr.mxu0 0.0
          %4808 = vmatpush2.msra.mxu0 0.0
          %4809 = vmatprep.subr.mxu0 0.0
          %4810 = vmatpush2.msra.mxu0 0.0
          %4811 = vmatprep.subr.mxu0 0.0
          %4812 = vmatpush2.msra.mxu0 0.0
          %4813 = vmatprep.subr.mxu0 0.0
          %4814 = vmatpush2.msra.mxu0 0.0
          %4815 = vmatprep.subr.mxu0 0.0
          %4816 = vmatpush2.msra.mxu0 0.0
          %4817 = vmatprep.mubr.f32.mxu0 0.0
          %v4818 = vand.u32 %v4489, 4294901760
          %v4819 = vsub.f32 %v4489, %v4818
          %v4820 = vand.u32 %v4819, 4294901760
          %4821 = vmatmul.mubr.f32.gmra.mxu0 %v4820
          %v4822 = vpop.f32.mrf.mxu0
          %v4823 = vadd.f32 %v4741, %v4822
          %v4824 = vpop.f32.mrf.mxu0
          %4825 = vmatprep.mubr.f32.mxu0 0.0
          %v4826 = vand.u32 %v4492, 4294901760
          %v4827 = vsub.f32 %v4492, %v4826
          %v4828 = vand.u32 %v4827, 4294901760
          %4829 = vmatmul.mubr.f32.gmra.mxu0 %v4828
          %v4830 = vpop.f32.mrf.mxu0
          %v4831 = vadd.f32 %v4748, %v4830
          %v4832 = vpop.f32.mrf.mxu0
          %4833 = vdwg.mxu0
          %4834 = vmatprep.subr.mxu0 0.0
          %4835 = vmatpush1.msra.mxu0 0.0
          %4836 = vmatprep.subr.mxu0 0.0
          %4837 = vmatpush1.msra.mxu0 0.0
          %4838 = vmatprep.subr.mxu0 0.0
          %4839 = vmatpush1.msra.mxu0 0.0
          %4840 = vmatprep.subr.mxu0 0.0
          %4841 = vmatpush1.msra.mxu0 0.0
          %4842 = vmatprep.subr.mxu0 0.0
          %4843 = vmatpush1.msra.mxu0 0.0
          %4844 = vmatprep.subr.mxu0 0.0
          %4845 = vmatpush1.msra.mxu0 0.0
          %4846 = vmatprep.subr.mxu0 0.0
          %4847 = vmatpush1.msra.mxu0 0.0
          %4848 = vmatprep.subr.mxu0 0.0
          %4849 = vmatpush1.msra.mxu0 0.0
          %4850 = vmatprep.subr.mxu0 0.0
          %4851 = vmatpush1.msra.mxu0 0.0
          %4852 = vmatprep.subr.mxu0 0.0
          %4853 = vmatpush1.msra.mxu0 0.0
          %4854 = vmatprep.subr.mxu0 0.0
          %4855 = vmatpush1.msra.mxu0 0.0
          %4856 = vmatprep.subr.mxu0 0.0
          %4857 = vmatpush1.msra.mxu0 0.0
          %4858 = vmatprep.subr.mxu0 0.0
          %4859 = vmatpush1.msra.mxu0 0.0
          %4860 = vmatprep.subr.mxu0 0.0
          %4861 = vmatpush1.msra.mxu0 0.0
          %4862 = vmatprep.subr.mxu0 0.0
          %v4863 = vand.u32 %v4487, 4294901760
          %v4864 = vsub.f32 %v4487, %v4863
          %v4865 = vand.u32 %v4864, 4294901760
          %4866 = vmatpush1.msra.mxu0 %v4865
          %4867 = vmatprep.subr.mxu0 0.0
          %v4868 = vand.u32 %v4486, 4294901760
          %v4869 = vsub.f32 %v4486, %v4868
          %v4870 = vand.u32 %v4869, 4294901760
          %4871 = vmatpush1.msra.mxu0 %v4870
          %4872 = vmatprep.subr.mxu0 0.0
          %4873 = vmatpush2.msra.mxu0 0.0
          %4874 = vmatprep.subr.mxu0 0.0
          %4875 = vmatpush2.msra.mxu0 0.0
          %4876 = vmatprep.subr.mxu0 0.0
          %4877 = vmatpush2.msra.mxu0 0.0
          %4878 = vmatprep.subr.mxu0 0.0
          %4879 = vmatpush2.msra.mxu0 0.0
          %4880 = vmatprep.subr.mxu0 0.0
          %4881 = vmatpush2.msra.mxu0 0.0
          %4882 = vmatprep.subr.mxu0 0.0
          %4883 = vmatpush2.msra.mxu0 0.0
          %4884 = vmatprep.subr.mxu0 0.0
          %4885 = vmatpush2.msra.mxu0 0.0
          %4886 = vmatprep.subr.mxu0 0.0
          %4887 = vmatpush2.msra.mxu0 0.0
          %4888 = vmatprep.subr.mxu0 0.0
          %4889 = vmatpush2.msra.mxu0 0.0
          %4890 = vmatprep.subr.mxu0 0.0
          %4891 = vmatpush2.msra.mxu0 0.0
          %4892 = vmatprep.subr.mxu0 0.0
          %4893 = vmatpush2.msra.mxu0 0.0
          %4894 = vmatprep.subr.mxu0 0.0
          %4895 = vmatpush2.msra.mxu0 0.0
          %4896 = vmatprep.subr.mxu0 0.0
          %4897 = vmatpush2.msra.mxu0 0.0
          %4898 = vmatprep.subr.mxu0 0.0
          %4899 = vmatpush2.msra.mxu0 0.0
          %4900 = vmatprep.subr.mxu0 0.0
          %4901 = vmatpush2.msra.mxu0 0.0
          %4902 = vmatprep.subr.mxu0 0.0
          %4903 = vmatpush2.msra.mxu0 0.0
          %4904 = vmatprep.mubr.f32.mxu0 0.0
          %v4905 = vand.u32 %v4489, 4294901760
          %4906 = vmatmul.mubr.f32.gmra.mxu0 %v4905
          %v4907 = vpop.f32.mrf.mxu0
          %v4908 = vadd.f32 %v4823, %v4907
          %v4909 = vpop.f32.mrf.mxu0
          %4910 = vmatprep.mubr.f32.mxu0 0.0
          %v4911 = vand.u32 %v4492, 4294901760
          %4912 = vmatmul.mubr.f32.gmra.mxu0 %v4911
          %v4913 = vpop.f32.mrf.mxu0
          %v4914 = vadd.f32 %v4831, %v4913
          %v4915 = vpop.f32.mrf.mxu0
          %4916 = vdwg.mxu0
          %4917 = vmatprep.subr.mxu0 0.0
          %4918 = vmatpush1.msra.mxu0 0.0
          %4919 = vmatprep.subr.mxu0 0.0
          %4920 = vmatpush1.msra.mxu0 0.0
          %4921 = vmatprep.subr.mxu0 0.0
          %4922 = vmatpush1.msra.mxu0 0.0
          %4923 = vmatprep.subr.mxu0 0.0
          %4924 = vmatpush1.msra.mxu0 0.0
          %4925 = vmatprep.subr.mxu0 0.0
          %4926 = vmatpush1.msra.mxu0 0.0
          %4927 = vmatprep.subr.mxu0 0.0
          %4928 = vmatpush1.msra.mxu0 0.0
          %4929 = vmatprep.subr.mxu0 0.0
          %4930 = vmatpush1.msra.mxu0 0.0
          %4931 = vmatprep.subr.mxu0 0.0
          %4932 = vmatpush1.msra.mxu0 0.0
          %4933 = vmatprep.subr.mxu0 0.0
          %4934 = vmatpush1.msra.mxu0 0.0
          %4935 = vmatprep.subr.mxu0 0.0
          %4936 = vmatpush1.msra.mxu0 0.0
          %4937 = vmatprep.subr.mxu0 0.0
          %4938 = vmatpush1.msra.mxu0 0.0
          %4939 = vmatprep.subr.mxu0 0.0
          %4940 = vmatpush1.msra.mxu0 0.0
          %4941 = vmatprep.subr.mxu0 0.0
          %4942 = vmatpush1.msra.mxu0 0.0
          %4943 = vmatprep.subr.mxu0 0.0
          %4944 = vmatpush1.msra.mxu0 0.0
          %4945 = vmatprep.subr.mxu0 0.0
          %v4946 = vand.u32 %v4487, 4294901760
          %4947 = vmatpush1.msra.mxu0 %v4946
          %4948 = vmatprep.subr.mxu0 0.0
          %v4949 = vand.u32 %v4486, 4294901760
          %4950 = vmatpush1.msra.mxu0 %v4949
          %4951 = vmatprep.subr.mxu0 0.0
          %4952 = vmatpush2.msra.mxu0 0.0
          %4953 = vmatprep.subr.mxu0 0.0
          %4954 = vmatpush2.msra.mxu0 0.0
          %4955 = vmatprep.subr.mxu0 0.0
          %4956 = vmatpush2.msra.mxu0 0.0
          %4957 = vmatprep.subr.mxu0 0.0
          %4958 = vmatpush2.msra.mxu0 0.0
          %4959 = vmatprep.subr.mxu0 0.0
          %4960 = vmatpush2.msra.mxu0 0.0
          %4961 = vmatprep.subr.mxu0 0.0
          %4962 = vmatpush2.msra.mxu0 0.0
          %4963 = vmatprep.subr.mxu0 0.0
          %4964 = vmatpush2.msra.mxu0 0.0
          %4965 = vmatprep.subr.mxu0 0.0
          %4966 = vmatpush2.msra.mxu0 0.0
          %4967 = vmatprep.subr.mxu0 0.0
          %4968 = vmatpush2.msra.mxu0 0.0
          %4969 = vmatprep.subr.mxu0 0.0
          %4970 = vmatpush2.msra.mxu0 0.0
          %4971 = vmatprep.subr.mxu0 0.0
          %4972 = vmatpush2.msra.mxu0 0.0
          %4973 = vmatprep.subr.mxu0 0.0
          %4974 = vmatpush2.msra.mxu0 0.0
          %4975 = vmatprep.subr.mxu0 0.0
          %4976 = vmatpush2.msra.mxu0 0.0
          %4977 = vmatprep.subr.mxu0 0.0
          %4978 = vmatpush2.msra.mxu0 0.0
          %4979 = vmatprep.subr.mxu0 0.0
          %4980 = vmatpush2.msra.mxu0 0.0
          %4981 = vmatprep.subr.mxu0 0.0
          %4982 = vmatpush2.msra.mxu0 0.0
          %4983 = vmatprep.mubr.f32.mxu0 0.0
          %v4984 = vand.u32 %v4489, 4294901760
          %4985 = vmatmul.mubr.f32.gmra.mxu0 %v4984
          %v4986 = vpop.f32.mrf.mxu0
          %v4987 = vadd.f32 %v4908, %v4986
          %v4988 = vpop.f32.mrf.mxu0
          %4989 = vmatprep.mubr.f32.mxu0 0.0
          %v4990 = vand.u32 %v4492, 4294901760
          %4991 = vmatmul.mubr.f32.gmra.mxu0 %v4990
          %v4992 = vpop.f32.mrf.mxu0
          %v4993 = vadd.f32 %v4914, %v4992
          %v4994 = vpop.f32.mrf.mxu0
          %4995 = vdwg.mxu0
          %v4996 = vld [vmem:[#allocation11] sm:$0xff]
          %v4997 = vld [vmem:[#allocation11 + $0x8] sm:$0xff]
          %v4999 = vsel %vm394, %v4996, 0
          %v5002 = vsel %vm394, %v4997, 0
          %5004 = vmatprep.subr.mxu0 0.0
          %5005 = vmatpush1.msra.mxu0 0.0
          %5006 = vmatprep.subr.mxu0 0.0
          %5007 = vmatpush1.msra.mxu0 0.0
          %5008 = vmatprep.subr.mxu0 0.0
          %5009 = vmatpush1.msra.mxu0 0.0
          %5010 = vmatprep.subr.mxu0 0.0
          %5011 = vmatpush1.msra.mxu0 0.0
          %5012 = vmatprep.subr.mxu0 0.0
          %5013 = vmatpush1.msra.mxu0 0.0
          %5014 = vmatprep.subr.mxu0 0.0
          %5015 = vmatpush1.msra.mxu0 0.0
          %5016 = vmatprep.subr.mxu0 0.0
          %5017 = vmatpush1.msra.mxu0 0.0
          %5018 = vmatprep.subr.mxu0 0.0
          %5019 = vmatpush1.msra.mxu0 0.0
          %5020 = vmatprep.subr.mxu0 0.0
          %5021 = vmatpush1.msra.mxu0 0.0
          %5022 = vmatprep.subr.mxu0 0.0
          %5023 = vmatpush1.msra.mxu0 0.0
          %5024 = vmatprep.subr.mxu0 0.0
          %5025 = vmatpush1.msra.mxu0 0.0
          %5026 = vmatprep.subr.mxu0 0.0
          %5027 = vmatpush1.msra.mxu0 0.0
          %5028 = vmatprep.subr.mxu0 0.0
          %5029 = vmatpush1.msra.mxu0 0.0
          %5030 = vmatprep.subr.mxu0 0.0
          %5031 = vmatpush1.msra.mxu0 0.0
          %5032 = vmatprep.subr.mxu0 0.0
          %v5033 = vand.u32 %v4993, 4294901760
          %5034 = vmatpush1.msra.mxu0 %v5033
          %5035 = vmatprep.subr.mxu0 0.0
          %v5036 = vand.u32 %v4987, 4294901760
          %5037 = vmatpush1.msra.mxu0 %v5036
          %5038 = vmatprep.subr.mxu0 0.0
          %5039 = vmatpush2.msra.mxu0 0.0
          %5040 = vmatprep.subr.mxu0 0.0
          %5041 = vmatpush2.msra.mxu0 0.0
          %5042 = vmatprep.subr.mxu0 0.0
          %5043 = vmatpush2.msra.mxu0 0.0
          %5044 = vmatprep.subr.mxu0 0.0
          %5045 = vmatpush2.msra.mxu0 0.0
          %5046 = vmatprep.subr.mxu0 0.0
          %5047 = vmatpush2.msra.mxu0 0.0
          %5048 = vmatprep.subr.mxu0 0.0
          %5049 = vmatpush2.msra.mxu0 0.0
          %5050 = vmatprep.subr.mxu0 0.0
          %5051 = vmatpush2.msra.mxu0 0.0
          %5052 = vmatprep.subr.mxu0 0.0
          %5053 = vmatpush2.msra.mxu0 0.0
          %5054 = vmatprep.subr.mxu0 0.0
          %5055 = vmatpush2.msra.mxu0 0.0
          %5056 = vmatprep.subr.mxu0 0.0
          %5057 = vmatpush2.msra.mxu0 0.0
          %5058 = vmatprep.subr.mxu0 0.0
          %5059 = vmatpush2.msra.mxu0 0.0
          %5060 = vmatprep.subr.mxu0 0.0
          %5061 = vmatpush2.msra.mxu0 0.0
          %5062 = vmatprep.subr.mxu0 0.0
          %5063 = vmatpush2.msra.mxu0 0.0
          %5064 = vmatprep.subr.mxu0 0.0
          %5065 = vmatpush2.msra.mxu0 0.0
          %5066 = vmatprep.subr.mxu0 0.0
          %5067 = vmatpush2.msra.mxu0 0.0
          %5068 = vmatprep.subr.mxu0 0.0
          %5069 = vmatpush2.msra.mxu0 0.0
          %5070 = vmatprep.mubr.f32.mxu0 0.0
          %v5071 = vand.u32 %v4999, 4294901760
          %v5072 = vsub.f32 %v4999, %v5071
          %v5073 = vand.u32 %v5072, 4294901760
          %v5074 = vsub.f32 %v5072, %v5073
          %v5075 = vand.u32 %v5074, 4294901760
          %5076 = vmatmul.mubr.f32.gmra.mxu0 %v5075
          %v5077 = vpop.f32.mrf.mxu0
          %v5078 = vadd.f32 0.0, %v5077
          %v5079 = vpop.f32.mrf.mxu0
          %5080 = vmatprep.mubr.f32.mxu0 0.0
          %v5081 = vand.u32 %v5002, 4294901760
          %v5082 = vsub.f32 %v5002, %v5081
          %v5083 = vand.u32 %v5082, 4294901760
          %v5084 = vsub.f32 %v5082, %v5083
          %v5085 = vand.u32 %v5084, 4294901760
          %5086 = vmatmul.mubr.f32.gmra.mxu0 %v5085
          %v5087 = vpop.f32.mrf.mxu0
          %v5088 = vadd.f32 0.0, %v5087
          %v5089 = vpop.f32.mrf.mxu0
          %5090 = vdwg.mxu0
          %5091 = vmatprep.subr.mxu0 0.0
          %5092 = vmatpush1.msra.mxu0 0.0
          %5093 = vmatprep.subr.mxu0 0.0
          %5094 = vmatpush1.msra.mxu0 0.0
          %5095 = vmatprep.subr.mxu0 0.0
          %5096 = vmatpush1.msra.mxu0 0.0
          %5097 = vmatprep.subr.mxu0 0.0
          %5098 = vmatpush1.msra.mxu0 0.0
          %5099 = vmatprep.subr.mxu0 0.0
          %5100 = vmatpush1.msra.mxu0 0.0
          %5101 = vmatprep.subr.mxu0 0.0
          %5102 = vmatpush1.msra.mxu0 0.0
          %5103 = vmatprep.subr.mxu0 0.0
          %5104 = vmatpush1.msra.mxu0 0.0
          %5105 = vmatprep.subr.mxu0 0.0
          %5106 = vmatpush1.msra.mxu0 0.0
          %5107 = vmatprep.subr.mxu0 0.0
          %5108 = vmatpush1.msra.mxu0 0.0
          %5109 = vmatprep.subr.mxu0 0.0
          %5110 = vmatpush1.msra.mxu0 0.0
          %5111 = vmatprep.subr.mxu0 0.0
          %5112 = vmatpush1.msra.mxu0 0.0
          %5113 = vmatprep.subr.mxu0 0.0
          %5114 = vmatpush1.msra.mxu0 0.0
          %5115 = vmatprep.subr.mxu0 0.0
          %5116 = vmatpush1.msra.mxu0 0.0
          %5117 = vmatprep.subr.mxu0 0.0
          %5118 = vmatpush1.msra.mxu0 0.0
          %5119 = vmatprep.subr.mxu0 0.0
          %v5120 = vand.u32 %v4993, 4294901760
          %v5121 = vsub.f32 %v4993, %v5120
          %v5122 = vand.u32 %v5121, 4294901760
          %v5123 = vsub.f32 %v5121, %v5122
          %v5124 = vand.u32 %v5123, 4294901760
          %5125 = vmatpush1.msra.mxu0 %v5124
          %5126 = vmatprep.subr.mxu0 0.0
          %v5127 = vand.u32 %v4987, 4294901760
          %v5128 = vsub.f32 %v4987, %v5127
          %v5129 = vand.u32 %v5128, 4294901760
          %v5130 = vsub.f32 %v5128, %v5129
          %v5131 = vand.u32 %v5130, 4294901760
          %5132 = vmatpush1.msra.mxu0 %v5131
          %5133 = vmatprep.subr.mxu0 0.0
          %5134 = vmatpush2.msra.mxu0 0.0
          %5135 = vmatprep.subr.mxu0 0.0
          %5136 = vmatpush2.msra.mxu0 0.0
          %5137 = vmatprep.subr.mxu0 0.0
          %5138 = vmatpush2.msra.mxu0 0.0
          %5139 = vmatprep.subr.mxu0 0.0
          %5140 = vmatpush2.msra.mxu0 0.0
          %5141 = vmatprep.subr.mxu0 0.0
          %5142 = vmatpush2.msra.mxu0 0.0
          %5143 = vmatprep.subr.mxu0 0.0
          %5144 = vmatpush2.msra.mxu0 0.0
          %5145 = vmatprep.subr.mxu0 0.0
          %5146 = vmatpush2.msra.mxu0 0.0
          %5147 = vmatprep.subr.mxu0 0.0
          %5148 = vmatpush2.msra.mxu0 0.0
          %5149 = vmatprep.subr.mxu0 0.0
          %5150 = vmatpush2.msra.mxu0 0.0
          %5151 = vmatprep.subr.mxu0 0.0
          %5152 = vmatpush2.msra.mxu0 0.0
          %5153 = vmatprep.subr.mxu0 0.0
          %5154 = vmatpush2.msra.mxu0 0.0
          %5155 = vmatprep.subr.mxu0 0.0
          %5156 = vmatpush2.msra.mxu0 0.0
          %5157 = vmatprep.subr.mxu0 0.0
          %5158 = vmatpush2.msra.mxu0 0.0
          %5159 = vmatprep.subr.mxu0 0.0
          %5160 = vmatpush2.msra.mxu0 0.0
          %5161 = vmatprep.subr.mxu0 0.0
          %5162 = vmatpush2.msra.mxu0 0.0
          %5163 = vmatprep.subr.mxu0 0.0
          %5164 = vmatpush2.msra.mxu0 0.0
          %5165 = vmatprep.mubr.f32.mxu0 0.0
          %v5166 = vand.u32 %v4999, 4294901760
          %5167 = vmatmul.mubr.f32.gmra.mxu0 %v5166
          %v5168 = vpop.f32.mrf.mxu0
          %v5169 = vadd.f32 %v5078, %v5168
          %v5170 = vpop.f32.mrf.mxu0
          %5171 = vmatprep.mubr.f32.mxu0 0.0
          %v5172 = vand.u32 %v5002, 4294901760
          %5173 = vmatmul.mubr.f32.gmra.mxu0 %v5172
          %v5174 = vpop.f32.mrf.mxu0
          %v5175 = vadd.f32 %v5088, %v5174
          %v5176 = vpop.f32.mrf.mxu0
          %5177 = vdwg.mxu0
          %5178 = vmatprep.subr.mxu0 0.0
          %5179 = vmatpush1.msra.mxu0 0.0
          %5180 = vmatprep.subr.mxu0 0.0
          %5181 = vmatpush1.msra.mxu0 0.0
          %5182 = vmatprep.subr.mxu0 0.0
          %5183 = vmatpush1.msra.mxu0 0.0
          %5184 = vmatprep.subr.mxu0 0.0
          %5185 = vmatpush1.msra.mxu0 0.0
          %5186 = vmatprep.subr.mxu0 0.0
          %5187 = vmatpush1.msra.mxu0 0.0
          %5188 = vmatprep.subr.mxu0 0.0
          %5189 = vmatpush1.msra.mxu0 0.0
          %5190 = vmatprep.subr.mxu0 0.0
          %5191 = vmatpush1.msra.mxu0 0.0
          %5192 = vmatprep.subr.mxu0 0.0
          %5193 = vmatpush1.msra.mxu0 0.0
          %5194 = vmatprep.subr.mxu0 0.0
          %5195 = vmatpush1.msra.mxu0 0.0
          %5196 = vmatprep.subr.mxu0 0.0
          %5197 = vmatpush1.msra.mxu0 0.0
          %5198 = vmatprep.subr.mxu0 0.0
          %5199 = vmatpush1.msra.mxu0 0.0
          %5200 = vmatprep.subr.mxu0 0.0
          %5201 = vmatpush1.msra.mxu0 0.0
          %5202 = vmatprep.subr.mxu0 0.0
          %5203 = vmatpush1.msra.mxu0 0.0
          %5204 = vmatprep.subr.mxu0 0.0
          %5205 = vmatpush1.msra.mxu0 0.0
          %5206 = vmatprep.subr.mxu0 0.0
          %v5207 = vand.u32 %v4993, 4294901760
          %v5208 = vsub.f32 %v4993, %v5207
          %5209 = vmatpush1.msra.mxu0 %v5208
          %5210 = vmatprep.subr.mxu0 0.0
          %v5211 = vand.u32 %v4987, 4294901760
          %v5212 = vsub.f32 %v4987, %v5211
          %5213 = vmatpush1.msra.mxu0 %v5212
          %5214 = vmatprep.subr.mxu0 0.0
          %5215 = vmatpush2.msra.mxu0 0.0
          %5216 = vmatprep.subr.mxu0 0.0
          %5217 = vmatpush2.msra.mxu0 0.0
          %5218 = vmatprep.subr.mxu0 0.0
          %5219 = vmatpush2.msra.mxu0 0.0
          %5220 = vmatprep.subr.mxu0 0.0
          %5221 = vmatpush2.msra.mxu0 0.0
          %5222 = vmatprep.subr.mxu0 0.0
          %5223 = vmatpush2.msra.mxu0 0.0
          %5224 = vmatprep.subr.mxu0 0.0
          %5225 = vmatpush2.msra.mxu0 0.0
          %5226 = vmatprep.subr.mxu0 0.0
          %5227 = vmatpush2.msra.mxu0 0.0
          %5228 = vmatprep.subr.mxu0 0.0
          %5229 = vmatpush2.msra.mxu0 0.0
          %5230 = vmatprep.subr.mxu0 0.0
          %5231 = vmatpush2.msra.mxu0 0.0
          %5232 = vmatprep.subr.mxu0 0.0
          %5233 = vmatpush2.msra.mxu0 0.0
          %5234 = vmatprep.subr.mxu0 0.0
          %5235 = vmatpush2.msra.mxu0 0.0
          %5236 = vmatprep.subr.mxu0 0.0
          %5237 = vmatpush2.msra.mxu0 0.0
          %5238 = vmatprep.subr.mxu0 0.0
          %5239 = vmatpush2.msra.mxu0 0.0
          %5240 = vmatprep.subr.mxu0 0.0
          %5241 = vmatpush2.msra.mxu0 0.0
          %5242 = vmatprep.subr.mxu0 0.0
          %5243 = vmatpush2.msra.mxu0 0.0
          %5244 = vmatprep.subr.mxu0 0.0
          %5245 = vmatpush2.msra.mxu0 0.0
          %5246 = vmatprep.mubr.f32.mxu0 0.0
          %v5247 = vand.u32 %v4999, 4294901760
          %v5248 = vsub.f32 %v4999, %v5247
          %5249 = vmatmul.mubr.f32.gmra.mxu0 %v5248
          %v5250 = vpop.f32.mrf.mxu0
          %v5251 = vadd.f32 %v5169, %v5250
          %v5252 = vpop.f32.mrf.mxu0
          %5253 = vmatprep.mubr.f32.mxu0 0.0
          %v5254 = vand.u32 %v5002, 4294901760
          %v5255 = vsub.f32 %v5002, %v5254
          %5256 = vmatmul.mubr.f32.gmra.mxu0 %v5255
          %v5257 = vpop.f32.mrf.mxu0
          %v5258 = vadd.f32 %v5175, %v5257
          %v5259 = vpop.f32.mrf.mxu0
          %5260 = vdwg.mxu0
          %5261 = vmatprep.subr.mxu0 0.0
          %5262 = vmatpush1.msra.mxu0 0.0
          %5263 = vmatprep.subr.mxu0 0.0
          %5264 = vmatpush1.msra.mxu0 0.0
          %5265 = vmatprep.subr.mxu0 0.0
          %5266 = vmatpush1.msra.mxu0 0.0
          %5267 = vmatprep.subr.mxu0 0.0
          %5268 = vmatpush1.msra.mxu0 0.0
          %5269 = vmatprep.subr.mxu0 0.0
          %5270 = vmatpush1.msra.mxu0 0.0
          %5271 = vmatprep.subr.mxu0 0.0
          %5272 = vmatpush1.msra.mxu0 0.0
          %5273 = vmatprep.subr.mxu0 0.0
          %5274 = vmatpush1.msra.mxu0 0.0
          %5275 = vmatprep.subr.mxu0 0.0
          %5276 = vmatpush1.msra.mxu0 0.0
          %5277 = vmatprep.subr.mxu0 0.0
          %5278 = vmatpush1.msra.mxu0 0.0
          %5279 = vmatprep.subr.mxu0 0.0
          %5280 = vmatpush1.msra.mxu0 0.0
          %5281 = vmatprep.subr.mxu0 0.0
          %5282 = vmatpush1.msra.mxu0 0.0
          %5283 = vmatprep.subr.mxu0 0.0
          %5284 = vmatpush1.msra.mxu0 0.0
          %5285 = vmatprep.subr.mxu0 0.0
          %5286 = vmatpush1.msra.mxu0 0.0
          %5287 = vmatprep.subr.mxu0 0.0
          %5288 = vmatpush1.msra.mxu0 0.0
          %5289 = vmatprep.subr.mxu0 0.0
          %v5290 = vand.u32 %v4993, 4294901760
          %5291 = vmatpush1.msra.mxu0 %v5290
          %5292 = vmatprep.subr.mxu0 0.0
          %v5293 = vand.u32 %v4987, 4294901760
          %5294 = vmatpush1.msra.mxu0 %v5293
          %5295 = vmatprep.subr.mxu0 0.0
          %5296 = vmatpush2.msra.mxu0 0.0
          %5297 = vmatprep.subr.mxu0 0.0
          %5298 = vmatpush2.msra.mxu0 0.0
          %5299 = vmatprep.subr.mxu0 0.0
          %5300 = vmatpush2.msra.mxu0 0.0
          %5301 = vmatprep.subr.mxu0 0.0
          %5302 = vmatpush2.msra.mxu0 0.0
          %5303 = vmatprep.subr.mxu0 0.0
          %5304 = vmatpush2.msra.mxu0 0.0
          %5305 = vmatprep.subr.mxu0 0.0
          %5306 = vmatpush2.msra.mxu0 0.0
          %5307 = vmatprep.subr.mxu0 0.0
          %5308 = vmatpush2.msra.mxu0 0.0
          %5309 = vmatprep.subr.mxu0 0.0
          %5310 = vmatpush2.msra.mxu0 0.0
          %5311 = vmatprep.subr.mxu0 0.0
          %5312 = vmatpush2.msra.mxu0 0.0
          %5313 = vmatprep.subr.mxu0 0.0
          %5314 = vmatpush2.msra.mxu0 0.0
          %5315 = vmatprep.subr.mxu0 0.0
          %5316 = vmatpush2.msra.mxu0 0.0
          %5317 = vmatprep.subr.mxu0 0.0
          %5318 = vmatpush2.msra.mxu0 0.0
          %5319 = vmatprep.subr.mxu0 0.0
          %5320 = vmatpush2.msra.mxu0 0.0
          %5321 = vmatprep.subr.mxu0 0.0
          %5322 = vmatpush2.msra.mxu0 0.0
          %5323 = vmatprep.subr.mxu0 0.0
          %5324 = vmatpush2.msra.mxu0 0.0
          %5325 = vmatprep.subr.mxu0 0.0
          %5326 = vmatpush2.msra.mxu0 0.0
          %5327 = vmatprep.mubr.f32.mxu0 0.0
          %v5328 = vand.u32 %v4999, 4294901760
          %v5329 = vsub.f32 %v4999, %v5328
          %v5330 = vand.u32 %v5329, 4294901760
          %5331 = vmatmul.mubr.f32.gmra.mxu0 %v5330
          %v5332 = vpop.f32.mrf.mxu0
          %v5333 = vadd.f32 %v5251, %v5332
          %v5334 = vpop.f32.mrf.mxu0
          %5335 = vmatprep.mubr.f32.mxu0 0.0
          %v5336 = vand.u32 %v5002, 4294901760
          %v5337 = vsub.f32 %v5002, %v5336
          %v5338 = vand.u32 %v5337, 4294901760
          %5339 = vmatmul.mubr.f32.gmra.mxu0 %v5338
          %v5340 = vpop.f32.mrf.mxu0
          %v5341 = vadd.f32 %v5258, %v5340
          %v5342 = vpop.f32.mrf.mxu0
          %5343 = vdwg.mxu0
          %5344 = vmatprep.subr.mxu0 0.0
          %5345 = vmatpush1.msra.mxu0 0.0
          %5346 = vmatprep.subr.mxu0 0.0
          %5347 = vmatpush1.msra.mxu0 0.0
          %5348 = vmatprep.subr.mxu0 0.0
          %5349 = vmatpush1.msra.mxu0 0.0
          %5350 = vmatprep.subr.mxu0 0.0
          %5351 = vmatpush1.msra.mxu0 0.0
          %5352 = vmatprep.subr.mxu0 0.0
          %5353 = vmatpush1.msra.mxu0 0.0
          %5354 = vmatprep.subr.mxu0 0.0
          %5355 = vmatpush1.msra.mxu0 0.0
          %5356 = vmatprep.subr.mxu0 0.0
          %5357 = vmatpush1.msra.mxu0 0.0
          %5358 = vmatprep.subr.mxu0 0.0
          %5359 = vmatpush1.msra.mxu0 0.0
          %5360 = vmatprep.subr.mxu0 0.0
          %5361 = vmatpush1.msra.mxu0 0.0
          %5362 = vmatprep.subr.mxu0 0.0
          %5363 = vmatpush1.msra.mxu0 0.0
          %5364 = vmatprep.subr.mxu0 0.0
          %5365 = vmatpush1.msra.mxu0 0.0
          %5366 = vmatprep.subr.mxu0 0.0
          %5367 = vmatpush1.msra.mxu0 0.0
          %5368 = vmatprep.subr.mxu0 0.0
          %5369 = vmatpush1.msra.mxu0 0.0
          %5370 = vmatprep.subr.mxu0 0.0
          %5371 = vmatpush1.msra.mxu0 0.0
          %5372 = vmatprep.subr.mxu0 0.0
          %v5373 = vand.u32 %v4993, 4294901760
          %v5374 = vsub.f32 %v4993, %v5373
          %v5375 = vand.u32 %v5374, 4294901760
          %5376 = vmatpush1.msra.mxu0 %v5375
          %5377 = vmatprep.subr.mxu0 0.0
          %v5378 = vand.u32 %v4987, 4294901760
          %v5379 = vsub.f32 %v4987, %v5378
          %v5380 = vand.u32 %v5379, 4294901760
          %5381 = vmatpush1.msra.mxu0 %v5380
          %5382 = vmatprep.subr.mxu0 0.0
          %5383 = vmatpush2.msra.mxu0 0.0
          %5384 = vmatprep.subr.mxu0 0.0
          %5385 = vmatpush2.msra.mxu0 0.0
          %5386 = vmatprep.subr.mxu0 0.0
          %5387 = vmatpush2.msra.mxu0 0.0
          %5388 = vmatprep.subr.mxu0 0.0
          %5389 = vmatpush2.msra.mxu0 0.0
          %5390 = vmatprep.subr.mxu0 0.0
          %5391 = vmatpush2.msra.mxu0 0.0
          %5392 = vmatprep.subr.mxu0 0.0
          %5393 = vmatpush2.msra.mxu0 0.0
          %5394 = vmatprep.subr.mxu0 0.0
          %5395 = vmatpush2.msra.mxu0 0.0
          %5396 = vmatprep.subr.mxu0 0.0
          %5397 = vmatpush2.msra.mxu0 0.0
          %5398 = vmatprep.subr.mxu0 0.0
          %5399 = vmatpush2.msra.mxu0 0.0
          %5400 = vmatprep.subr.mxu0 0.0
          %5401 = vmatpush2.msra.mxu0 0.0
          %5402 = vmatprep.subr.mxu0 0.0
          %5403 = vmatpush2.msra.mxu0 0.0
          %5404 = vmatprep.subr.mxu0 0.0
          %5405 = vmatpush2.msra.mxu0 0.0
          %5406 = vmatprep.subr.mxu0 0.0
          %5407 = vmatpush2.msra.mxu0 0.0
          %5408 = vmatprep.subr.mxu0 0.0
          %5409 = vmatpush2.msra.mxu0 0.0
          %5410 = vmatprep.subr.mxu0 0.0
          %5411 = vmatpush2.msra.mxu0 0.0
          %5412 = vmatprep.subr.mxu0 0.0
          %5413 = vmatpush2.msra.mxu0 0.0
          %5414 = vmatprep.mubr.f32.mxu0 0.0
          %v5415 = vand.u32 %v4999, 4294901760
          %5416 = vmatmul.mubr.f32.gmra.mxu0 %v5415
          %v5417 = vpop.f32.mrf.mxu0
          %v5418 = vadd.f32 %v5333, %v5417
          %v5419 = vpop.f32.mrf.mxu0
          %5420 = vmatprep.mubr.f32.mxu0 0.0
          %v5421 = vand.u32 %v5002, 4294901760
          %5422 = vmatmul.mubr.f32.gmra.mxu0 %v5421
          %v5423 = vpop.f32.mrf.mxu0
          %v5424 = vadd.f32 %v5341, %v5423
          %v5425 = vpop.f32.mrf.mxu0
          %5426 = vdwg.mxu0
          %5427 = vmatprep.subr.mxu0 0.0
          %5428 = vmatpush1.msra.mxu0 0.0
          %5429 = vmatprep.subr.mxu0 0.0
          %5430 = vmatpush1.msra.mxu0 0.0
          %5431 = vmatprep.subr.mxu0 0.0
          %5432 = vmatpush1.msra.mxu0 0.0
          %5433 = vmatprep.subr.mxu0 0.0
          %5434 = vmatpush1.msra.mxu0 0.0
          %5435 = vmatprep.subr.mxu0 0.0
          %5436 = vmatpush1.msra.mxu0 0.0
          %5437 = vmatprep.subr.mxu0 0.0
          %5438 = vmatpush1.msra.mxu0 0.0
          %5439 = vmatprep.subr.mxu0 0.0
          %5440 = vmatpush1.msra.mxu0 0.0
          %5441 = vmatprep.subr.mxu0 0.0
          %5442 = vmatpush1.msra.mxu0 0.0
          %5443 = vmatprep.subr.mxu0 0.0
          %5444 = vmatpush1.msra.mxu0 0.0
          %5445 = vmatprep.subr.mxu0 0.0
          %5446 = vmatpush1.msra.mxu0 0.0
          %5447 = vmatprep.subr.mxu0 0.0
          %5448 = vmatpush1.msra.mxu0 0.0
          %5449 = vmatprep.subr.mxu0 0.0
          %5450 = vmatpush1.msra.mxu0 0.0
          %5451 = vmatprep.subr.mxu0 0.0
          %5452 = vmatpush1.msra.mxu0 0.0
          %5453 = vmatprep.subr.mxu0 0.0
          %5454 = vmatpush1.msra.mxu0 0.0
          %5455 = vmatprep.subr.mxu0 0.0
          %v5456 = vand.u32 %v4993, 4294901760
          %5457 = vmatpush1.msra.mxu0 %v5456
          %5458 = vmatprep.subr.mxu0 0.0
          %v5459 = vand.u32 %v4987, 4294901760
          %5460 = vmatpush1.msra.mxu0 %v5459
          %5461 = vmatprep.subr.mxu0 0.0
          %5462 = vmatpush2.msra.mxu0 0.0
          %5463 = vmatprep.subr.mxu0 0.0
          %5464 = vmatpush2.msra.mxu0 0.0
          %5465 = vmatprep.subr.mxu0 0.0
          %5466 = vmatpush2.msra.mxu0 0.0
          %5467 = vmatprep.subr.mxu0 0.0
          %5468 = vmatpush2.msra.mxu0 0.0
          %5469 = vmatprep.subr.mxu0 0.0
          %5470 = vmatpush2.msra.mxu0 0.0
          %5471 = vmatprep.subr.mxu0 0.0
          %5472 = vmatpush2.msra.mxu0 0.0
          %5473 = vmatprep.subr.mxu0 0.0
          %5474 = vmatpush2.msra.mxu0 0.0
          %5475 = vmatprep.subr.mxu0 0.0
          %5476 = vmatpush2.msra.mxu0 0.0
          %5477 = vmatprep.subr.mxu0 0.0
          %5478 = vmatpush2.msra.mxu0 0.0
          %5479 = vmatprep.subr.mxu0 0.0
          %5480 = vmatpush2.msra.mxu0 0.0
          %5481 = vmatprep.subr.mxu0 0.0
          %5482 = vmatpush2.msra.mxu0 0.0
          %5483 = vmatprep.subr.mxu0 0.0
          %5484 = vmatpush2.msra.mxu0 0.0
          %5485 = vmatprep.subr.mxu0 0.0
          %5486 = vmatpush2.msra.mxu0 0.0
          %5487 = vmatprep.subr.mxu0 0.0
          %5488 = vmatpush2.msra.mxu0 0.0
          %5489 = vmatprep.subr.mxu0 0.0
          %5490 = vmatpush2.msra.mxu0 0.0
          %5491 = vmatprep.subr.mxu0 0.0
          %5492 = vmatpush2.msra.mxu0 0.0
          %5493 = vmatprep.mubr.f32.mxu0 0.0
          %v5494 = vand.u32 %v4999, 4294901760
          %5495 = vmatmul.mubr.f32.gmra.mxu0 %v5494
          %v5496 = vpop.f32.mrf.mxu0
          %v5497 = vadd.f32 %v5418, %v5496
          %v5498 = vpop.f32.mrf.mxu0
          %5499 = vmatprep.mubr.f32.mxu0 0.0
          %v5500 = vand.u32 %v5002, 4294901760
          %5501 = vmatmul.mubr.f32.gmra.mxu0 %v5500
          %v5502 = vpop.f32.mrf.mxu0
          %v5503 = vadd.f32 %v5424, %v5502
          %v5504 = vpop.f32.mrf.mxu0
          %5505 = vdwg.mxu0
          %s5506 = scalar_lea.vmem [#allocation6], %s1413
          %5507 = vst.msk [vmem:[%s5506] sm:$0xff] %vm394, %v5497
          %5508 = vst.msk [vmem:[%s5506 + $0x8] sm:$0xff] %vm394, %v5503
          %v5509 = vld [vmem:[#allocation2] sm:$0xff]
          %v5510 = vld [vmem:[#allocation2 + $0x8] sm:$0xff]
          %s5511 = scalar_lea.vmem [#allocation2], 16
          %v5512 = vld [vmem:[%s5511] sm:$0xff]
          %v5513 = vld [vmem:[%s5511 + $0x8] sm:$0xff]
          %v5514 = vadd.f32 %v5509, %v5512
          %v5515 = vadd.f32 %v5510, %v5513
          %s5516 = scalar_lea.vmem [#allocation2], 32
          %v5517 = vld [vmem:[%s5516] sm:$0xff]
          %v5518 = vld [vmem:[%s5516 + $0x8] sm:$0xff]
          %v5519 = vadd.f32 %v5514, %v5517
          %v5520 = vadd.f32 %v5515, %v5518
          %v5521 = vld [vmem:[#allocation3] sm:$0xff]
          %v5522 = vld [vmem:[#allocation3 + $0x8] sm:$0xff]
          %s5523 = scalar_lea.vmem [#allocation3], 16
          %v5524 = vld [vmem:[%s5523] sm:$0xff]
          %v5525 = vld [vmem:[%s5523 + $0x8] sm:$0xff]
          %v5526 = vadd.f32 %v5521, %v5524
          %v5527 = vadd.f32 %v5522, %v5525
          %s5528 = scalar_lea.vmem [#allocation3], 32
          %v5529 = vld [vmem:[%s5528] sm:$0xff]
          %v5530 = vld [vmem:[%s5528 + $0x8] sm:$0xff]
          %v5531 = vadd.f32 %v5526, %v5529
          %v5532 = vadd.f32 %v5527, %v5530
          %v5533 = vld [vmem:[#allocation4] sm:$0xff]
          %v5534 = vld [vmem:[#allocation4 + $0x8] sm:$0xff]
          %s5535 = scalar_lea.vmem [#allocation4], 16
          %v5536 = vld [vmem:[%s5535] sm:$0xff]
          %v5537 = vld [vmem:[%s5535 + $0x8] sm:$0xff]
          %v5538 = vadd.f32 %v5533, %v5536
          %v5539 = vadd.f32 %v5534, %v5537
          %s5540 = scalar_lea.vmem [#allocation4], 32
          %v5541 = vld [vmem:[%s5540] sm:$0xff]
          %v5542 = vld [vmem:[%s5540 + $0x8] sm:$0xff]
          %v5543 = vadd.f32 %v5538, %v5541
          %v5544 = vadd.f32 %v5539, %v5542
          %v5545 = vld [vmem:[#allocation5] sm:$0xff]
          %v5546 = vld [vmem:[#allocation5 + $0x8] sm:$0xff]
          %s5547 = scalar_lea.vmem [#allocation5], 16
          %v5548 = vld [vmem:[%s5547] sm:$0xff]
          %v5549 = vld [vmem:[%s5547 + $0x8] sm:$0xff]
          %v5550 = vadd.f32 %v5545, %v5548
          %v5551 = vadd.f32 %v5546, %v5549
          %s5552 = scalar_lea.vmem [#allocation5], 32
          %v5553 = vld [vmem:[%s5552] sm:$0xff]
          %v5554 = vld [vmem:[%s5552 + $0x8] sm:$0xff]
          %v5555 = vadd.f32 %v5550, %v5553
          %v5556 = vadd.f32 %v5551, %v5554
          %v5557 = vld [vmem:[#allocation6] sm:$0xff]
          %v5558 = vld [vmem:[#allocation6 + $0x8] sm:$0xff]
          %s5559 = scalar_lea.vmem [#allocation6], 16
          %v5560 = vld [vmem:[%s5559] sm:$0xff]
          %v5561 = vld [vmem:[%s5559 + $0x8] sm:$0xff]
          %v5562 = vadd.f32 %v5557, %v5560
          %v5563 = vadd.f32 %v5558, %v5561
          %s5564 = scalar_lea.vmem [#allocation6], 32
          %v5565 = vld [vmem:[%s5564] sm:$0xff]
          %v5566 = vld [vmem:[%s5564 + $0x8] sm:$0xff]
          %v5567 = vadd.f32 %v5562, %v5565
          %v5568 = vadd.f32 %v5563, %v5566
          %v5569 = vmul.f32 %v5519, %v5531
          %v5570 = vmul.f32 %v5520, %v5532
          %v5571 = vmul.f32 %v5569, 0.037037037
          %v5572 = vmul.f32 %v5570, 0.037037037
          %v5573 = vsub.f32 %v5567, %v5571
          %v5574 = vsub.f32 %v5568, %v5572
          %v5575 = vmul.f32 %v5519, %v5519
          %v5576 = vmul.f32 %v5520, %v5520
          %v5577 = vmul.f32 %v5575, 0.037037037
          %v5578 = vmul.f32 %v5576, 0.037037037
          %v5579 = vsub.f32 %v5543, %v5577
          %v5580 = vsub.f32 %v5544, %v5578
          %v5581 = vmul.f32 %v5531, %v5531
          %v5582 = vmul.f32 %v5532, %v5532
          %v5583 = vmul.f32 %v5581, 0.037037037
          %v5584 = vmul.f32 %v5582, 0.037037037
          %v5585 = vsub.f32 %v5555, %v5583
          %v5586 = vsub.f32 %v5556, %v5584
          %v5587 = vmul.f32 %v5579, %v5585
          %v5588 = vmul.f32 %v5580, %v5586
          %v5589 = vadd.f32 %v5587, 1e-08
          %v5590 = vadd.f32 %v5588, 1e-08
          %v5591 = vrcp.pop %v5589
          %v5592 = vrcp.pop %v5590
          %v5593 = vmul.f32 %v5589, %v5591
          %v5594 = vmul.f32 %v5590, %v5592
          %v5595 = vsub.f32 2.0, %v5593
          %v5596 = vsub.f32 2.0, %v5594
          %v5597 = vmul.f32 %v5591, %v5595
          %v5598 = vmul.f32 %v5592, %v5596
          %v5599 = vmul.f32 %v5573, %v5573
          %v5600 = vmul.f32 %v5574, %v5574
          %v5601 = vmul.f32 %v5599, %v5597
          %v5602 = vmul.f32 %v5600, %v5598
          %v5603 = vsel %vm394, %v5601, 0.0
          %v5604 = vsel %vm394, %v5602, 0.0
          %v5605 = vadd.f32 %v5603, %v5604
          %v5606 = vrot.slane %v5605, 4
          %v5607 = vadd.f32 %v5605, %v5606
          %v5608 = vrot.slane %v5607, 2
          %v5609 = vadd.f32 %v5607, %v5608
          %v5610 = vrot.slane %v5609, 1
          %v5611 = vadd.f32 %v5609, %v5610
          %v5612 = vadd.f32 %v5611, 0.0
          %p5613 = scmp.ge.s32.totalorder %s365, 1
          %s5614 = scalar_select %p5613, 1, 0
          %v5615 = vstv %s5614
          %vm5616 = vcmp.eq.s32.totalorder %v5615, 1
          %v5617 = vsel %vm5616, %v5612, 0.0
          %v5618 = vadd.f32 %v364, %v5617
        $region61: #{_lambda_.1} parent=35 // loop_footer
          %s361 = sadd.s32 %s359, 1
        $region62: #{_lambda_.1} parent=35 // loop_footer_branch
          %358 = sbr.rel target = $region58
        $region63: #{_lambda_.1} parent=35 // loop_exit
          _
        %vm5619 = vcmask 122880
        %5620 = vst.msk [vmem:[%s316] sm:$0x1] %vm5619, %v364
        %p5621 = scmp.eq.s32.totalorder %s27, 1
        // Predicated region
        $region64: #{_lambda_.1} parent=35 // pred_check
          %p5622 = pneg %p5621
        $region65: #{_lambda_.1} parent=35 // pred_check_branch
          %5624 = sbr.rel (%p5622) target = $region67
        $region66: #{_lambda_.1} parent=35 // pred_region
          %s5625 = scalar_lea.vmem [#allocation2], 32
          %vm5626 = vcmask 130048
          %5627 = vst.msk [vmem:[%s5625] sm:$0xff] %vm5626, 0.0
          %5628 = vst.msk [vmem:[%s5625 + $0x8] sm:$0xff] %vm5626, 0.0
          %s5629 = scalar_lea.vmem [#allocation3], 32
          %5630 = vst.msk [vmem:[%s5629] sm:$0xff] %vm5626, 0.0
          %5631 = vst.msk [vmem:[%s5629 + $0x8] sm:$0xff] %vm5626, 0.0
          %s5632 = scalar_lea.vmem [#allocation4], 32
          %5633 = vst.msk [vmem:[%s5632] sm:$0xff] %vm5626, 0.0
          %5634 = vst.msk [vmem:[%s5632 + $0x8] sm:$0xff] %vm5626, 0.0
          %s5635 = scalar_lea.vmem [#allocation5], 32
          %5636 = vst.msk [vmem:[%s5635] sm:$0xff] %vm5626, 0.0
          %5637 = vst.msk [vmem:[%s5635 + $0x8] sm:$0xff] %vm5626, 0.0
          %s5638 = scalar_lea.vmem [#allocation6], 32
          %5639 = vst.msk [vmem:[%s5638] sm:$0xff] %vm5626, 0.0
          %5640 = vst.msk [vmem:[%s5638 + $0x8] sm:$0xff] %vm5626, 0.0
          %v5641 = vld [vmem:[#allocation2] sm:$0xff]
          %v5642 = vld [vmem:[#allocation2 + $0x8] sm:$0xff]
          %s5643 = scalar_lea.vmem [#allocation2], 16
          %v5644 = vld [vmem:[%s5643] sm:$0xff]
          %v5645 = vld [vmem:[%s5643 + $0x8] sm:$0xff]
          %v5646 = vadd.f32 %v5641, %v5644
          %v5647 = vadd.f32 %v5642, %v5645
          %v5648 = vld [vmem:[%s5625] sm:$0xff]
          %v5649 = vld [vmem:[%s5625 + $0x8] sm:$0xff]
          %v5650 = vadd.f32 %v5646, %v5648
          %v5651 = vadd.f32 %v5647, %v5649
          %v5652 = vld [vmem:[#allocation3] sm:$0xff]
          %v5653 = vld [vmem:[#allocation3 + $0x8] sm:$0xff]
          %s5654 = scalar_lea.vmem [#allocation3], 16
          %v5655 = vld [vmem:[%s5654] sm:$0xff]
          %v5656 = vld [vmem:[%s5654 + $0x8] sm:$0xff]
          %v5657 = vadd.f32 %v5652, %v5655
          %v5658 = vadd.f32 %v5653, %v5656
          %v5659 = vld [vmem:[%s5629] sm:$0xff]
          %v5660 = vld [vmem:[%s5629 + $0x8] sm:$0xff]
          %v5661 = vadd.f32 %v5657, %v5659
          %v5662 = vadd.f32 %v5658, %v5660
          %v5663 = vld [vmem:[#allocation4] sm:$0xff]
          %v5664 = vld [vmem:[#allocation4 + $0x8] sm:$0xff]
          %s5665 = scalar_lea.vmem [#allocation4], 16
          %v5666 = vld [vmem:[%s5665] sm:$0xff]
          %v5667 = vld [vmem:[%s5665 + $0x8] sm:$0xff]
          %v5668 = vadd.f32 %v5663, %v5666
          %v5669 = vadd.f32 %v5664, %v5667
          %v5670 = vld [vmem:[%s5632] sm:$0xff]
          %v5671 = vld [vmem:[%s5632 + $0x8] sm:$0xff]
          %v5672 = vadd.f32 %v5668, %v5670
          %v5673 = vadd.f32 %v5669, %v5671
          %v5674 = vld [vmem:[#allocation5] sm:$0xff]
          %v5675 = vld [vmem:[#allocation5 + $0x8] sm:$0xff]
          %s5676 = scalar_lea.vmem [#allocation5], 16
          %v5677 = vld [vmem:[%s5676] sm:$0xff]
          %v5678 = vld [vmem:[%s5676 + $0x8] sm:$0xff]
          %v5679 = vadd.f32 %v5674, %v5677
          %v5680 = vadd.f32 %v5675, %v5678
          %v5681 = vld [vmem:[%s5635] sm:$0xff]
          %v5682 = vld [vmem:[%s5635 + $0x8] sm:$0xff]
          %v5683 = vadd.f32 %v5679, %v5681
          %v5684 = vadd.f32 %v5680, %v5682
          %v5685 = vld [vmem:[#allocation6] sm:$0xff]
          %v5686 = vld [vmem:[#allocation6 + $0x8] sm:$0xff]
          %s5687 = scalar_lea.vmem [#allocation6], 16
          %v5688 = vld [vmem:[%s5687] sm:$0xff]
          %v5689 = vld [vmem:[%s5687 + $0x8] sm:$0xff]
          %v5690 = vadd.f32 %v5685, %v5688
          %v5691 = vadd.f32 %v5686, %v5689
          %v5692 = vld [vmem:[%s5638] sm:$0xff]
          %v5693 = vld [vmem:[%s5638 + $0x8] sm:$0xff]
          %v5694 = vadd.f32 %v5690, %v5692
          %v5695 = vadd.f32 %v5691, %v5693
          %v5696 = vmul.f32 %v5650, %v5661
          %v5697 = vmul.f32 %v5651, %v5662
          %v5698 = vmul.f32 %v5696, 0.037037037
          %v5699 = vmul.f32 %v5697, 0.037037037
          %v5700 = vsub.f32 %v5694, %v5698
          %v5701 = vsub.f32 %v5695, %v5699
          %v5702 = vmul.f32 %v5650, %v5650
          %v5703 = vmul.f32 %v5651, %v5651
          %v5704 = vmul.f32 %v5702, 0.037037037
          %v5705 = vmul.f32 %v5703, 0.037037037
          %v5706 = vsub.f32 %v5672, %v5704
          %v5707 = vsub.f32 %v5673, %v5705
          %v5708 = vmul.f32 %v5661, %v5661
          %v5709 = vmul.f32 %v5662, %v5662
          %v5710 = vmul.f32 %v5708, 0.037037037
          %v5711 = vmul.f32 %v5709, 0.037037037
          %v5712 = vsub.f32 %v5683, %v5710
          %v5713 = vsub.f32 %v5684, %v5711
          %v5714 = vmul.f32 %v5706, %v5712
          %v5715 = vmul.f32 %v5707, %v5713
          %v5716 = vadd.f32 %v5714, 1e-08
          %v5717 = vadd.f32 %v5715, 1e-08
          %v5718 = vrcp.pop %v5716
          %v5719 = vrcp.pop %v5717
          %v5720 = vmul.f32 %v5716, %v5718
          %v5721 = vmul.f32 %v5717, %v5719
          %v5722 = vsub.f32 2.0, %v5720
          %v5723 = vsub.f32 2.0, %v5721
          %v5724 = vmul.f32 %v5718, %v5722
          %v5725 = vmul.f32 %v5719, %v5723
          %v5726 = vmul.f32 %v5700, %v5700
          %v5727 = vmul.f32 %v5701, %v5701
          %v5728 = vmul.f32 %v5726, %v5724
          %v5729 = vmul.f32 %v5727, %v5725
          %v5730 = vsel %vm5626, %v5728, 0.0
          %v5731 = vsel %vm5626, %v5729, 0.0
          %v5732 = vadd.f32 %v5730, %v5731
          %v5733 = vrot.slane %v5732, 4
          %v5734 = vadd.f32 %v5732, %v5733
          %v5735 = vrot.slane %v5734, 2
          %v5736 = vadd.f32 %v5734, %v5735
          %v5737 = vrot.slane %v5736, 1
          %v5738 = vadd.f32 %v5736, %v5737
          %v5739 = vadd.f32 %v5738, 0.0
          %v5740 = vadd.f32 %v364, %v5739
          %5741 = vst.msk [vmem:[%s316] sm:$0x1] %vm5619, %v5740
        $region67: #{_lambda_.1} parent=35 // pred_fallthru
          _
        %p5742 = scmp.lt.s32.totalorder %s26, 1
        %s5743 = scalar_select %p5742, %s26, 1
        %p5744 = scmp.lt.s32.totalorder %s27, 1
        %s5745 = scalar_select %p5744, %s27, 1
        %s5746 = smul.addr %s5743, 2
        %s5747 = sadd.s32 %s5745, %s5746
        %s5748 = scalar_lea.vmem %s4, %s5747
        // Predicated region
        $region68: #{_lambda_.1} parent=35 // pred_check
          %p5749 = pneg %p152
        $region69: #{_lambda_.1} parent=35 // pred_check_branch
          %5751 = sbr.rel (%p5749) target = $region71
        $region70: #{_lambda_.1} parent=35 // pred_region
          _
        $region71: #{_lambda_.1} parent=35 // pred_fallthru
          _
      $region36: #{_lambda_.1} parent=5 // pred_fallthru
        _
      %p5752 = scmp.le.s32.totalorder 2, %s17
      // Predicated region
      $region72: #{_lambda_.1} parent=5 // pred_check
        %p5753 = pneg %p5752
      $region73: #{_lambda_.1} parent=5 // pred_check_branch
        %5755 = sbr.rel (%p5753) target = $region75
      $region74: #{_lambda_.1} parent=5 // pred_region
        %s5756 = ssub.s32 %s17, 2
        // Predicated region
        $region76: #{_lambda_.1} parent=74 // pred_check
          %p5757 = pneg %p158
        $region77: #{_lambda_.1} parent=74 // pred_check_branch
          %5759 = sbr.rel (%p5757) target = $region79
        $region78: #{_lambda_.1} parent=74 // pred_region
          %p5760 = scmp.lt.s32.totalorder %s28, 1
          %s5761 = scalar_select %p5760, %s28, 1
          %p5762 = scmp.lt.s32.totalorder %s29, 1
          %s5763 = scalar_select %p5762, %s29, 1
          %s5764 = smul.addr %s5761, 2
          %s5765 = sadd.s32 %s5763, %s5764
          %s5766 = scalar_lea.vmem %s4, %s5765
        $region79: #{_lambda_.1} parent=74 // pred_fallthru
          _
      $region75: #{_lambda_.1} parent=5 // pred_fallthru
        _
    $region6: #{_lambda_.1} parent=1 // loop_footer
      %s21 = sadd.s32 1, %s17
    $region7: #{_lambda_.1} parent=1 // loop_footer_branch
      %16 = sbr.rel target = $region3
    $region8: #{_lambda_.1} parent=1 // loop_exit
      _
    %5767 = vsyncpa [#allocation8], 1
    %s5768 = scalar_lea.sflag [#allocation8], 1
    %5769 = vsyncpa %s5768, 1
    %5770 = vsyncpa [#allocation10], 1
    %s5771 = scalar_lea.sflag [#allocation10], 1
    %5772 = vsyncpa %s5771, 1
    %5773 = vsyncpa [#allocation13], 1

</llo_original>
